<compile_context>
chip_gen: v7x
topology: tpu7x:2x2x1
jax: 0.10.0
libtpu: 0.0.40
codegen_flags: <defaults>
</compile_context>

<pallas_src>
import math

import jax
import jax.numpy as jnp
from jax.experimental import pallas as pl
from jax.experimental.pallas import tpu as pltpu


LANE = 128          # lane width: pad the class dimension up to this
FEAT = 4096         # 1024 * 2 * 2 flattened densenet feature width
HID = 512           # fc1 output width


# ----------------------------------------------------------------------------
# Pallas kernel: fused fc1(int8, +folded BN) + (dropout=id) + relu + fc5(bf16)
# ----------------------------------------------------------------------------
def fc_head_kernel(x_ref, w1q_ref, s1_ref, b1_ref, w2_ref, b2_ref, o_ref):
    # fc1: int8 weights, dequantized via a per-output-column scale that is
    # applied to the f32 accumulator (the scale already contains the eval-mode
    # BatchNorm1d affine fold).  int8 -> bf16 cast is exact (|q| <= 127).
    w1 = w1q_ref[...].astype(jnp.bfloat16)                       # (FEAT, HID)
    acc = jnp.dot(x_ref[...], w1,                                # bf16 MXU,
                  preferred_element_type=jnp.float32)            # f32 accumulate
    h = acc * s1_ref[...] + b1_ref[...]                          # dequant + BN + bias

    # Dropout(0.5) is identity in eval mode; ReLU then fc5 on the bf16 MXU path.
    h = jnp.maximum(h, 0.0).astype(jnp.bfloat16)
    out = jnp.dot(h, w2_ref[...], preferred_element_type=jnp.float32)
    o_ref[...] = out + b2_ref[...]


def fc_head_forward(feat_bf16, w1_q, s1, b1, w2_bf16, b2):
    """feat_bf16: (B, 4096) bf16.  Returns (B, LANE) f32 padded logits."""
    B, K = feat_bf16.shape
    assert K == FEAT
    Cp = w2_bf16.shape[1]

    return pl.pallas_call(
        fc_head_kernel,
        out_shape=jax.ShapeDtypeStruct((B, Cp), jnp.float32),
        grid_spec=pltpu.PrefetchScalarGridSpec(
            num_scalar_prefetch=0,
            grid=(1,),                                    # single step: no pipeline
            in_specs=[
                pl.BlockSpec((B, FEAT), lambda k: (0, 0)),     # x (bf16)
                pl.BlockSpec((FEAT, HID), lambda k: (0, 0)),   # W1 (int8)
                pl.BlockSpec((1, HID), lambda k: (0, 0)),      # per-col scale (f32)
                pl.BlockSpec((1, HID), lambda k: (0, 0)),      # folded b1 (f32)
                pl.BlockSpec((HID, Cp), lambda k: (0, 0)),     # W2 (bf16, padded)
                pl.BlockSpec((1, Cp), lambda k: (0, 0)),       # b2 (f32, padded)
            ],
            out_specs=pl.BlockSpec((B, Cp), lambda k: (0, 0)),
        ),
        compiler_params=pltpu.CompilerParams(
            dimension_semantics=("arbitrary",),
            vmem_limit_bytes=32 * 1024 * 1024),
    )(feat_bf16, w1_q, s1, b1, w2_bf16, b2)


# ----------------------------------------------------------------------------
# Parameter setup (matches weights_init_dl / nn defaults), plain-JAX glue
# ----------------------------------------------------------------------------
def init_params(key, num_classes):
    k1, k2 = jax.random.split(key)

    # fc1: Linear(1024*2*2=4096, 512); uniform(+-sqrt(6/(fan_in+fan_out))), bias 0
    bound1 = math.sqrt(6.0 / (FEAT + HID))
    w1 = jax.random.uniform(k1, (FEAT, HID), jnp.float32,
                            minval=-bound1, maxval=bound1)
    b1 = jnp.zeros((1, HID), jnp.float32)

    # bn22: BatchNorm1d(512) eval affine: gamma=1, beta=0, mean=0, var=1.
    eps = 1e-5
    gamma = jnp.ones((1, HID), jnp.float32)
    beta = jnp.zeros((1, HID), jnp.float32)
    running_mean = jnp.zeros((1, HID), jnp.float32)
    running_var = jnp.ones((1, HID), jnp.float32)
    bn_scale = gamma / jnp.sqrt(running_var + eps)
    bn_shift = beta - running_mean * bn_scale

    # Fold BN into fc1: y = (x@W1 + b1) * s + t  ==  x @ (W1*s) + (b1*s + t)
    w1_folded = w1 * bn_scale
    b1_folded = b1 * bn_scale + bn_shift

    # Symmetric per-output-column int8 quantization of the folded W1.
    amax = jnp.max(jnp.abs(w1_folded), axis=0, keepdims=True)      # (1, HID)
    qscale = jnp.maximum(amax, 1e-12) / 127.0
    w1_q = jnp.clip(jnp.round(w1_folded / qscale), -127, 127).astype(jnp.int8)

    # fc5: Linear(512, num_classes); lane-padded to 128 columns; bf16 weights.
    bound2 = math.sqrt(6.0 / (HID + num_classes))
    w2 = jax.random.uniform(k2, (HID, num_classes), jnp.float32,
                            minval=-bound2, maxval=bound2)
    b2 = jnp.zeros((1, num_classes), jnp.float32)
    c_pad = LANE - num_classes
    w2_padded = jnp.pad(w2, ((0, 0), (0, c_pad))).astype(jnp.bfloat16)
    b2_padded = jnp.pad(b2, ((0, 0), (0, c_pad)))                  # f32 (tiny)

    return dict(
        w1_q=w1_q,                # int8 weights (halved HBM stream)
        s1=qscale,                # per-column dequant scale (BN fold included)
        b1=b1_folded,             # BN-folded bias (f32)
        w2=w2_padded, b2=b2_padded,
        num_classes=num_classes,
    )


def dl_cifar_classifier_forward(x, params):
    """Mirrors DLCifarClassifer.forward (eval mode)."""
    B = x.shape[0]
    # torch: reshape -> (B,1,64,64), cat to 3 channels, densenet121 features,
    # flatten -> (B, 1024*2*2), then fc_block.
    # TODO(synk): self.dl.features (densenet121 backbone) not implemented;
    # the flattened input is used directly as the (B, 4096) feature vector.
    feat = x.reshape(B, -1).astype(jnp.bfloat16)                   # (B, 4096)
    logits_padded = fc_head_forward(feat, params["w1_q"], params["s1"],
                                    params["b1"], params["w2"], params["b2"])
    return logits_padded[:, :params["num_classes"]]


def reference_forward(x, params):
    """Plain-JAX reference of the fused head (same quantized weights)."""
    B = x.shape[0]
    feat = x.reshape(B, -1).astype(jnp.bfloat16).astype(jnp.float32)
    w1 = params["w1_q"].astype(jnp.float32)
    h = (feat @ w1) * params["s1"] + params["b1"]
    h = jnp.maximum(h, 0.0).astype(jnp.bfloat16).astype(jnp.float32)
    out = h @ params["w2"].astype(jnp.float32) + params["b2"]
    return out[:, :params["num_classes"]]


if __name__ == "__main__":
    num_classes = 10
    key = jax.random.PRNGKey(0)
    kx, kp = jax.random.split(key)

    # Input consistent with forward(): reshapeable to (B, 1, 64, 64).
    x = jax.random.normal(kx, (2, 1, 64, 64), dtype=jnp.float32)
    params = init_params(kp, num_classes)

    out = dl_cifar_classifier_forward(x, params)
    out = jax.block_until_ready(out)

    ref = reference_forward(x, params)
    assert out.shape == (2, num_classes)
    assert jnp.allclose(out, ref, atol=2e-3, rtol=2e-3)

    print("KERNEL_OK")
</pallas_src>

<mosaic_0001>
module attributes {stable_mosaic.version = 11 : i64} {
  func.func @fc_head_kernel(%arg0: i32, %arg1: memref<2x4096xbf16, #tpu.memory_space<vmem>>, %arg2: memref<4096x512xi8, #tpu.memory_space<vmem>>, %arg3: memref<1x512xf32, #tpu.memory_space<vmem>>, %arg4: memref<1x512xf32, #tpu.memory_space<vmem>>, %arg5: memref<512x128xbf16, #tpu.memory_space<vmem>>, %arg6: memref<1x128xf32, #tpu.memory_space<vmem>>, %arg7: memref<2x128xf32, #tpu.memory_space<vmem>>) attributes {dimension_semantics = [#tpu.dimension_semantics<arbitrary>], iteration_bounds = array<i64: 1>, scalar_prefetch = 0 : i64, scratch_operands = 0 : i64, tpu.core_type = #tpu.core_type<tc>, window_params = [{pipeline_mode = #tpu.pipeline_mode<synchronous>, transform_indices = @transform_0, window_bounds = array<i64: 2, 4096>}, {pipeline_mode = #tpu.pipeline_mode<synchronous>, transform_indices = @transform_1, window_bounds = array<i64: 4096, 512>}, {pipeline_mode = #tpu.pipeline_mode<synchronous>, transform_indices = @transform_2, window_bounds = array<i64: 1, 512>}, {pipeline_mode = #tpu.pipeline_mode<synchronous>, transform_indices = @transform_3, window_bounds = array<i64: 1, 512>}, {pipeline_mode = #tpu.pipeline_mode<synchronous>, transform_indices = @transform_4, window_bounds = array<i64: 512, 128>}, {pipeline_mode = #tpu.pipeline_mode<synchronous>, transform_indices = @transform_5, window_bounds = array<i64: 1, 128>}, {pipeline_mode = #tpu.pipeline_mode<synchronous>, transform_indices = @transform_6, window_bounds = array<i64: 2, 128>}]} {
    %c0 = arith.constant 0 : index
    %c0_0 = arith.constant 0 : index
    %0 = vector.load %arg2[%c0, %c0_0] : memref<4096x512xi8, #tpu.memory_space<vmem>>, vector<4096x512xi8>
    %1 = arith.sitofp %0 : vector<4096x512xi8> to vector<4096x512xbf16>
    %c0_1 = arith.constant 0 : index
    %c0_2 = arith.constant 0 : index
    %2 = vector.load %arg1[%c0_1, %c0_2] : memref<2x4096xbf16, #tpu.memory_space<vmem>>, vector<2x4096xbf16>
    %cst = arith.constant dense<0.000000e+00> : vector<2x512xf32>
    %3 = tpu.matmul %2, %1, %cst {dimension_numbers = #tpu.dot_dimension_numbers<[1], [0], [0], [1], [0, 0, 1, 1], [], []>} : vector<2x4096xbf16>, vector<4096x512xbf16>, vector<2x512xf32> -> vector<2x512xf32>
    %c0_3 = arith.constant 0 : index
    %c0_4 = arith.constant 0 : index
    %4 = vector.load %arg3[%c0_3, %c0_4] : memref<1x512xf32, #tpu.memory_space<vmem>>, vector<1x512xf32>
    %5 = vector.broadcast %4 : vector<1x512xf32> to vector<2x512xf32>
    %6 = arith.mulf %3, %5 : vector<2x512xf32>
    %c0_5 = arith.constant 0 : index
    %c0_6 = arith.constant 0 : index
    %7 = vector.load %arg4[%c0_5, %c0_6] : memref<1x512xf32, #tpu.memory_space<vmem>>, vector<1x512xf32>
    %8 = vector.broadcast %7 : vector<1x512xf32> to vector<2x512xf32>
    %9 = arith.addf %6, %8 : vector<2x512xf32>
    %cst_7 = arith.constant 0.000000e+00 : f32
    %10 = vector.broadcast %cst_7 : f32 to vector<2x512xf32>
    %11 = arith.maximumf %9, %10 : vector<2x512xf32>
    %12 = arith.truncf %11 : vector<2x512xf32> to vector<2x512xbf16>
    %c0_8 = arith.constant 0 : index
    %c0_9 = arith.constant 0 : index
    %13 = vector.load %arg5[%c0_8, %c0_9] : memref<512x128xbf16, #tpu.memory_space<vmem>>, vector<512x128xbf16>
    %cst_10 = arith.constant dense<0.000000e+00> : vector<2x128xf32>
    %14 = tpu.matmul %12, %13, %cst_10 {dimension_numbers = #tpu.dot_dimension_numbers<[1], [0], [0], [1], [0, 0, 1, 1], [], []>} : vector<2x512xbf16>, vector<512x128xbf16>, vector<2x128xf32> -> vector<2x128xf32>
    %c0_11 = arith.constant 0 : index
    %c0_12 = arith.constant 0 : index
    %15 = vector.load %arg6[%c0_11, %c0_12] : memref<1x128xf32, #tpu.memory_space<vmem>>, vector<1x128xf32>
    %16 = vector.broadcast %15 : vector<1x128xf32> to vector<2x128xf32>
    %17 = arith.addf %14, %16 : vector<2x128xf32>
    %c0_13 = arith.constant 0 : index
    %c0_14 = arith.constant 0 : index
    %18 = vector.load %arg7[%c0_13, %c0_14] : memref<2x128xf32, #tpu.memory_space<vmem>>, vector<2x128xf32>
    tpu.vector_store %arg7[%c0_13, %c0_14], %17 {strides = array<i32>} : memref<2x128xf32, #tpu.memory_space<vmem>>, vector<2x128xf32>,
    return
  }
  func.func @transform_0(%arg0: i32) -> (i32, i32) {
    %c0_i32 = arith.constant 0 : i32
    %c0_i32_0 = arith.constant 0 : i32
    %c0_i32_1 = arith.constant 0 : i32
    return %c0_i32, %c0_i32_0 : i32, i32
  }
  func.func @transform_1(%arg0: i32) -> (i32, i32) {
    %c0_i32 = arith.constant 0 : i32
    %c0_i32_0 = arith.constant 0 : i32
    %c0_i32_1 = arith.constant 0 : i32
    return %c0_i32, %c0_i32_0 : i32, i32
  }
  func.func @transform_2(%arg0: i32) -> (i32, i32) {
    %c0_i32 = arith.constant 0 : i32
    %c0_i32_0 = arith.constant 0 : i32
    %c0_i32_1 = arith.constant 0 : i32
    return %c0_i32, %c0_i32_0 : i32, i32
  }
  func.func @transform_3(%arg0: i32) -> (i32, i32) {
    %c0_i32 = arith.constant 0 : i32
    %c0_i32_0 = arith.constant 0 : i32
    %c0_i32_1 = arith.constant 0 : i32
    return %c0_i32, %c0_i32_0 : i32, i32
  }
  func.func @transform_4(%arg0: i32) -> (i32, i32) {
    %c0_i32 = arith.constant 0 : i32
    %c0_i32_0 = arith.constant 0 : i32
    %c0_i32_1 = arith.constant 0 : i32
    return %c0_i32, %c0_i32_0 : i32, i32
  }
  func.func @transform_5(%arg0: i32) -> (i32, i32) {
    %c0_i32 = arith.constant 0 : i32
    %c0_i32_0 = arith.constant 0 : i32
    %c0_i32_1 = arith.constant 0 : i32
    return %c0_i32, %c0_i32_0 : i32, i32
  }
  func.func @transform_6(%arg0: i32) -> (i32, i32) {
    %c0_i32 = arith.constant 0 : i32
    %c0_i32_0 = arith.constant 0 : i32
    %c0_i32_1 = arith.constant 0 : i32
    return %c0_i32, %c0_i32_0 : i32, i32
  }
}

</mosaic_0001>

<llo_original>
// kernel: tpu_custom_call.1
$region0: #{tpu_custom_call.1}
  #allocation0 [shape = 'u32[]', space=smem, size = 0x4, offset = 0x4, fixed_abs, tag = 'smem constant byte address 0x4 - core index']
  #allocation1 [shape = 'u32[144,128]{1,0:T(1,128)}', space=vmem, size = 0x12000, scoped, tag = 'internal scratch']
  %s0 = inlined_call_operand.hbm [shape: bf16[2,4096], index: 0, kind: input, shape index: {}]
  %s1 = inlined_call_operand.hbm [shape: s8[4096,512], index: 1, kind: input, shape index: {}]
  %s2 = inlined_call_operand.hbm [shape: f32[1,512], index: 2, kind: input, shape index: {}]
  %s3 = inlined_call_operand.hbm [shape: f32[1,512], index: 3, kind: input, shape index: {}]
  %s4 = inlined_call_operand.hbm [shape: bf16[512,128], index: 4, kind: input, shape index: {}]
  %s5 = inlined_call_operand.hbm [shape: f32[1,128], index: 5, kind: input, shape index: {}]
  %s6 = inlined_call_operand.hbm [shape: f32[2,128], index: 6, kind: output, shape index: {}]
  %s7 = sld [smem:[#allocation0]]
  $region58: #{tpu_custom_call.1} parent=0
    _
  %s9 = ssub.s32 1, %s7
  %s10 = scalar_select 0, %s9, %s7
  $region1: #{tpu_custom_call.1} parent=0
    #allocation2 [shape = 'u8[16384]{0}', space=vmem, size = 0x4000, scoped, tag = 'input window, operand 0, single buffered']
    #allocation3 [shape = 's32[1]{0}', space=sflag, size = 0x4, scoped, tag = 'scoped memory for tpu_custom_call.1']
    #allocation4 [shape = 's32[1]{0}', space=sflag, size = 0x4, scoped, tag = 'scoped memory for tpu_custom_call.1']
    #allocation5 [shape = 'u8[2097152]{0}', space=vmem, size = 0x200000, scoped, tag = 'input window, operand 1, single buffered']
    #allocation6 [shape = 's32[1]{0}', space=sflag, size = 0x4, scoped, tag = 'scoped memory for tpu_custom_call.1']
    #allocation7 [shape = 'u8[2048]{0}', space=vmem, size = 0x800, scoped, tag = 'input window, operand 2, single buffered']
    #allocation8 [shape = 'u8[2048]{0}', space=vmem, size = 0x800, scoped, tag = 'input window, operand 3, single buffered']
    #allocation9 [shape = 's32[1]{0}', space=sflag, size = 0x4, scoped, tag = 'scoped memory for tpu_custom_call.1']
    #allocation10 [shape = 'u8[131072]{0}', space=vmem, size = 0x20000, scoped, tag = 'input window, operand 4, single buffered']
    #allocation11 [shape = 'u8[512]{0}', space=vmem, size = 0x400, scoped, tag = 'input window, operand 5, single buffered']
    #allocation12 [shape = 's32[1]{0}', space=sflag, size = 0x4, scoped, tag = 'scoped memory for tpu_custom_call.1']
    #allocation13 [shape = 'u8[1024]{0}', space=vmem, size = 0x400, scoped, tag = 'output window, operand 0, single buffered']
    %11 = vsyncpa [#allocation3], 0
    %12 = vsyncpa [#allocation6], 0
    %13 = vsyncpa [#allocation9], 0
    %14 = vsyncpa [#allocation12], 0
    %15 = vsyncpa [#allocation4], 0
    // Predicated region
    $region2: #{tpu_custom_call.1} parent=1 // pred_check
      _
    $region3: #{tpu_custom_call.1} parent=1 // pred_check_branch
      %17 = sbr.rel (0) target = $region5
    $region4: #{tpu_custom_call.1} parent=1 // pred_region
      %s19 = ssub.s32 512, 512
      %20 = vsyncadd [#allocation3], %s19
      %s22 = sshll.u32 [#allocation2], 4
      %s23 = int_to_ptr.vmem [resolvable:$true] %s22
      %25 = dma.hbm_to_vmem [thread:$0]  %s0, 512, %s23, [#allocation3]
    $region5: #{tpu_custom_call.1} parent=1 // pred_fallthru
      _
    // Predicated region
    $region6: #{tpu_custom_call.1} parent=1 // pred_check
      _
    $region7: #{tpu_custom_call.1} parent=1 // pred_check_branch
      %27 = sbr.rel (0) target = $region9
    $region8: #{tpu_custom_call.1} parent=1 // pred_region
      %s29 = ssub.s32 65536, 65536
      %30 = vsyncadd [#allocation6], %s29
      %s31 = sshll.u32 [#allocation5], 4
      %s32 = int_to_ptr.vmem [resolvable:$true] %s31
      %37 = dma.hbm_to_vmem [thread:$0]  %s1, 65536, %s32, [#allocation6], 512, 512, 32
    $region9: #{tpu_custom_call.1} parent=1 // pred_fallthru
      _
    // Predicated region
    $region10: #{tpu_custom_call.1} parent=1 // pred_check
      _
    $region11: #{tpu_custom_call.1} parent=1 // pred_check_branch
      %39 = sbr.rel (0) target = $region13
    $region12: #{tpu_custom_call.1} parent=1 // pred_region
      %s41 = ssub.s32 64, 64
      %42 = vsyncadd [#allocation6], %s41
      %s44 = sshll.u32 [#allocation7], 4
      %s45 = int_to_ptr.vmem [resolvable:$true] %s44
      %47 = dma.hbm_to_vmem [thread:$0]  %s2, 64, %s45, [#allocation6]
    $region13: #{tpu_custom_call.1} parent=1 // pred_fallthru
      _
    // Predicated region
    $region14: #{tpu_custom_call.1} parent=1 // pred_check
      _
    $region15: #{tpu_custom_call.1} parent=1 // pred_check_branch
      %49 = sbr.rel (0) target = $region17
    $region16: #{tpu_custom_call.1} parent=1 // pred_region
      %s51 = ssub.s32 64, 64
      %52 = vsyncadd [#allocation9], %s51
      %s54 = sshll.u32 [#allocation8], 4
      %s55 = int_to_ptr.vmem [resolvable:$true] %s54
      %57 = dma.hbm_to_vmem [thread:$0]  %s3, 64, %s55, [#allocation9]
    $region17: #{tpu_custom_call.1} parent=1 // pred_fallthru
      _
    // Predicated region
    $region18: #{tpu_custom_call.1} parent=1 // pred_check
      _
    $region19: #{tpu_custom_call.1} parent=1 // pred_check_branch
      %59 = sbr.rel (0) target = $region21
    $region20: #{tpu_custom_call.1} parent=1 // pred_region
      %s61 = ssub.s32 4096, 4096
      %62 = vsyncadd [#allocation9], %s61
      %s63 = sshll.u32 [#allocation10], 4
      %s64 = int_to_ptr.vmem [resolvable:$true] %s63
      %69 = dma.hbm_to_vmem [thread:$0]  %s4, 4096, %s64, [#allocation9], 64, 64, 4
    $region21: #{tpu_custom_call.1} parent=1 // pred_fallthru
      _
    // Predicated region
    $region22: #{tpu_custom_call.1} parent=1 // pred_check
      _
    $region23: #{tpu_custom_call.1} parent=1 // pred_check_branch
      %71 = sbr.rel (0) target = $region25
    $region24: #{tpu_custom_call.1} parent=1 // pred_region
      %s73 = ssub.s32 16, 16
      %74 = vsyncadd [#allocation12], %s73
      %s76 = sshll.u32 [#allocation11], 4
      %s77 = int_to_ptr.vmem [resolvable:$true] %s76
      %79 = dma.hbm_to_vmem [thread:$0]  %s5, 16, %s77, [#allocation12]
    $region25: #{tpu_custom_call.1} parent=1 // pred_fallthru
      _
    // Predicated region
    $region26: #{tpu_custom_call.1} parent=1 // pred_check
      _
    $region27: #{tpu_custom_call.1} parent=1 // pred_check_branch
      %81 = sbr.rel (0) target = $region29
    $region28: #{tpu_custom_call.1} parent=1 // pred_region
      %82 = dma.done [#allocation3], 512
    $region29: #{tpu_custom_call.1} parent=1 // pred_fallthru
      _
    // Predicated region
    $region30: #{tpu_custom_call.1} parent=1 // pred_check
      _
    $region31: #{tpu_custom_call.1} parent=1 // pred_check_branch
      %84 = sbr.rel (0) target = $region33
    $region32: #{tpu_custom_call.1} parent=1 // pred_region
      %85 = dma.done [#allocation6], 65536
    $region33: #{tpu_custom_call.1} parent=1 // pred_fallthru
      _
    // Predicated region
    $region34: #{tpu_custom_call.1} parent=1 // pred_check
      _
    $region35: #{tpu_custom_call.1} parent=1 // pred_check_branch
      %87 = sbr.rel (0) target = $region37
    $region36: #{tpu_custom_call.1} parent=1 // pred_region
      %88 = dma.done [#allocation6], 64
    $region37: #{tpu_custom_call.1} parent=1 // pred_fallthru
      _
    // Predicated region
    $region38: #{tpu_custom_call.1} parent=1 // pred_check
      _
    $region39: #{tpu_custom_call.1} parent=1 // pred_check_branch
      %90 = sbr.rel (0) target = $region41
    $region40: #{tpu_custom_call.1} parent=1 // pred_region
      %91 = dma.done [#allocation9], 64
    $region41: #{tpu_custom_call.1} parent=1 // pred_fallthru
      _
    // Predicated region
    $region42: #{tpu_custom_call.1} parent=1 // pred_check
      _
    $region43: #{tpu_custom_call.1} parent=1 // pred_check_branch
      %93 = sbr.rel (0) target = $region45
    $region44: #{tpu_custom_call.1} parent=1 // pred_region
      %94 = dma.done [#allocation9], 4096
    $region45: #{tpu_custom_call.1} parent=1 // pred_fallthru
      _
    // Predicated region
    $region46: #{tpu_custom_call.1} parent=1 // pred_check
      _
    $region47: #{tpu_custom_call.1} parent=1 // pred_check_branch
      %96 = sbr.rel (0) target = $region49
    $region48: #{tpu_custom_call.1} parent=1 // pred_region
      %97 = dma.done [#allocation12], 16
    $region49: #{tpu_custom_call.1} parent=1 // pred_fallthru
      _
    %v99 = vld [vmem:[#allocation5] sm:$0xff]
    %v100 = vld [vmem:[#allocation5 + $0x8] sm:$0xff]
    %v101 = vld [vmem:[#allocation5 + $0x10] sm:$0xff]
    %v102 = vld [vmem:[#allocation5 + $0x18] sm:$0xff]
    %v103 = vld [vmem:[#allocation5 + $0x20] sm:$0xff]
    %v104 = vld [vmem:[#allocation5 + $0x28] sm:$0xff]
    %v105 = vld [vmem:[#allocation5 + $0x30] sm:$0xff]
    %v106 = vld [vmem:[#allocation5 + $0x38] sm:$0xff]
    %v107 = vld [vmem:[#allocation5 + $0x40] sm:$0xff]
    %v108 = vld [vmem:[#allocation5 + $0x48] sm:$0xff]
    %v109 = vld [vmem:[#allocation5 + $0x50] sm:$0xff]
    %v110 = vld [vmem:[#allocation5 + $0x58] sm:$0xff]
    %v111 = vld [vmem:[#allocation5 + $0x60] sm:$0xff]
    %v112 = vld [vmem:[#allocation5 + $0x68] sm:$0xff]
    %v113 = vld [vmem:[#allocation5 + $0x70] sm:$0xff]
    %v114 = vld [vmem:[#allocation5 + $0x78] sm:$0xff]
    %v115 = vld [vmem:[#allocation5 + $0x80] sm:$0xff]
    %v116 = vld [vmem:[#allocation5 + $0x88] sm:$0xff]
    %v117 = vld [vmem:[#allocation5 + $0x90] sm:$0xff]
    %v118 = vld [vmem:[#allocation5 + $0x98] sm:$0xff]
    %v119 = vld [vmem:[#allocation5 + $0xa0] sm:$0xff]
    %v120 = vld [vmem:[#allocation5 + $0xa8] sm:$0xff]
    %v121 = vld [vmem:[#allocation5 + $0xb0] sm:$0xff]
    %v122 = vld [vmem:[#allocation5 + $0xb8] sm:$0xff]
    %v123 = vld [vmem:[#allocation5 + $0xc0] sm:$0xff]
    %v124 = vld [vmem:[#allocation5 + $0xc8] sm:$0xff]
    %v125 = vld [vmem:[#allocation5 + $0xd0] sm:$0xff]
    %v126 = vld [vmem:[#allocation5 + $0xd8] sm:$0xff]
    %v127 = vld [vmem:[#allocation5 + $0xe0] sm:$0xff]
    %v128 = vld [vmem:[#allocation5 + $0xe8] sm:$0xff]
    %v129 = vld [vmem:[#allocation5 + $0xf0] sm:$0xff]
    %v130 = vld [vmem:[#allocation5 + $0xf8] sm:$0xff]
    %v131 = vld [vmem:[#allocation5 + $0x100] sm:$0xff]
    %v132 = vld [vmem:[#allocation5 + $0x108] sm:$0xff]
    %v133 = vld [vmem:[#allocation5 + $0x110] sm:$0xff]
    %v134 = vld [vmem:[#allocation5 + $0x118] sm:$0xff]
    %v135 = vld [vmem:[#allocation5 + $0x120] sm:$0xff]
    %v136 = vld [vmem:[#allocation5 + $0x128] sm:$0xff]
    %v137 = vld [vmem:[#allocation5 + $0x130] sm:$0xff]
    %v138 = vld [vmem:[#allocation5 + $0x138] sm:$0xff]
    %v139 = vld [vmem:[#allocation5 + $0x140] sm:$0xff]
    %v140 = vld [vmem:[#allocation5 + $0x148] sm:$0xff]
    %v141 = vld [vmem:[#allocation5 + $0x150] sm:$0xff]
    %v142 = vld [vmem:[#allocation5 + $0x158] sm:$0xff]
    %v143 = vld [vmem:[#allocation5 + $0x160] sm:$0xff]
    %v144 = vld [vmem:[#allocation5 + $0x168] sm:$0xff]
    %v145 = vld [vmem:[#allocation5 + $0x170] sm:$0xff]
    %v146 = vld [vmem:[#allocation5 + $0x178] sm:$0xff]
    %v147 = vld [vmem:[#allocation5 + $0x180] sm:$0xff]
    %v148 = vld [vmem:[#allocation5 + $0x188] sm:$0xff]
    %v149 = vld [vmem:[#allocation5 + $0x190] sm:$0xff]
    %v150 = vld [vmem:[#allocation5 + $0x198] sm:$0xff]
    %v151 = vld [vmem:[#allocation5 + $0x1a0] sm:$0xff]
    %v152 = vld [vmem:[#allocation5 + $0x1a8] sm:$0xff]
    %v153 = vld [vmem:[#allocation5 + $0x1b0] sm:$0xff]
    %v154 = vld [vmem:[#allocation5 + $0x1b8] sm:$0xff]
    %v155 = vld [vmem:[#allocation5 + $0x1c0] sm:$0xff]
    %v156 = vld [vmem:[#allocation5 + $0x1c8] sm:$0xff]
    %v157 = vld [vmem:[#allocation5 + $0x1d0] sm:$0xff]
    %v158 = vld [vmem:[#allocation5 + $0x1d8] sm:$0xff]
    %v159 = vld [vmem:[#allocation5 + $0x1e0] sm:$0xff]
    %v160 = vld [vmem:[#allocation5 + $0x1e8] sm:$0xff]
    %v161 = vld [vmem:[#allocation5 + $0x1f0] sm:$0xff]
    %v162 = vld [vmem:[#allocation5 + $0x1f8] sm:$0xff]
    %v163 = vld [vmem:[#allocation5 + $0x200] sm:$0xff]
    %v164 = vld [vmem:[#allocation5 + $0x208] sm:$0xff]
    %v165 = vld [vmem:[#allocation5 + $0x210] sm:$0xff]
    %v166 = vld [vmem:[#allocation5 + $0x218] sm:$0xff]
    %v167 = vld [vmem:[#allocation5 + $0x220] sm:$0xff]
    %v168 = vld [vmem:[#allocation5 + $0x228] sm:$0xff]
    %v169 = vld [vmem:[#allocation5 + $0x230] sm:$0xff]
    %v170 = vld [vmem:[#allocation5 + $0x238] sm:$0xff]
    %v171 = vld [vmem:[#allocation5 + $0x240] sm:$0xff]
    %v172 = vld [vmem:[#allocation5 + $0x248] sm:$0xff]
    %v173 = vld [vmem:[#allocation5 + $0x250] sm:$0xff]
    %v174 = vld [vmem:[#allocation5 + $0x258] sm:$0xff]
    %v175 = vld [vmem:[#allocation5 + $0x260] sm:$0xff]
    %v176 = vld [vmem:[#allocation5 + $0x268] sm:$0xff]
    %v177 = vld [vmem:[#allocation5 + $0x270] sm:$0xff]
    %v178 = vld [vmem:[#allocation5 + $0x278] sm:$0xff]
    %v179 = vld [vmem:[#allocation5 + $0x280] sm:$0xff]
    %v180 = vld [vmem:[#allocation5 + $0x288] sm:$0xff]
    %v181 = vld [vmem:[#allocation5 + $0x290] sm:$0xff]
    %v182 = vld [vmem:[#allocation5 + $0x298] sm:$0xff]
    %v183 = vld [vmem:[#allocation5 + $0x2a0] sm:$0xff]
    %v184 = vld [vmem:[#allocation5 + $0x2a8] sm:$0xff]
    %v185 = vld [vmem:[#allocation5 + $0x2b0] sm:$0xff]
    %v186 = vld [vmem:[#allocation5 + $0x2b8] sm:$0xff]
    %v187 = vld [vmem:[#allocation5 + $0x2c0] sm:$0xff]
    %v188 = vld [vmem:[#allocation5 + $0x2c8] sm:$0xff]
    %v189 = vld [vmem:[#allocation5 + $0x2d0] sm:$0xff]
    %v190 = vld [vmem:[#allocation5 + $0x2d8] sm:$0xff]
    %v191 = vld [vmem:[#allocation5 + $0x2e0] sm:$0xff]
    %v192 = vld [vmem:[#allocation5 + $0x2e8] sm:$0xff]
    %v193 = vld [vmem:[#allocation5 + $0x2f0] sm:$0xff]
    %v194 = vld [vmem:[#allocation5 + $0x2f8] sm:$0xff]
    %v195 = vld [vmem:[#allocation5 + $0x300] sm:$0xff]
    %v196 = vld [vmem:[#allocation5 + $0x308] sm:$0xff]
    %v197 = vld [vmem:[#allocation5 + $0x310] sm:$0xff]
    %v198 = vld [vmem:[#allocation5 + $0x318] sm:$0xff]
    %v199 = vld [vmem:[#allocation5 + $0x320] sm:$0xff]
    %v200 = vld [vmem:[#allocation5 + $0x328] sm:$0xff]
    %v201 = vld [vmem:[#allocation5 + $0x330] sm:$0xff]
    %v202 = vld [vmem:[#allocation5 + $0x338] sm:$0xff]
    %v203 = vld [vmem:[#allocation5 + $0x340] sm:$0xff]
    %v204 = vld [vmem:[#allocation5 + $0x348] sm:$0xff]
    %v205 = vld [vmem:[#allocation5 + $0x350] sm:$0xff]
    %v206 = vld [vmem:[#allocation5 + $0x358] sm:$0xff]
    %v207 = vld [vmem:[#allocation5 + $0x360] sm:$0xff]
    %v208 = vld [vmem:[#allocation5 + $0x368] sm:$0xff]
    %v209 = vld [vmem:[#allocation5 + $0x370] sm:$0xff]
    %v210 = vld [vmem:[#allocation5 + $0x378] sm:$0xff]
    %v211 = vld [vmem:[#allocation5 + $0x380] sm:$0xff]
    %v212 = vld [vmem:[#allocation5 + $0x388] sm:$0xff]
    %v213 = vld [vmem:[#allocation5 + $0x390] sm:$0xff]
    %v214 = vld [vmem:[#allocation5 + $0x398] sm:$0xff]
    %v215 = vld [vmem:[#allocation5 + $0x3a0] sm:$0xff]
    %v216 = vld [vmem:[#allocation5 + $0x3a8] sm:$0xff]
    %v217 = vld [vmem:[#allocation5 + $0x3b0] sm:$0xff]
    %v218 = vld [vmem:[#allocation5 + $0x3b8] sm:$0xff]
    %v219 = vld [vmem:[#allocation5 + $0x3c0] sm:$0xff]
    %v220 = vld [vmem:[#allocation5 + $0x3c8] sm:$0xff]
    %v221 = vld [vmem:[#allocation5 + $0x3d0] sm:$0xff]
    %v222 = vld [vmem:[#allocation5 + $0x3d8] sm:$0xff]
    %v223 = vld [vmem:[#allocation5 + $0x3e0] sm:$0xff]
    %v224 = vld [vmem:[#allocation5 + $0x3e8] sm:$0xff]
    %v225 = vld [vmem:[#allocation5 + $0x3f0] sm:$0xff]
    %v226 = vld [vmem:[#allocation5 + $0x3f8] sm:$0xff]
    %v227 = vld [vmem:[#allocation5 + $0x400] sm:$0xff]
    %v228 = vld [vmem:[#allocation5 + $0x408] sm:$0xff]
    %v229 = vld [vmem:[#allocation5 + $0x410] sm:$0xff]
    %v230 = vld [vmem:[#allocation5 + $0x418] sm:$0xff]
    %v231 = vld [vmem:[#allocation5 + $0x420] sm:$0xff]
    %v232 = vld [vmem:[#allocation5 + $0x428] sm:$0xff]
    %v233 = vld [vmem:[#allocation5 + $0x430] sm:$0xff]
    %v234 = vld [vmem:[#allocation5 + $0x438] sm:$0xff]
    %v235 = vld [vmem:[#allocation5 + $0x440] sm:$0xff]
    %v236 = vld [vmem:[#allocation5 + $0x448] sm:$0xff]
    %v237 = vld [vmem:[#allocation5 + $0x450] sm:$0xff]
    %v238 = vld [vmem:[#allocation5 + $0x458] sm:$0xff]
    %v239 = vld [vmem:[#allocation5 + $0x460] sm:$0xff]
    %v240 = vld [vmem:[#allocation5 + $0x468] sm:$0xff]
    %v241 = vld [vmem:[#allocation5 + $0x470] sm:$0xff]
    %v242 = vld [vmem:[#allocation5 + $0x478] sm:$0xff]
    %v243 = vld [vmem:[#allocation5 + $0x480] sm:$0xff]
    %v244 = vld [vmem:[#allocation5 + $0x488] sm:$0xff]
    %v245 = vld [vmem:[#allocation5 + $0x490] sm:$0xff]
    %v246 = vld [vmem:[#allocation5 + $0x498] sm:$0xff]
    %v247 = vld [vmem:[#allocation5 + $0x4a0] sm:$0xff]
    %v248 = vld [vmem:[#allocation5 + $0x4a8] sm:$0xff]
    %v249 = vld [vmem:[#allocation5 + $0x4b0] sm:$0xff]
    %v250 = vld [vmem:[#allocation5 + $0x4b8] sm:$0xff]
    %v251 = vld [vmem:[#allocation5 + $0x4c0] sm:$0xff]
    %v252 = vld [vmem:[#allocation5 + $0x4c8] sm:$0xff]
    %v253 = vld [vmem:[#allocation5 + $0x4d0] sm:$0xff]
    %v254 = vld [vmem:[#allocation5 + $0x4d8] sm:$0xff]
    %v255 = vld [vmem:[#allocation5 + $0x4e0] sm:$0xff]
    %v256 = vld [vmem:[#allocation5 + $0x4e8] sm:$0xff]
    %v257 = vld [vmem:[#allocation5 + $0x4f0] sm:$0xff]
    %v258 = vld [vmem:[#allocation5 + $0x4f8] sm:$0xff]
    %v259 = vld [vmem:[#allocation5 + $0x500] sm:$0xff]
    %v260 = vld [vmem:[#allocation5 + $0x508] sm:$0xff]
    %v261 = vld [vmem:[#allocation5 + $0x510] sm:$0xff]
    %v262 = vld [vmem:[#allocation5 + $0x518] sm:$0xff]
    %v263 = vld [vmem:[#allocation5 + $0x520] sm:$0xff]
    %v264 = vld [vmem:[#allocation5 + $0x528] sm:$0xff]
    %v265 = vld [vmem:[#allocation5 + $0x530] sm:$0xff]
    %v266 = vld [vmem:[#allocation5 + $0x538] sm:$0xff]
    %v267 = vld [vmem:[#allocation5 + $0x540] sm:$0xff]
    %v268 = vld [vmem:[#allocation5 + $0x548] sm:$0xff]
    %v269 = vld [vmem:[#allocation5 + $0x550] sm:$0xff]
    %v270 = vld [vmem:[#allocation5 + $0x558] sm:$0xff]
    %v271 = vld [vmem:[#allocation5 + $0x560] sm:$0xff]
    %v272 = vld [vmem:[#allocation5 + $0x568] sm:$0xff]
    %v273 = vld [vmem:[#allocation5 + $0x570] sm:$0xff]
    %v274 = vld [vmem:[#allocation5 + $0x578] sm:$0xff]
    %v275 = vld [vmem:[#allocation5 + $0x580] sm:$0xff]
    %v276 = vld [vmem:[#allocation5 + $0x588] sm:$0xff]
    %v277 = vld [vmem:[#allocation5 + $0x590] sm:$0xff]
    %v278 = vld [vmem:[#allocation5 + $0x598] sm:$0xff]
    %v279 = vld [vmem:[#allocation5 + $0x5a0] sm:$0xff]
    %v280 = vld [vmem:[#allocation5 + $0x5a8] sm:$0xff]
    %v281 = vld [vmem:[#allocation5 + $0x5b0] sm:$0xff]
    %v282 = vld [vmem:[#allocation5 + $0x5b8] sm:$0xff]
    %v283 = vld [vmem:[#allocation5 + $0x5c0] sm:$0xff]
    %v284 = vld [vmem:[#allocation5 + $0x5c8] sm:$0xff]
    %v285 = vld [vmem:[#allocation5 + $0x5d0] sm:$0xff]
    %v286 = vld [vmem:[#allocation5 + $0x5d8] sm:$0xff]
    %v287 = vld [vmem:[#allocation5 + $0x5e0] sm:$0xff]
    %v288 = vld [vmem:[#allocation5 + $0x5e8] sm:$0xff]
    %v289 = vld [vmem:[#allocation5 + $0x5f0] sm:$0xff]
    %v290 = vld [vmem:[#allocation5 + $0x5f8] sm:$0xff]
    %v291 = vld [vmem:[#allocation5 + $0x600] sm:$0xff]
    %v292 = vld [vmem:[#allocation5 + $0x608] sm:$0xff]
    %v293 = vld [vmem:[#allocation5 + $0x610] sm:$0xff]
    %v294 = vld [vmem:[#allocation5 + $0x618] sm:$0xff]
    %v295 = vld [vmem:[#allocation5 + $0x620] sm:$0xff]
    %v296 = vld [vmem:[#allocation5 + $0x628] sm:$0xff]
    %v297 = vld [vmem:[#allocation5 + $0x630] sm:$0xff]
    %v298 = vld [vmem:[#allocation5 + $0x638] sm:$0xff]
    %v299 = vld [vmem:[#allocation5 + $0x640] sm:$0xff]
    %v300 = vld [vmem:[#allocation5 + $0x648] sm:$0xff]
    %v301 = vld [vmem:[#allocation5 + $0x650] sm:$0xff]
    %v302 = vld [vmem:[#allocation5 + $0x658] sm:$0xff]
    %v303 = vld [vmem:[#allocation5 + $0x660] sm:$0xff]
    %v304 = vld [vmem:[#allocation5 + $0x668] sm:$0xff]
    %v305 = vld [vmem:[#allocation5 + $0x670] sm:$0xff]
    %v306 = vld [vmem:[#allocation5 + $0x678] sm:$0xff]
    %v307 = vld [vmem:[#allocation5 + $0x680] sm:$0xff]
    %v308 = vld [vmem:[#allocation5 + $0x688] sm:$0xff]
    %v309 = vld [vmem:[#allocation5 + $0x690] sm:$0xff]
    %v310 = vld [vmem:[#allocation5 + $0x698] sm:$0xff]
    %v311 = vld [vmem:[#allocation5 + $0x6a0] sm:$0xff]
    %v312 = vld [vmem:[#allocation5 + $0x6a8] sm:$0xff]
    %v313 = vld [vmem:[#allocation5 + $0x6b0] sm:$0xff]
    %v314 = vld [vmem:[#allocation5 + $0x6b8] sm:$0xff]
    %v315 = vld [vmem:[#allocation5 + $0x6c0] sm:$0xff]
    %v316 = vld [vmem:[#allocation5 + $0x6c8] sm:$0xff]
    %v317 = vld [vmem:[#allocation5 + $0x6d0] sm:$0xff]
    %v318 = vld [vmem:[#allocation5 + $0x6d8] sm:$0xff]
    %v319 = vld [vmem:[#allocation5 + $0x6e0] sm:$0xff]
    %v320 = vld [vmem:[#allocation5 + $0x6e8] sm:$0xff]
    %v321 = vld [vmem:[#allocation5 + $0x6f0] sm:$0xff]
    %v322 = vld [vmem:[#allocation5 + $0x6f8] sm:$0xff]
    %v323 = vld [vmem:[#allocation5 + $0x700] sm:$0xff]
    %v324 = vld [vmem:[#allocation5 + $0x708] sm:$0xff]
    %v325 = vld [vmem:[#allocation5 + $0x710] sm:$0xff]
    %v326 = vld [vmem:[#allocation5 + $0x718] sm:$0xff]
    %v327 = vld [vmem:[#allocation5 + $0x720] sm:$0xff]
    %v328 = vld [vmem:[#allocation5 + $0x728] sm:$0xff]
    %v329 = vld [vmem:[#allocation5 + $0x730] sm:$0xff]
    %v330 = vld [vmem:[#allocation5 + $0x738] sm:$0xff]
    %v331 = vld [vmem:[#allocation5 + $0x740] sm:$0xff]
    %v332 = vld [vmem:[#allocation5 + $0x748] sm:$0xff]
    %v333 = vld [vmem:[#allocation5 + $0x750] sm:$0xff]
    %v334 = vld [vmem:[#allocation5 + $0x758] sm:$0xff]
    %v335 = vld [vmem:[#allocation5 + $0x760] sm:$0xff]
    %v336 = vld [vmem:[#allocation5 + $0x768] sm:$0xff]
    %v337 = vld [vmem:[#allocation5 + $0x770] sm:$0xff]
    %v338 = vld [vmem:[#allocation5 + $0x778] sm:$0xff]
    %v339 = vld [vmem:[#allocation5 + $0x780] sm:$0xff]
    %v340 = vld [vmem:[#allocation5 + $0x788] sm:$0xff]
    %v341 = vld [vmem:[#allocation5 + $0x790] sm:$0xff]
    %v342 = vld [vmem:[#allocation5 + $0x798] sm:$0xff]
    %v343 = vld [vmem:[#allocation5 + $0x7a0] sm:$0xff]
    %v344 = vld [vmem:[#allocation5 + $0x7a8] sm:$0xff]
    %v345 = vld [vmem:[#allocation5 + $0x7b0] sm:$0xff]
    %v346 = vld [vmem:[#allocation5 + $0x7b8] sm:$0xff]
    %v347 = vld [vmem:[#allocation5 + $0x7c0] sm:$0xff]
    %v348 = vld [vmem:[#allocation5 + $0x7c8] sm:$0xff]
    %v349 = vld [vmem:[#allocation5 + $0x7d0] sm:$0xff]
    %v350 = vld [vmem:[#allocation5 + $0x7d8] sm:$0xff]
    %v351 = vld [vmem:[#allocation5 + $0x7e0] sm:$0xff]
    %v352 = vld [vmem:[#allocation5 + $0x7e8] sm:$0xff]
    %v353 = vld [vmem:[#allocation5 + $0x7f0] sm:$0xff]
    %v354 = vld [vmem:[#allocation5 + $0x7f8] sm:$0xff]
    %v355 = vld [vmem:[#allocation5 + $0x800] sm:$0xff]
    %v356 = vld [vmem:[#allocation5 + $0x808] sm:$0xff]
    %v357 = vld [vmem:[#allocation5 + $0x810] sm:$0xff]
    %v358 = vld [vmem:[#allocation5 + $0x818] sm:$0xff]
    %v359 = vld [vmem:[#allocation5 + $0x820] sm:$0xff]
    %v360 = vld [vmem:[#allocation5 + $0x828] sm:$0xff]
    %v361 = vld [vmem:[#allocation5 + $0x830] sm:$0xff]
    %v362 = vld [vmem:[#allocation5 + $0x838] sm:$0xff]
    %v363 = vld [vmem:[#allocation5 + $0x840] sm:$0xff]
    %v364 = vld [vmem:[#allocation5 + $0x848] sm:$0xff]
    %v365 = vld [vmem:[#allocation5 + $0x850] sm:$0xff]
    %v366 = vld [vmem:[#allocation5 + $0x858] sm:$0xff]
    %v367 = vld [vmem:[#allocation5 + $0x860] sm:$0xff]
    %v368 = vld [vmem:[#allocation5 + $0x868] sm:$0xff]
    %v369 = vld [vmem:[#allocation5 + $0x870] sm:$0xff]
    %v370 = vld [vmem:[#allocation5 + $0x878] sm:$0xff]
    %v371 = vld [vmem:[#allocation5 + $0x880] sm:$0xff]
    %v372 = vld [vmem:[#allocation5 + $0x888] sm:$0xff]
    %v373 = vld [vmem:[#allocation5 + $0x890] sm:$0xff]
    %v374 = vld [vmem:[#allocation5 + $0x898] sm:$0xff]
    %v375 = vld [vmem:[#allocation5 + $0x8a0] sm:$0xff]
    %v376 = vld [vmem:[#allocation5 + $0x8a8] sm:$0xff]
    %v377 = vld [vmem:[#allocation5 + $0x8b0] sm:$0xff]
    %v378 = vld [vmem:[#allocation5 + $0x8b8] sm:$0xff]
    %v379 = vld [vmem:[#allocation5 + $0x8c0] sm:$0xff]
    %v380 = vld [vmem:[#allocation5 + $0x8c8] sm:$0xff]
    %v381 = vld [vmem:[#allocation5 + $0x8d0] sm:$0xff]
    %v382 = vld [vmem:[#allocation5 + $0x8d8] sm:$0xff]
    %v383 = vld [vmem:[#allocation5 + $0x8e0] sm:$0xff]
    %v384 = vld [vmem:[#allocation5 + $0x8e8] sm:$0xff]
    %v385 = vld [vmem:[#allocation5 + $0x8f0] sm:$0xff]
    %v386 = vld [vmem:[#allocation5 + $0x8f8] sm:$0xff]
    %v387 = vld [vmem:[#allocation5 + $0x900] sm:$0xff]
    %v388 = vld [vmem:[#allocation5 + $0x908] sm:$0xff]
    %v389 = vld [vmem:[#allocation5 + $0x910] sm:$0xff]
    %v390 = vld [vmem:[#allocation5 + $0x918] sm:$0xff]
    %v391 = vld [vmem:[#allocation5 + $0x920] sm:$0xff]
    %v392 = vld [vmem:[#allocation5 + $0x928] sm:$0xff]
    %v393 = vld [vmem:[#allocation5 + $0x930] sm:$0xff]
    %v394 = vld [vmem:[#allocation5 + $0x938] sm:$0xff]
    %v395 = vld [vmem:[#allocation5 + $0x940] sm:$0xff]
    %v396 = vld [vmem:[#allocation5 + $0x948] sm:$0xff]
    %v397 = vld [vmem:[#allocation5 + $0x950] sm:$0xff]
    %v398 = vld [vmem:[#allocation5 + $0x958] sm:$0xff]
    %v399 = vld [vmem:[#allocation5 + $0x960] sm:$0xff]
    %v400 = vld [vmem:[#allocation5 + $0x968] sm:$0xff]
    %v401 = vld [vmem:[#allocation5 + $0x970] sm:$0xff]
    %v402 = vld [vmem:[#allocation5 + $0x978] sm:$0xff]
    %v403 = vld [vmem:[#allocation5 + $0x980] sm:$0xff]
    %v404 = vld [vmem:[#allocation5 + $0x988] sm:$0xff]
    %v405 = vld [vmem:[#allocation5 + $0x990] sm:$0xff]
    %v406 = vld [vmem:[#allocation5 + $0x998] sm:$0xff]
    %v407 = vld [vmem:[#allocation5 + $0x9a0] sm:$0xff]
    %v408 = vld [vmem:[#allocation5 + $0x9a8] sm:$0xff]
    %v409 = vld [vmem:[#allocation5 + $0x9b0] sm:$0xff]
    %v410 = vld [vmem:[#allocation5 + $0x9b8] sm:$0xff]
    %v411 = vld [vmem:[#allocation5 + $0x9c0] sm:$0xff]
    %v412 = vld [vmem:[#allocation5 + $0x9c8] sm:$0xff]
    %v413 = vld [vmem:[#allocation5 + $0x9d0] sm:$0xff]
    %v414 = vld [vmem:[#allocation5 + $0x9d8] sm:$0xff]
    %v415 = vld [vmem:[#allocation5 + $0x9e0] sm:$0xff]
    %v416 = vld [vmem:[#allocation5 + $0x9e8] sm:$0xff]
    %v417 = vld [vmem:[#allocation5 + $0x9f0] sm:$0xff]
    %v418 = vld [vmem:[#allocation5 + $0x9f8] sm:$0xff]
    %v419 = vld [vmem:[#allocation5 + $0xa00] sm:$0xff]
    %v420 = vld [vmem:[#allocation5 + $0xa08] sm:$0xff]
    %v421 = vld [vmem:[#allocation5 + $0xa10] sm:$0xff]
    %v422 = vld [vmem:[#allocation5 + $0xa18] sm:$0xff]
    %v423 = vld [vmem:[#allocation5 + $0xa20] sm:$0xff]
    %v424 = vld [vmem:[#allocation5 + $0xa28] sm:$0xff]
    %v425 = vld [vmem:[#allocation5 + $0xa30] sm:$0xff]
    %v426 = vld [vmem:[#allocation5 + $0xa38] sm:$0xff]
    %v427 = vld [vmem:[#allocation5 + $0xa40] sm:$0xff]
    %v428 = vld [vmem:[#allocation5 + $0xa48] sm:$0xff]
    %v429 = vld [vmem:[#allocation5 + $0xa50] sm:$0xff]
    %v430 = vld [vmem:[#allocation5 + $0xa58] sm:$0xff]
    %v431 = vld [vmem:[#allocation5 + $0xa60] sm:$0xff]
    %v432 = vld [vmem:[#allocation5 + $0xa68] sm:$0xff]
    %v433 = vld [vmem:[#allocation5 + $0xa70] sm:$0xff]
    %v434 = vld [vmem:[#allocation5 + $0xa78] sm:$0xff]
    %v435 = vld [vmem:[#allocation5 + $0xa80] sm:$0xff]
    %v436 = vld [vmem:[#allocation5 + $0xa88] sm:$0xff]
    %v437 = vld [vmem:[#allocation5 + $0xa90] sm:$0xff]
    %v438 = vld [vmem:[#allocation5 + $0xa98] sm:$0xff]
    %v439 = vld [vmem:[#allocation5 + $0xaa0] sm:$0xff]
    %v440 = vld [vmem:[#allocation5 + $0xaa8] sm:$0xff]
    %v441 = vld [vmem:[#allocation5 + $0xab0] sm:$0xff]
    %v442 = vld [vmem:[#allocation5 + $0xab8] sm:$0xff]
    %v443 = vld [vmem:[#allocation5 + $0xac0] sm:$0xff]
    %v444 = vld [vmem:[#allocation5 + $0xac8] sm:$0xff]
    %v445 = vld [vmem:[#allocation5 + $0xad0] sm:$0xff]
    %v446 = vld [vmem:[#allocation5 + $0xad8] sm:$0xff]
    %v447 = vld [vmem:[#allocation5 + $0xae0] sm:$0xff]
    %v448 = vld [vmem:[#allocation5 + $0xae8] sm:$0xff]
    %v449 = vld [vmem:[#allocation5 + $0xaf0] sm:$0xff]
    %v450 = vld [vmem:[#allocation5 + $0xaf8] sm:$0xff]
    %v451 = vld [vmem:[#allocation5 + $0xb00] sm:$0xff]
    %v452 = vld [vmem:[#allocation5 + $0xb08] sm:$0xff]
    %v453 = vld [vmem:[#allocation5 + $0xb10] sm:$0xff]
    %v454 = vld [vmem:[#allocation5 + $0xb18] sm:$0xff]
    %v455 = vld [vmem:[#allocation5 + $0xb20] sm:$0xff]
    %v456 = vld [vmem:[#allocation5 + $0xb28] sm:$0xff]
    %v457 = vld [vmem:[#allocation5 + $0xb30] sm:$0xff]
    %v458 = vld [vmem:[#allocation5 + $0xb38] sm:$0xff]
    %v459 = vld [vmem:[#allocation5 + $0xb40] sm:$0xff]
    %v460 = vld [vmem:[#allocation5 + $0xb48] sm:$0xff]
    %v461 = vld [vmem:[#allocation5 + $0xb50] sm:$0xff]
    %v462 = vld [vmem:[#allocation5 + $0xb58] sm:$0xff]
    %v463 = vld [vmem:[#allocation5 + $0xb60] sm:$0xff]
    %v464 = vld [vmem:[#allocation5 + $0xb68] sm:$0xff]
    %v465 = vld [vmem:[#allocation5 + $0xb70] sm:$0xff]
    %v466 = vld [vmem:[#allocation5 + $0xb78] sm:$0xff]
    %v467 = vld [vmem:[#allocation5 + $0xb80] sm:$0xff]
    %v468 = vld [vmem:[#allocation5 + $0xb88] sm:$0xff]
    %v469 = vld [vmem:[#allocation5 + $0xb90] sm:$0xff]
    %v470 = vld [vmem:[#allocation5 + $0xb98] sm:$0xff]
    %v471 = vld [vmem:[#allocation5 + $0xba0] sm:$0xff]
    %v472 = vld [vmem:[#allocation5 + $0xba8] sm:$0xff]
    %v473 = vld [vmem:[#allocation5 + $0xbb0] sm:$0xff]
    %v474 = vld [vmem:[#allocation5 + $0xbb8] sm:$0xff]
    %v475 = vld [vmem:[#allocation5 + $0xbc0] sm:$0xff]
    %v476 = vld [vmem:[#allocation5 + $0xbc8] sm:$0xff]
    %v477 = vld [vmem:[#allocation5 + $0xbd0] sm:$0xff]
    %v478 = vld [vmem:[#allocation5 + $0xbd8] sm:$0xff]
    %v479 = vld [vmem:[#allocation5 + $0xbe0] sm:$0xff]
    %v480 = vld [vmem:[#allocation5 + $0xbe8] sm:$0xff]
    %v481 = vld [vmem:[#allocation5 + $0xbf0] sm:$0xff]
    %v482 = vld [vmem:[#allocation5 + $0xbf8] sm:$0xff]
    %v483 = vld [vmem:[#allocation5 + $0xc00] sm:$0xff]
    %v484 = vld [vmem:[#allocation5 + $0xc08] sm:$0xff]
    %v485 = vld [vmem:[#allocation5 + $0xc10] sm:$0xff]
    %v486 = vld [vmem:[#allocation5 + $0xc18] sm:$0xff]
    %v487 = vld [vmem:[#allocation5 + $0xc20] sm:$0xff]
    %v488 = vld [vmem:[#allocation5 + $0xc28] sm:$0xff]
    %v489 = vld [vmem:[#allocation5 + $0xc30] sm:$0xff]
    %v490 = vld [vmem:[#allocation5 + $0xc38] sm:$0xff]
    %v491 = vld [vmem:[#allocation5 + $0xc40] sm:$0xff]
    %v492 = vld [vmem:[#allocation5 + $0xc48] sm:$0xff]
    %v493 = vld [vmem:[#allocation5 + $0xc50] sm:$0xff]
    %v494 = vld [vmem:[#allocation5 + $0xc58] sm:$0xff]
    %v495 = vld [vmem:[#allocation5 + $0xc60] sm:$0xff]
    %v496 = vld [vmem:[#allocation5 + $0xc68] sm:$0xff]
    %v497 = vld [vmem:[#allocation5 + $0xc70] sm:$0xff]
    %v498 = vld [vmem:[#allocation5 + $0xc78] sm:$0xff]
    %v499 = vld [vmem:[#allocation5 + $0xc80] sm:$0xff]
    %v500 = vld [vmem:[#allocation5 + $0xc88] sm:$0xff]
    %v501 = vld [vmem:[#allocation5 + $0xc90] sm:$0xff]
    %v502 = vld [vmem:[#allocation5 + $0xc98] sm:$0xff]
    %v503 = vld [vmem:[#allocation5 + $0xca0] sm:$0xff]
    %v504 = vld [vmem:[#allocation5 + $0xca8] sm:$0xff]
    %v505 = vld [vmem:[#allocation5 + $0xcb0] sm:$0xff]
    %v506 = vld [vmem:[#allocation5 + $0xcb8] sm:$0xff]
    %v507 = vld [vmem:[#allocation5 + $0xcc0] sm:$0xff]
    %v508 = vld [vmem:[#allocation5 + $0xcc8] sm:$0xff]
    %v509 = vld [vmem:[#allocation5 + $0xcd0] sm:$0xff]
    %v510 = vld [vmem:[#allocation5 + $0xcd8] sm:$0xff]
    %v511 = vld [vmem:[#allocation5 + $0xce0] sm:$0xff]
    %v512 = vld [vmem:[#allocation5 + $0xce8] sm:$0xff]
    %v513 = vld [vmem:[#allocation5 + $0xcf0] sm:$0xff]
    %v514 = vld [vmem:[#allocation5 + $0xcf8] sm:$0xff]
    %v515 = vld [vmem:[#allocation5 + $0xd00] sm:$0xff]
    %v516 = vld [vmem:[#allocation5 + $0xd08] sm:$0xff]
    %v517 = vld [vmem:[#allocation5 + $0xd10] sm:$0xff]
    %v518 = vld [vmem:[#allocation5 + $0xd18] sm:$0xff]
    %v519 = vld [vmem:[#allocation5 + $0xd20] sm:$0xff]
    %v520 = vld [vmem:[#allocation5 + $0xd28] sm:$0xff]
    %v521 = vld [vmem:[#allocation5 + $0xd30] sm:$0xff]
    %v522 = vld [vmem:[#allocation5 + $0xd38] sm:$0xff]
    %v523 = vld [vmem:[#allocation5 + $0xd40] sm:$0xff]
    %v524 = vld [vmem:[#allocation5 + $0xd48] sm:$0xff]
    %v525 = vld [vmem:[#allocation5 + $0xd50] sm:$0xff]
    %v526 = vld [vmem:[#allocation5 + $0xd58] sm:$0xff]
    %v527 = vld [vmem:[#allocation5 + $0xd60] sm:$0xff]
    %v528 = vld [vmem:[#allocation5 + $0xd68] sm:$0xff]
    %v529 = vld [vmem:[#allocation5 + $0xd70] sm:$0xff]
    %v530 = vld [vmem:[#allocation5 + $0xd78] sm:$0xff]
    %v531 = vld [vmem:[#allocation5 + $0xd80] sm:$0xff]
    %v532 = vld [vmem:[#allocation5 + $0xd88] sm:$0xff]
    %v533 = vld [vmem:[#allocation5 + $0xd90] sm:$0xff]
    %v534 = vld [vmem:[#allocation5 + $0xd98] sm:$0xff]
    %v535 = vld [vmem:[#allocation5 + $0xda0] sm:$0xff]
    %v536 = vld [vmem:[#allocation5 + $0xda8] sm:$0xff]
    %v537 = vld [vmem:[#allocation5 + $0xdb0] sm:$0xff]
    %v538 = vld [vmem:[#allocation5 + $0xdb8] sm:$0xff]
    %v539 = vld [vmem:[#allocation5 + $0xdc0] sm:$0xff]
    %v540 = vld [vmem:[#allocation5 + $0xdc8] sm:$0xff]
    %v541 = vld [vmem:[#allocation5 + $0xdd0] sm:$0xff]
    %v542 = vld [vmem:[#allocation5 + $0xdd8] sm:$0xff]
    %v543 = vld [vmem:[#allocation5 + $0xde0] sm:$0xff]
    %v544 = vld [vmem:[#allocation5 + $0xde8] sm:$0xff]
    %v545 = vld [vmem:[#allocation5 + $0xdf0] sm:$0xff]
    %v546 = vld [vmem:[#allocation5 + $0xdf8] sm:$0xff]
    %v547 = vld [vmem:[#allocation5 + $0xe00] sm:$0xff]
    %v548 = vld [vmem:[#allocation5 + $0xe08] sm:$0xff]
    %v549 = vld [vmem:[#allocation5 + $0xe10] sm:$0xff]
    %v550 = vld [vmem:[#allocation5 + $0xe18] sm:$0xff]
    %v551 = vld [vmem:[#allocation5 + $0xe20] sm:$0xff]
    %v552 = vld [vmem:[#allocation5 + $0xe28] sm:$0xff]
    %v553 = vld [vmem:[#allocation5 + $0xe30] sm:$0xff]
    %v554 = vld [vmem:[#allocation5 + $0xe38] sm:$0xff]
    %v555 = vld [vmem:[#allocation5 + $0xe40] sm:$0xff]
    %v556 = vld [vmem:[#allocation5 + $0xe48] sm:$0xff]
    %v557 = vld [vmem:[#allocation5 + $0xe50] sm:$0xff]
    %v558 = vld [vmem:[#allocation5 + $0xe58] sm:$0xff]
    %v559 = vld [vmem:[#allocation5 + $0xe60] sm:$0xff]
    %v560 = vld [vmem:[#allocation5 + $0xe68] sm:$0xff]
    %v561 = vld [vmem:[#allocation5 + $0xe70] sm:$0xff]
    %v562 = vld [vmem:[#allocation5 + $0xe78] sm:$0xff]
    %v563 = vld [vmem:[#allocation5 + $0xe80] sm:$0xff]
    %v564 = vld [vmem:[#allocation5 + $0xe88] sm:$0xff]
    %v565 = vld [vmem:[#allocation5 + $0xe90] sm:$0xff]
    %v566 = vld [vmem:[#allocation5 + $0xe98] sm:$0xff]
    %v567 = vld [vmem:[#allocation5 + $0xea0] sm:$0xff]
    %v568 = vld [vmem:[#allocation5 + $0xea8] sm:$0xff]
    %v569 = vld [vmem:[#allocation5 + $0xeb0] sm:$0xff]
    %v570 = vld [vmem:[#allocation5 + $0xeb8] sm:$0xff]
    %v571 = vld [vmem:[#allocation5 + $0xec0] sm:$0xff]
    %v572 = vld [vmem:[#allocation5 + $0xec8] sm:$0xff]
    %v573 = vld [vmem:[#allocation5 + $0xed0] sm:$0xff]
    %v574 = vld [vmem:[#allocation5 + $0xed8] sm:$0xff]
    %v575 = vld [vmem:[#allocation5 + $0xee0] sm:$0xff]
    %v576 = vld [vmem:[#allocation5 + $0xee8] sm:$0xff]
    %v577 = vld [vmem:[#allocation5 + $0xef0] sm:$0xff]
    %v578 = vld [vmem:[#allocation5 + $0xef8] sm:$0xff]
    %v579 = vld [vmem:[#allocation5 + $0xf00] sm:$0xff]
    %v580 = vld [vmem:[#allocation5 + $0xf08] sm:$0xff]
    %v581 = vld [vmem:[#allocation5 + $0xf10] sm:$0xff]
    %v582 = vld [vmem:[#allocation5 + $0xf18] sm:$0xff]
    %v583 = vld [vmem:[#allocation5 + $0xf20] sm:$0xff]
    %v584 = vld [vmem:[#allocation5 + $0xf28] sm:$0xff]
    %v585 = vld [vmem:[#allocation5 + $0xf30] sm:$0xff]
    %v586 = vld [vmem:[#allocation5 + $0xf38] sm:$0xff]
    %v587 = vld [vmem:[#allocation5 + $0xf40] sm:$0xff]
    %v588 = vld [vmem:[#allocation5 + $0xf48] sm:$0xff]
    %v589 = vld [vmem:[#allocation5 + $0xf50] sm:$0xff]
    %v590 = vld [vmem:[#allocation5 + $0xf58] sm:$0xff]
    %v591 = vld [vmem:[#allocation5 + $0xf60] sm:$0xff]
    %v592 = vld [vmem:[#allocation5 + $0xf68] sm:$0xff]
    %v593 = vld [vmem:[#allocation5 + $0xf70] sm:$0xff]
    %v594 = vld [vmem:[#allocation5 + $0xf78] sm:$0xff]
    %v595 = vld [vmem:[#allocation5 + $0xf80] sm:$0xff]
    %v596 = vld [vmem:[#allocation5 + $0xf88] sm:$0xff]
    %v597 = vld [vmem:[#allocation5 + $0xf90] sm:$0xff]
    %v598 = vld [vmem:[#allocation5 + $0xf98] sm:$0xff]
    %v599 = vld [vmem:[#allocation5 + $0xfa0] sm:$0xff]
    %v600 = vld [vmem:[#allocation5 + $0xfa8] sm:$0xff]
    %v601 = vld [vmem:[#allocation5 + $0xfb0] sm:$0xff]
    %v602 = vld [vmem:[#allocation5 + $0xfb8] sm:$0xff]
    %v603 = vld [vmem:[#allocation5 + $0xfc0] sm:$0xff]
    %v604 = vld [vmem:[#allocation5 + $0xfc8] sm:$0xff]
    %v605 = vld [vmem:[#allocation5 + $0xfd0] sm:$0xff]
    %v606 = vld [vmem:[#allocation5 + $0xfd8] sm:$0xff]
    %v607 = vld [vmem:[#allocation5 + $0xfe0] sm:$0xff]
    %v608 = vld [vmem:[#allocation5 + $0xfe8] sm:$0xff]
    %v609 = vld [vmem:[#allocation5 + $0xff0] sm:$0xff]
    %v610 = vld [vmem:[#allocation5 + $0xff8] sm:$0xff]
    %v611 = vunpack.c.l.s8.bf16 %v99
    %v612 = vunpack.c.l.s8.bf16 %v100
    %v613 = vunpack.c.l.s8.bf16 %v101
    %v614 = vunpack.c.l.s8.bf16 %v102
    %v615 = vunpack.c.h.s8.bf16 %v99
    %v616 = vunpack.c.h.s8.bf16 %v100
    %v617 = vunpack.c.h.s8.bf16 %v101
    %v618 = vunpack.c.h.s8.bf16 %v102
    %v619 = vunpack.c.l.s8.bf16 %v103
    %v620 = vunpack.c.l.s8.bf16 %v104
    %v621 = vunpack.c.l.s8.bf16 %v105
    %v622 = vunpack.c.l.s8.bf16 %v106
    %v623 = vunpack.c.h.s8.bf16 %v103
    %v624 = vunpack.c.h.s8.bf16 %v104
    %v625 = vunpack.c.h.s8.bf16 %v105
    %v626 = vunpack.c.h.s8.bf16 %v106
    %v627 = vunpack.c.l.s8.bf16 %v107
    %v628 = vunpack.c.l.s8.bf16 %v108
    %v629 = vunpack.c.l.s8.bf16 %v109
    %v630 = vunpack.c.l.s8.bf16 %v110
    %v631 = vunpack.c.h.s8.bf16 %v107
    %v632 = vunpack.c.h.s8.bf16 %v108
    %v633 = vunpack.c.h.s8.bf16 %v109
    %v634 = vunpack.c.h.s8.bf16 %v110
    %v635 = vunpack.c.l.s8.bf16 %v111
    %v636 = vunpack.c.l.s8.bf16 %v112
    %v637 = vunpack.c.l.s8.bf16 %v113
    %v638 = vunpack.c.l.s8.bf16 %v114
    %v639 = vunpack.c.h.s8.bf16 %v111
    %v640 = vunpack.c.h.s8.bf16 %v112
    %v641 = vunpack.c.h.s8.bf16 %v113
    %v642 = vunpack.c.h.s8.bf16 %v114
    %v643 = vunpack.c.l.s8.bf16 %v115
    %v644 = vunpack.c.l.s8.bf16 %v116
    %v645 = vunpack.c.l.s8.bf16 %v117
    %v646 = vunpack.c.l.s8.bf16 %v118
    %v647 = vunpack.c.h.s8.bf16 %v115
    %v648 = vunpack.c.h.s8.bf16 %v116
    %v649 = vunpack.c.h.s8.bf16 %v117
    %v650 = vunpack.c.h.s8.bf16 %v118
    %v651 = vunpack.c.l.s8.bf16 %v119
    %v652 = vunpack.c.l.s8.bf16 %v120
    %v653 = vunpack.c.l.s8.bf16 %v121
    %v654 = vunpack.c.l.s8.bf16 %v122
    %v655 = vunpack.c.h.s8.bf16 %v119
    %v656 = vunpack.c.h.s8.bf16 %v120
    %v657 = vunpack.c.h.s8.bf16 %v121
    %v658 = vunpack.c.h.s8.bf16 %v122
    %v659 = vunpack.c.l.s8.bf16 %v123
    %v660 = vunpack.c.l.s8.bf16 %v124
    %v661 = vunpack.c.l.s8.bf16 %v125
    %v662 = vunpack.c.l.s8.bf16 %v126
    %v663 = vunpack.c.h.s8.bf16 %v123
    %v664 = vunpack.c.h.s8.bf16 %v124
    %v665 = vunpack.c.h.s8.bf16 %v125
    %v666 = vunpack.c.h.s8.bf16 %v126
    %v667 = vunpack.c.l.s8.bf16 %v127
    %v668 = vunpack.c.l.s8.bf16 %v128
    %v669 = vunpack.c.l.s8.bf16 %v129
    %v670 = vunpack.c.l.s8.bf16 %v130
    %v671 = vunpack.c.h.s8.bf16 %v127
    %v672 = vunpack.c.h.s8.bf16 %v128
    %v673 = vunpack.c.h.s8.bf16 %v129
    %v674 = vunpack.c.h.s8.bf16 %v130
    %v675 = vunpack.c.l.s8.bf16 %v131
    %v676 = vunpack.c.l.s8.bf16 %v132
    %v677 = vunpack.c.l.s8.bf16 %v133
    %v678 = vunpack.c.l.s8.bf16 %v134
    %v679 = vunpack.c.h.s8.bf16 %v131
    %v680 = vunpack.c.h.s8.bf16 %v132
    %v681 = vunpack.c.h.s8.bf16 %v133
    %v682 = vunpack.c.h.s8.bf16 %v134
    %v683 = vunpack.c.l.s8.bf16 %v135
    %v684 = vunpack.c.l.s8.bf16 %v136
    %v685 = vunpack.c.l.s8.bf16 %v137
    %v686 = vunpack.c.l.s8.bf16 %v138
    %v687 = vunpack.c.h.s8.bf16 %v135
    %v688 = vunpack.c.h.s8.bf16 %v136
    %v689 = vunpack.c.h.s8.bf16 %v137
    %v690 = vunpack.c.h.s8.bf16 %v138
    %v691 = vunpack.c.l.s8.bf16 %v139
    %v692 = vunpack.c.l.s8.bf16 %v140
    %v693 = vunpack.c.l.s8.bf16 %v141
    %v694 = vunpack.c.l.s8.bf16 %v142
    %v695 = vunpack.c.h.s8.bf16 %v139
    %v696 = vunpack.c.h.s8.bf16 %v140
    %v697 = vunpack.c.h.s8.bf16 %v141
    %v698 = vunpack.c.h.s8.bf16 %v142
    %v699 = vunpack.c.l.s8.bf16 %v143
    %v700 = vunpack.c.l.s8.bf16 %v144
    %v701 = vunpack.c.l.s8.bf16 %v145
    %v702 = vunpack.c.l.s8.bf16 %v146
    %v703 = vunpack.c.h.s8.bf16 %v143
    %v704 = vunpack.c.h.s8.bf16 %v144
    %v705 = vunpack.c.h.s8.bf16 %v145
    %v706 = vunpack.c.h.s8.bf16 %v146
    %v707 = vunpack.c.l.s8.bf16 %v147
    %v708 = vunpack.c.l.s8.bf16 %v148
    %v709 = vunpack.c.l.s8.bf16 %v149
    %v710 = vunpack.c.l.s8.bf16 %v150
    %v711 = vunpack.c.h.s8.bf16 %v147
    %v712 = vunpack.c.h.s8.bf16 %v148
    %v713 = vunpack.c.h.s8.bf16 %v149
    %v714 = vunpack.c.h.s8.bf16 %v150
    %v715 = vunpack.c.l.s8.bf16 %v151
    %v716 = vunpack.c.l.s8.bf16 %v152
    %v717 = vunpack.c.l.s8.bf16 %v153
    %v718 = vunpack.c.l.s8.bf16 %v154
    %v719 = vunpack.c.h.s8.bf16 %v151
    %v720 = vunpack.c.h.s8.bf16 %v152
    %v721 = vunpack.c.h.s8.bf16 %v153
    %v722 = vunpack.c.h.s8.bf16 %v154
    %v723 = vunpack.c.l.s8.bf16 %v155
    %v724 = vunpack.c.l.s8.bf16 %v156
    %v725 = vunpack.c.l.s8.bf16 %v157
    %v726 = vunpack.c.l.s8.bf16 %v158
    %v727 = vunpack.c.h.s8.bf16 %v155
    %v728 = vunpack.c.h.s8.bf16 %v156
    %v729 = vunpack.c.h.s8.bf16 %v157
    %v730 = vunpack.c.h.s8.bf16 %v158
    %v731 = vunpack.c.l.s8.bf16 %v159
    %v732 = vunpack.c.l.s8.bf16 %v160
    %v733 = vunpack.c.l.s8.bf16 %v161
    %v734 = vunpack.c.l.s8.bf16 %v162
    %v735 = vunpack.c.h.s8.bf16 %v159
    %v736 = vunpack.c.h.s8.bf16 %v160
    %v737 = vunpack.c.h.s8.bf16 %v161
    %v738 = vunpack.c.h.s8.bf16 %v162
    %v739 = vunpack.c.l.s8.bf16 %v163
    %v740 = vunpack.c.l.s8.bf16 %v164
    %v741 = vunpack.c.l.s8.bf16 %v165
    %v742 = vunpack.c.l.s8.bf16 %v166
    %v743 = vunpack.c.h.s8.bf16 %v163
    %v744 = vunpack.c.h.s8.bf16 %v164
    %v745 = vunpack.c.h.s8.bf16 %v165
    %v746 = vunpack.c.h.s8.bf16 %v166
    %v747 = vunpack.c.l.s8.bf16 %v167
    %v748 = vunpack.c.l.s8.bf16 %v168
    %v749 = vunpack.c.l.s8.bf16 %v169
    %v750 = vunpack.c.l.s8.bf16 %v170
    %v751 = vunpack.c.h.s8.bf16 %v167
    %v752 = vunpack.c.h.s8.bf16 %v168
    %v753 = vunpack.c.h.s8.bf16 %v169
    %v754 = vunpack.c.h.s8.bf16 %v170
    %v755 = vunpack.c.l.s8.bf16 %v171
    %v756 = vunpack.c.l.s8.bf16 %v172
    %v757 = vunpack.c.l.s8.bf16 %v173
    %v758 = vunpack.c.l.s8.bf16 %v174
    %v759 = vunpack.c.h.s8.bf16 %v171
    %v760 = vunpack.c.h.s8.bf16 %v172
    %v761 = vunpack.c.h.s8.bf16 %v173
    %v762 = vunpack.c.h.s8.bf16 %v174
    %v763 = vunpack.c.l.s8.bf16 %v175
    %v764 = vunpack.c.l.s8.bf16 %v176
    %v765 = vunpack.c.l.s8.bf16 %v177
    %v766 = vunpack.c.l.s8.bf16 %v178
    %v767 = vunpack.c.h.s8.bf16 %v175
    %v768 = vunpack.c.h.s8.bf16 %v176
    %v769 = vunpack.c.h.s8.bf16 %v177
    %v770 = vunpack.c.h.s8.bf16 %v178
    %v771 = vunpack.c.l.s8.bf16 %v179
    %v772 = vunpack.c.l.s8.bf16 %v180
    %v773 = vunpack.c.l.s8.bf16 %v181
    %v774 = vunpack.c.l.s8.bf16 %v182
    %v775 = vunpack.c.h.s8.bf16 %v179
    %v776 = vunpack.c.h.s8.bf16 %v180
    %v777 = vunpack.c.h.s8.bf16 %v181
    %v778 = vunpack.c.h.s8.bf16 %v182
    %v779 = vunpack.c.l.s8.bf16 %v183
    %v780 = vunpack.c.l.s8.bf16 %v184
    %v781 = vunpack.c.l.s8.bf16 %v185
    %v782 = vunpack.c.l.s8.bf16 %v186
    %v783 = vunpack.c.h.s8.bf16 %v183
    %v784 = vunpack.c.h.s8.bf16 %v184
    %v785 = vunpack.c.h.s8.bf16 %v185
    %v786 = vunpack.c.h.s8.bf16 %v186
    %v787 = vunpack.c.l.s8.bf16 %v187
    %v788 = vunpack.c.l.s8.bf16 %v188
    %v789 = vunpack.c.l.s8.bf16 %v189
    %v790 = vunpack.c.l.s8.bf16 %v190
    %v791 = vunpack.c.h.s8.bf16 %v187
    %v792 = vunpack.c.h.s8.bf16 %v188
    %v793 = vunpack.c.h.s8.bf16 %v189
    %v794 = vunpack.c.h.s8.bf16 %v190
    %v795 = vunpack.c.l.s8.bf16 %v191
    %v796 = vunpack.c.l.s8.bf16 %v192
    %v797 = vunpack.c.l.s8.bf16 %v193
    %v798 = vunpack.c.l.s8.bf16 %v194
    %v799 = vunpack.c.h.s8.bf16 %v191
    %v800 = vunpack.c.h.s8.bf16 %v192
    %v801 = vunpack.c.h.s8.bf16 %v193
    %v802 = vunpack.c.h.s8.bf16 %v194
    %v803 = vunpack.c.l.s8.bf16 %v195
    %v804 = vunpack.c.l.s8.bf16 %v196
    %v805 = vunpack.c.l.s8.bf16 %v197
    %v806 = vunpack.c.l.s8.bf16 %v198
    %v807 = vunpack.c.h.s8.bf16 %v195
    %v808 = vunpack.c.h.s8.bf16 %v196
    %v809 = vunpack.c.h.s8.bf16 %v197
    %v810 = vunpack.c.h.s8.bf16 %v198
    %v811 = vunpack.c.l.s8.bf16 %v199
    %v812 = vunpack.c.l.s8.bf16 %v200
    %v813 = vunpack.c.l.s8.bf16 %v201
    %v814 = vunpack.c.l.s8.bf16 %v202
    %v815 = vunpack.c.h.s8.bf16 %v199
    %v816 = vunpack.c.h.s8.bf16 %v200
    %v817 = vunpack.c.h.s8.bf16 %v201
    %v818 = vunpack.c.h.s8.bf16 %v202
    %v819 = vunpack.c.l.s8.bf16 %v203
    %v820 = vunpack.c.l.s8.bf16 %v204
    %v821 = vunpack.c.l.s8.bf16 %v205
    %v822 = vunpack.c.l.s8.bf16 %v206
    %v823 = vunpack.c.h.s8.bf16 %v203
    %v824 = vunpack.c.h.s8.bf16 %v204
    %v825 = vunpack.c.h.s8.bf16 %v205
    %v826 = vunpack.c.h.s8.bf16 %v206
    %v827 = vunpack.c.l.s8.bf16 %v207
    %v828 = vunpack.c.l.s8.bf16 %v208
    %v829 = vunpack.c.l.s8.bf16 %v209
    %v830 = vunpack.c.l.s8.bf16 %v210
    %v831 = vunpack.c.h.s8.bf16 %v207
    %v832 = vunpack.c.h.s8.bf16 %v208
    %v833 = vunpack.c.h.s8.bf16 %v209
    %v834 = vunpack.c.h.s8.bf16 %v210
    %v835 = vunpack.c.l.s8.bf16 %v211
    %v836 = vunpack.c.l.s8.bf16 %v212
    %v837 = vunpack.c.l.s8.bf16 %v213
    %v838 = vunpack.c.l.s8.bf16 %v214
    %v839 = vunpack.c.h.s8.bf16 %v211
    %v840 = vunpack.c.h.s8.bf16 %v212
    %v841 = vunpack.c.h.s8.bf16 %v213
    %v842 = vunpack.c.h.s8.bf16 %v214
    %v843 = vunpack.c.l.s8.bf16 %v215
    %v844 = vunpack.c.l.s8.bf16 %v216
    %v845 = vunpack.c.l.s8.bf16 %v217
    %v846 = vunpack.c.l.s8.bf16 %v218
    %v847 = vunpack.c.h.s8.bf16 %v215
    %v848 = vunpack.c.h.s8.bf16 %v216
    %v849 = vunpack.c.h.s8.bf16 %v217
    %v850 = vunpack.c.h.s8.bf16 %v218
    %v851 = vunpack.c.l.s8.bf16 %v219
    %v852 = vunpack.c.l.s8.bf16 %v220
    %v853 = vunpack.c.l.s8.bf16 %v221
    %v854 = vunpack.c.l.s8.bf16 %v222
    %v855 = vunpack.c.h.s8.bf16 %v219
    %v856 = vunpack.c.h.s8.bf16 %v220
    %v857 = vunpack.c.h.s8.bf16 %v221
    %v858 = vunpack.c.h.s8.bf16 %v222
    %v859 = vunpack.c.l.s8.bf16 %v223
    %v860 = vunpack.c.l.s8.bf16 %v224
    %v861 = vunpack.c.l.s8.bf16 %v225
    %v862 = vunpack.c.l.s8.bf16 %v226
    %v863 = vunpack.c.h.s8.bf16 %v223
    %v864 = vunpack.c.h.s8.bf16 %v224
    %v865 = vunpack.c.h.s8.bf16 %v225
    %v866 = vunpack.c.h.s8.bf16 %v226
    %v867 = vunpack.c.l.s8.bf16 %v227
    %v868 = vunpack.c.l.s8.bf16 %v228
    %v869 = vunpack.c.l.s8.bf16 %v229
    %v870 = vunpack.c.l.s8.bf16 %v230
    %v871 = vunpack.c.h.s8.bf16 %v227
    %v872 = vunpack.c.h.s8.bf16 %v228
    %v873 = vunpack.c.h.s8.bf16 %v229
    %v874 = vunpack.c.h.s8.bf16 %v230
    %v875 = vunpack.c.l.s8.bf16 %v231
    %v876 = vunpack.c.l.s8.bf16 %v232
    %v877 = vunpack.c.l.s8.bf16 %v233
    %v878 = vunpack.c.l.s8.bf16 %v234
    %v879 = vunpack.c.h.s8.bf16 %v231
    %v880 = vunpack.c.h.s8.bf16 %v232
    %v881 = vunpack.c.h.s8.bf16 %v233
    %v882 = vunpack.c.h.s8.bf16 %v234
    %v883 = vunpack.c.l.s8.bf16 %v235
    %v884 = vunpack.c.l.s8.bf16 %v236
    %v885 = vunpack.c.l.s8.bf16 %v237
    %v886 = vunpack.c.l.s8.bf16 %v238
    %v887 = vunpack.c.h.s8.bf16 %v235
    %v888 = vunpack.c.h.s8.bf16 %v236
    %v889 = vunpack.c.h.s8.bf16 %v237
    %v890 = vunpack.c.h.s8.bf16 %v238
    %v891 = vunpack.c.l.s8.bf16 %v239
    %v892 = vunpack.c.l.s8.bf16 %v240
    %v893 = vunpack.c.l.s8.bf16 %v241
    %v894 = vunpack.c.l.s8.bf16 %v242
    %v895 = vunpack.c.h.s8.bf16 %v239
    %v896 = vunpack.c.h.s8.bf16 %v240
    %v897 = vunpack.c.h.s8.bf16 %v241
    %v898 = vunpack.c.h.s8.bf16 %v242
    %v899 = vunpack.c.l.s8.bf16 %v243
    %v900 = vunpack.c.l.s8.bf16 %v244
    %v901 = vunpack.c.l.s8.bf16 %v245
    %v902 = vunpack.c.l.s8.bf16 %v246
    %v903 = vunpack.c.h.s8.bf16 %v243
    %v904 = vunpack.c.h.s8.bf16 %v244
    %v905 = vunpack.c.h.s8.bf16 %v245
    %v906 = vunpack.c.h.s8.bf16 %v246
    %v907 = vunpack.c.l.s8.bf16 %v247
    %v908 = vunpack.c.l.s8.bf16 %v248
    %v909 = vunpack.c.l.s8.bf16 %v249
    %v910 = vunpack.c.l.s8.bf16 %v250
    %v911 = vunpack.c.h.s8.bf16 %v247
    %v912 = vunpack.c.h.s8.bf16 %v248
    %v913 = vunpack.c.h.s8.bf16 %v249
    %v914 = vunpack.c.h.s8.bf16 %v250
    %v915 = vunpack.c.l.s8.bf16 %v251
    %v916 = vunpack.c.l.s8.bf16 %v252
    %v917 = vunpack.c.l.s8.bf16 %v253
    %v918 = vunpack.c.l.s8.bf16 %v254
    %v919 = vunpack.c.h.s8.bf16 %v251
    %v920 = vunpack.c.h.s8.bf16 %v252
    %v921 = vunpack.c.h.s8.bf16 %v253
    %v922 = vunpack.c.h.s8.bf16 %v254
    %v923 = vunpack.c.l.s8.bf16 %v255
    %v924 = vunpack.c.l.s8.bf16 %v256
    %v925 = vunpack.c.l.s8.bf16 %v257
    %v926 = vunpack.c.l.s8.bf16 %v258
    %v927 = vunpack.c.h.s8.bf16 %v255
    %v928 = vunpack.c.h.s8.bf16 %v256
    %v929 = vunpack.c.h.s8.bf16 %v257
    %v930 = vunpack.c.h.s8.bf16 %v258
    %v931 = vunpack.c.l.s8.bf16 %v259
    %v932 = vunpack.c.l.s8.bf16 %v260
    %v933 = vunpack.c.l.s8.bf16 %v261
    %v934 = vunpack.c.l.s8.bf16 %v262
    %v935 = vunpack.c.h.s8.bf16 %v259
    %v936 = vunpack.c.h.s8.bf16 %v260
    %v937 = vunpack.c.h.s8.bf16 %v261
    %v938 = vunpack.c.h.s8.bf16 %v262
    %v939 = vunpack.c.l.s8.bf16 %v263
    %v940 = vunpack.c.l.s8.bf16 %v264
    %v941 = vunpack.c.l.s8.bf16 %v265
    %v942 = vunpack.c.l.s8.bf16 %v266
    %v943 = vunpack.c.h.s8.bf16 %v263
    %v944 = vunpack.c.h.s8.bf16 %v264
    %v945 = vunpack.c.h.s8.bf16 %v265
    %v946 = vunpack.c.h.s8.bf16 %v266
    %v947 = vunpack.c.l.s8.bf16 %v267
    %v948 = vunpack.c.l.s8.bf16 %v268
    %v949 = vunpack.c.l.s8.bf16 %v269
    %v950 = vunpack.c.l.s8.bf16 %v270
    %v951 = vunpack.c.h.s8.bf16 %v267
    %v952 = vunpack.c.h.s8.bf16 %v268
    %v953 = vunpack.c.h.s8.bf16 %v269
    %v954 = vunpack.c.h.s8.bf16 %v270
    %v955 = vunpack.c.l.s8.bf16 %v271
    %v956 = vunpack.c.l.s8.bf16 %v272
    %v957 = vunpack.c.l.s8.bf16 %v273
    %v958 = vunpack.c.l.s8.bf16 %v274
    %v959 = vunpack.c.h.s8.bf16 %v271
    %v960 = vunpack.c.h.s8.bf16 %v272
    %v961 = vunpack.c.h.s8.bf16 %v273
    %v962 = vunpack.c.h.s8.bf16 %v274
    %v963 = vunpack.c.l.s8.bf16 %v275
    %v964 = vunpack.c.l.s8.bf16 %v276
    %v965 = vunpack.c.l.s8.bf16 %v277
    %v966 = vunpack.c.l.s8.bf16 %v278
    %v967 = vunpack.c.h.s8.bf16 %v275
    %v968 = vunpack.c.h.s8.bf16 %v276
    %v969 = vunpack.c.h.s8.bf16 %v277
    %v970 = vunpack.c.h.s8.bf16 %v278
    %v971 = vunpack.c.l.s8.bf16 %v279
    %v972 = vunpack.c.l.s8.bf16 %v280
    %v973 = vunpack.c.l.s8.bf16 %v281
    %v974 = vunpack.c.l.s8.bf16 %v282
    %v975 = vunpack.c.h.s8.bf16 %v279
    %v976 = vunpack.c.h.s8.bf16 %v280
    %v977 = vunpack.c.h.s8.bf16 %v281
    %v978 = vunpack.c.h.s8.bf16 %v282
    %v979 = vunpack.c.l.s8.bf16 %v283
    %v980 = vunpack.c.l.s8.bf16 %v284
    %v981 = vunpack.c.l.s8.bf16 %v285
    %v982 = vunpack.c.l.s8.bf16 %v286
    %v983 = vunpack.c.h.s8.bf16 %v283
    %v984 = vunpack.c.h.s8.bf16 %v284
    %v985 = vunpack.c.h.s8.bf16 %v285
    %v986 = vunpack.c.h.s8.bf16 %v286
    %v987 = vunpack.c.l.s8.bf16 %v287
    %v988 = vunpack.c.l.s8.bf16 %v288
    %v989 = vunpack.c.l.s8.bf16 %v289
    %v990 = vunpack.c.l.s8.bf16 %v290
    %v991 = vunpack.c.h.s8.bf16 %v287
    %v992 = vunpack.c.h.s8.bf16 %v288
    %v993 = vunpack.c.h.s8.bf16 %v289
    %v994 = vunpack.c.h.s8.bf16 %v290
    %v995 = vunpack.c.l.s8.bf16 %v291
    %v996 = vunpack.c.l.s8.bf16 %v292
    %v997 = vunpack.c.l.s8.bf16 %v293
    %v998 = vunpack.c.l.s8.bf16 %v294
    %v999 = vunpack.c.h.s8.bf16 %v291
    %v1000 = vunpack.c.h.s8.bf16 %v292
    %v1001 = vunpack.c.h.s8.bf16 %v293
    %v1002 = vunpack.c.h.s8.bf16 %v294
    %v1003 = vunpack.c.l.s8.bf16 %v295
    %v1004 = vunpack.c.l.s8.bf16 %v296
    %v1005 = vunpack.c.l.s8.bf16 %v297
    %v1006 = vunpack.c.l.s8.bf16 %v298
    %v1007 = vunpack.c.h.s8.bf16 %v295
    %v1008 = vunpack.c.h.s8.bf16 %v296
    %v1009 = vunpack.c.h.s8.bf16 %v297
    %v1010 = vunpack.c.h.s8.bf16 %v298
    %v1011 = vunpack.c.l.s8.bf16 %v299
    %v1012 = vunpack.c.l.s8.bf16 %v300
    %v1013 = vunpack.c.l.s8.bf16 %v301
    %v1014 = vunpack.c.l.s8.bf16 %v302
    %v1015 = vunpack.c.h.s8.bf16 %v299
    %v1016 = vunpack.c.h.s8.bf16 %v300
    %v1017 = vunpack.c.h.s8.bf16 %v301
    %v1018 = vunpack.c.h.s8.bf16 %v302
    %v1019 = vunpack.c.l.s8.bf16 %v303
    %v1020 = vunpack.c.l.s8.bf16 %v304
    %v1021 = vunpack.c.l.s8.bf16 %v305
    %v1022 = vunpack.c.l.s8.bf16 %v306
    %v1023 = vunpack.c.h.s8.bf16 %v303
    %v1024 = vunpack.c.h.s8.bf16 %v304
    %v1025 = vunpack.c.h.s8.bf16 %v305
    %v1026 = vunpack.c.h.s8.bf16 %v306
    %v1027 = vunpack.c.l.s8.bf16 %v307
    %v1028 = vunpack.c.l.s8.bf16 %v308
    %v1029 = vunpack.c.l.s8.bf16 %v309
    %v1030 = vunpack.c.l.s8.bf16 %v310
    %v1031 = vunpack.c.h.s8.bf16 %v307
    %v1032 = vunpack.c.h.s8.bf16 %v308
    %v1033 = vunpack.c.h.s8.bf16 %v309
    %v1034 = vunpack.c.h.s8.bf16 %v310
    %v1035 = vunpack.c.l.s8.bf16 %v311
    %v1036 = vunpack.c.l.s8.bf16 %v312
    %v1037 = vunpack.c.l.s8.bf16 %v313
    %v1038 = vunpack.c.l.s8.bf16 %v314
    %v1039 = vunpack.c.h.s8.bf16 %v311
    %v1040 = vunpack.c.h.s8.bf16 %v312
    %v1041 = vunpack.c.h.s8.bf16 %v313
    %v1042 = vunpack.c.h.s8.bf16 %v314
    %v1043 = vunpack.c.l.s8.bf16 %v315
    %v1044 = vunpack.c.l.s8.bf16 %v316
    %v1045 = vunpack.c.l.s8.bf16 %v317
    %v1046 = vunpack.c.l.s8.bf16 %v318
    %v1047 = vunpack.c.h.s8.bf16 %v315
    %v1048 = vunpack.c.h.s8.bf16 %v316
    %v1049 = vunpack.c.h.s8.bf16 %v317
    %v1050 = vunpack.c.h.s8.bf16 %v318
    %v1051 = vunpack.c.l.s8.bf16 %v319
    %v1052 = vunpack.c.l.s8.bf16 %v320
    %v1053 = vunpack.c.l.s8.bf16 %v321
    %v1054 = vunpack.c.l.s8.bf16 %v322
    %v1055 = vunpack.c.h.s8.bf16 %v319
    %v1056 = vunpack.c.h.s8.bf16 %v320
    %v1057 = vunpack.c.h.s8.bf16 %v321
    %v1058 = vunpack.c.h.s8.bf16 %v322
    %v1059 = vunpack.c.l.s8.bf16 %v323
    %v1060 = vunpack.c.l.s8.bf16 %v324
    %v1061 = vunpack.c.l.s8.bf16 %v325
    %v1062 = vunpack.c.l.s8.bf16 %v326
    %v1063 = vunpack.c.h.s8.bf16 %v323
    %v1064 = vunpack.c.h.s8.bf16 %v324
    %v1065 = vunpack.c.h.s8.bf16 %v325
    %v1066 = vunpack.c.h.s8.bf16 %v326
    %v1067 = vunpack.c.l.s8.bf16 %v327
    %v1068 = vunpack.c.l.s8.bf16 %v328
    %v1069 = vunpack.c.l.s8.bf16 %v329
    %v1070 = vunpack.c.l.s8.bf16 %v330
    %v1071 = vunpack.c.h.s8.bf16 %v327
    %v1072 = vunpack.c.h.s8.bf16 %v328
    %v1073 = vunpack.c.h.s8.bf16 %v329
    %v1074 = vunpack.c.h.s8.bf16 %v330
    %v1075 = vunpack.c.l.s8.bf16 %v331
    %v1076 = vunpack.c.l.s8.bf16 %v332
    %v1077 = vunpack.c.l.s8.bf16 %v333
    %v1078 = vunpack.c.l.s8.bf16 %v334
    %v1079 = vunpack.c.h.s8.bf16 %v331
    %v1080 = vunpack.c.h.s8.bf16 %v332
    %v1081 = vunpack.c.h.s8.bf16 %v333
    %v1082 = vunpack.c.h.s8.bf16 %v334
    %v1083 = vunpack.c.l.s8.bf16 %v335
    %v1084 = vunpack.c.l.s8.bf16 %v336
    %v1085 = vunpack.c.l.s8.bf16 %v337
    %v1086 = vunpack.c.l.s8.bf16 %v338
    %v1087 = vunpack.c.h.s8.bf16 %v335
    %v1088 = vunpack.c.h.s8.bf16 %v336
    %v1089 = vunpack.c.h.s8.bf16 %v337
    %v1090 = vunpack.c.h.s8.bf16 %v338
    %v1091 = vunpack.c.l.s8.bf16 %v339
    %v1092 = vunpack.c.l.s8.bf16 %v340
    %v1093 = vunpack.c.l.s8.bf16 %v341
    %v1094 = vunpack.c.l.s8.bf16 %v342
    %v1095 = vunpack.c.h.s8.bf16 %v339
    %v1096 = vunpack.c.h.s8.bf16 %v340
    %v1097 = vunpack.c.h.s8.bf16 %v341
    %v1098 = vunpack.c.h.s8.bf16 %v342
    %v1099 = vunpack.c.l.s8.bf16 %v343
    %v1100 = vunpack.c.l.s8.bf16 %v344
    %v1101 = vunpack.c.l.s8.bf16 %v345
    %v1102 = vunpack.c.l.s8.bf16 %v346
    %v1103 = vunpack.c.h.s8.bf16 %v343
    %v1104 = vunpack.c.h.s8.bf16 %v344
    %v1105 = vunpack.c.h.s8.bf16 %v345
    %v1106 = vunpack.c.h.s8.bf16 %v346
    %v1107 = vunpack.c.l.s8.bf16 %v347
    %v1108 = vunpack.c.l.s8.bf16 %v348
    %v1109 = vunpack.c.l.s8.bf16 %v349
    %v1110 = vunpack.c.l.s8.bf16 %v350
    %v1111 = vunpack.c.h.s8.bf16 %v347
    %v1112 = vunpack.c.h.s8.bf16 %v348
    %v1113 = vunpack.c.h.s8.bf16 %v349
    %v1114 = vunpack.c.h.s8.bf16 %v350
    %v1115 = vunpack.c.l.s8.bf16 %v351
    %v1116 = vunpack.c.l.s8.bf16 %v352
    %v1117 = vunpack.c.l.s8.bf16 %v353
    %v1118 = vunpack.c.l.s8.bf16 %v354
    %v1119 = vunpack.c.h.s8.bf16 %v351
    %v1120 = vunpack.c.h.s8.bf16 %v352
    %v1121 = vunpack.c.h.s8.bf16 %v353
    %v1122 = vunpack.c.h.s8.bf16 %v354
    %v1123 = vunpack.c.l.s8.bf16 %v355
    %v1124 = vunpack.c.l.s8.bf16 %v356
    %v1125 = vunpack.c.l.s8.bf16 %v357
    %v1126 = vunpack.c.l.s8.bf16 %v358
    %v1127 = vunpack.c.h.s8.bf16 %v355
    %v1128 = vunpack.c.h.s8.bf16 %v356
    %v1129 = vunpack.c.h.s8.bf16 %v357
    %v1130 = vunpack.c.h.s8.bf16 %v358
    %v1131 = vunpack.c.l.s8.bf16 %v359
    %v1132 = vunpack.c.l.s8.bf16 %v360
    %v1133 = vunpack.c.l.s8.bf16 %v361
    %v1134 = vunpack.c.l.s8.bf16 %v362
    %v1135 = vunpack.c.h.s8.bf16 %v359
    %v1136 = vunpack.c.h.s8.bf16 %v360
    %v1137 = vunpack.c.h.s8.bf16 %v361
    %v1138 = vunpack.c.h.s8.bf16 %v362
    %v1139 = vunpack.c.l.s8.bf16 %v363
    %v1140 = vunpack.c.l.s8.bf16 %v364
    %v1141 = vunpack.c.l.s8.bf16 %v365
    %v1142 = vunpack.c.l.s8.bf16 %v366
    %v1143 = vunpack.c.h.s8.bf16 %v363
    %v1144 = vunpack.c.h.s8.bf16 %v364
    %v1145 = vunpack.c.h.s8.bf16 %v365
    %v1146 = vunpack.c.h.s8.bf16 %v366
    %v1147 = vunpack.c.l.s8.bf16 %v367
    %v1148 = vunpack.c.l.s8.bf16 %v368
    %v1149 = vunpack.c.l.s8.bf16 %v369
    %v1150 = vunpack.c.l.s8.bf16 %v370
    %v1151 = vunpack.c.h.s8.bf16 %v367
    %v1152 = vunpack.c.h.s8.bf16 %v368
    %v1153 = vunpack.c.h.s8.bf16 %v369
    %v1154 = vunpack.c.h.s8.bf16 %v370
    %v1155 = vunpack.c.l.s8.bf16 %v371
    %v1156 = vunpack.c.l.s8.bf16 %v372
    %v1157 = vunpack.c.l.s8.bf16 %v373
    %v1158 = vunpack.c.l.s8.bf16 %v374
    %v1159 = vunpack.c.h.s8.bf16 %v371
    %v1160 = vunpack.c.h.s8.bf16 %v372
    %v1161 = vunpack.c.h.s8.bf16 %v373
    %v1162 = vunpack.c.h.s8.bf16 %v374
    %v1163 = vunpack.c.l.s8.bf16 %v375
    %v1164 = vunpack.c.l.s8.bf16 %v376
    %v1165 = vunpack.c.l.s8.bf16 %v377
    %v1166 = vunpack.c.l.s8.bf16 %v378
    %v1167 = vunpack.c.h.s8.bf16 %v375
    %v1168 = vunpack.c.h.s8.bf16 %v376
    %v1169 = vunpack.c.h.s8.bf16 %v377
    %v1170 = vunpack.c.h.s8.bf16 %v378
    %v1171 = vunpack.c.l.s8.bf16 %v379
    %v1172 = vunpack.c.l.s8.bf16 %v380
    %v1173 = vunpack.c.l.s8.bf16 %v381
    %v1174 = vunpack.c.l.s8.bf16 %v382
    %v1175 = vunpack.c.h.s8.bf16 %v379
    %v1176 = vunpack.c.h.s8.bf16 %v380
    %v1177 = vunpack.c.h.s8.bf16 %v381
    %v1178 = vunpack.c.h.s8.bf16 %v382
    %v1179 = vunpack.c.l.s8.bf16 %v383
    %v1180 = vunpack.c.l.s8.bf16 %v384
    %v1181 = vunpack.c.l.s8.bf16 %v385
    %v1182 = vunpack.c.l.s8.bf16 %v386
    %v1183 = vunpack.c.h.s8.bf16 %v383
    %v1184 = vunpack.c.h.s8.bf16 %v384
    %v1185 = vunpack.c.h.s8.bf16 %v385
    %v1186 = vunpack.c.h.s8.bf16 %v386
    %v1187 = vunpack.c.l.s8.bf16 %v387
    %v1188 = vunpack.c.l.s8.bf16 %v388
    %v1189 = vunpack.c.l.s8.bf16 %v389
    %v1190 = vunpack.c.l.s8.bf16 %v390
    %v1191 = vunpack.c.h.s8.bf16 %v387
    %v1192 = vunpack.c.h.s8.bf16 %v388
    %v1193 = vunpack.c.h.s8.bf16 %v389
    %v1194 = vunpack.c.h.s8.bf16 %v390
    %v1195 = vunpack.c.l.s8.bf16 %v391
    %v1196 = vunpack.c.l.s8.bf16 %v392
    %v1197 = vunpack.c.l.s8.bf16 %v393
    %v1198 = vunpack.c.l.s8.bf16 %v394
    %v1199 = vunpack.c.h.s8.bf16 %v391
    %v1200 = vunpack.c.h.s8.bf16 %v392
    %v1201 = vunpack.c.h.s8.bf16 %v393
    %v1202 = vunpack.c.h.s8.bf16 %v394
    %v1203 = vunpack.c.l.s8.bf16 %v395
    %v1204 = vunpack.c.l.s8.bf16 %v396
    %v1205 = vunpack.c.l.s8.bf16 %v397
    %v1206 = vunpack.c.l.s8.bf16 %v398
    %v1207 = vunpack.c.h.s8.bf16 %v395
    %v1208 = vunpack.c.h.s8.bf16 %v396
    %v1209 = vunpack.c.h.s8.bf16 %v397
    %v1210 = vunpack.c.h.s8.bf16 %v398
    %v1211 = vunpack.c.l.s8.bf16 %v399
    %v1212 = vunpack.c.l.s8.bf16 %v400
    %v1213 = vunpack.c.l.s8.bf16 %v401
    %v1214 = vunpack.c.l.s8.bf16 %v402
    %v1215 = vunpack.c.h.s8.bf16 %v399
    %v1216 = vunpack.c.h.s8.bf16 %v400
    %v1217 = vunpack.c.h.s8.bf16 %v401
    %v1218 = vunpack.c.h.s8.bf16 %v402
    %v1219 = vunpack.c.l.s8.bf16 %v403
    %v1220 = vunpack.c.l.s8.bf16 %v404
    %v1221 = vunpack.c.l.s8.bf16 %v405
    %v1222 = vunpack.c.l.s8.bf16 %v406
    %v1223 = vunpack.c.h.s8.bf16 %v403
    %v1224 = vunpack.c.h.s8.bf16 %v404
    %v1225 = vunpack.c.h.s8.bf16 %v405
    %v1226 = vunpack.c.h.s8.bf16 %v406
    %v1227 = vunpack.c.l.s8.bf16 %v407
    %v1228 = vunpack.c.l.s8.bf16 %v408
    %v1229 = vunpack.c.l.s8.bf16 %v409
    %v1230 = vunpack.c.l.s8.bf16 %v410
    %v1231 = vunpack.c.h.s8.bf16 %v407
    %v1232 = vunpack.c.h.s8.bf16 %v408
    %v1233 = vunpack.c.h.s8.bf16 %v409
    %v1234 = vunpack.c.h.s8.bf16 %v410
    %v1235 = vunpack.c.l.s8.bf16 %v411
    %v1236 = vunpack.c.l.s8.bf16 %v412
    %v1237 = vunpack.c.l.s8.bf16 %v413
    %v1238 = vunpack.c.l.s8.bf16 %v414
    %v1239 = vunpack.c.h.s8.bf16 %v411
    %v1240 = vunpack.c.h.s8.bf16 %v412
    %v1241 = vunpack.c.h.s8.bf16 %v413
    %v1242 = vunpack.c.h.s8.bf16 %v414
    %v1243 = vunpack.c.l.s8.bf16 %v415
    %v1244 = vunpack.c.l.s8.bf16 %v416
    %v1245 = vunpack.c.l.s8.bf16 %v417
    %v1246 = vunpack.c.l.s8.bf16 %v418
    %v1247 = vunpack.c.h.s8.bf16 %v415
    %v1248 = vunpack.c.h.s8.bf16 %v416
    %v1249 = vunpack.c.h.s8.bf16 %v417
    %v1250 = vunpack.c.h.s8.bf16 %v418
    %v1251 = vunpack.c.l.s8.bf16 %v419
    %v1252 = vunpack.c.l.s8.bf16 %v420
    %v1253 = vunpack.c.l.s8.bf16 %v421
    %v1254 = vunpack.c.l.s8.bf16 %v422
    %v1255 = vunpack.c.h.s8.bf16 %v419
    %v1256 = vunpack.c.h.s8.bf16 %v420
    %v1257 = vunpack.c.h.s8.bf16 %v421
    %v1258 = vunpack.c.h.s8.bf16 %v422
    %v1259 = vunpack.c.l.s8.bf16 %v423
    %v1260 = vunpack.c.l.s8.bf16 %v424
    %v1261 = vunpack.c.l.s8.bf16 %v425
    %v1262 = vunpack.c.l.s8.bf16 %v426
    %v1263 = vunpack.c.h.s8.bf16 %v423
    %v1264 = vunpack.c.h.s8.bf16 %v424
    %v1265 = vunpack.c.h.s8.bf16 %v425
    %v1266 = vunpack.c.h.s8.bf16 %v426
    %v1267 = vunpack.c.l.s8.bf16 %v427
    %v1268 = vunpack.c.l.s8.bf16 %v428
    %v1269 = vunpack.c.l.s8.bf16 %v429
    %v1270 = vunpack.c.l.s8.bf16 %v430
    %v1271 = vunpack.c.h.s8.bf16 %v427
    %v1272 = vunpack.c.h.s8.bf16 %v428
    %v1273 = vunpack.c.h.s8.bf16 %v429
    %v1274 = vunpack.c.h.s8.bf16 %v430
    %v1275 = vunpack.c.l.s8.bf16 %v431
    %v1276 = vunpack.c.l.s8.bf16 %v432
    %v1277 = vunpack.c.l.s8.bf16 %v433
    %v1278 = vunpack.c.l.s8.bf16 %v434
    %v1279 = vunpack.c.h.s8.bf16 %v431
    %v1280 = vunpack.c.h.s8.bf16 %v432
    %v1281 = vunpack.c.h.s8.bf16 %v433
    %v1282 = vunpack.c.h.s8.bf16 %v434
    %v1283 = vunpack.c.l.s8.bf16 %v435
    %v1284 = vunpack.c.l.s8.bf16 %v436
    %v1285 = vunpack.c.l.s8.bf16 %v437
    %v1286 = vunpack.c.l.s8.bf16 %v438
    %v1287 = vunpack.c.h.s8.bf16 %v435
    %v1288 = vunpack.c.h.s8.bf16 %v436
    %v1289 = vunpack.c.h.s8.bf16 %v437
    %v1290 = vunpack.c.h.s8.bf16 %v438
    %v1291 = vunpack.c.l.s8.bf16 %v439
    %v1292 = vunpack.c.l.s8.bf16 %v440
    %v1293 = vunpack.c.l.s8.bf16 %v441
    %v1294 = vunpack.c.l.s8.bf16 %v442
    %v1295 = vunpack.c.h.s8.bf16 %v439
    %v1296 = vunpack.c.h.s8.bf16 %v440
    %v1297 = vunpack.c.h.s8.bf16 %v441
    %v1298 = vunpack.c.h.s8.bf16 %v442
    %v1299 = vunpack.c.l.s8.bf16 %v443
    %v1300 = vunpack.c.l.s8.bf16 %v444
    %v1301 = vunpack.c.l.s8.bf16 %v445
    %v1302 = vunpack.c.l.s8.bf16 %v446
    %v1303 = vunpack.c.h.s8.bf16 %v443
    %v1304 = vunpack.c.h.s8.bf16 %v444
    %v1305 = vunpack.c.h.s8.bf16 %v445
    %v1306 = vunpack.c.h.s8.bf16 %v446
    %v1307 = vunpack.c.l.s8.bf16 %v447
    %v1308 = vunpack.c.l.s8.bf16 %v448
    %v1309 = vunpack.c.l.s8.bf16 %v449
    %v1310 = vunpack.c.l.s8.bf16 %v450
    %v1311 = vunpack.c.h.s8.bf16 %v447
    %v1312 = vunpack.c.h.s8.bf16 %v448
    %v1313 = vunpack.c.h.s8.bf16 %v449
    %v1314 = vunpack.c.h.s8.bf16 %v450
    %v1315 = vunpack.c.l.s8.bf16 %v451
    %v1316 = vunpack.c.l.s8.bf16 %v452
    %v1317 = vunpack.c.l.s8.bf16 %v453
    %v1318 = vunpack.c.l.s8.bf16 %v454
    %v1319 = vunpack.c.h.s8.bf16 %v451
    %v1320 = vunpack.c.h.s8.bf16 %v452
    %v1321 = vunpack.c.h.s8.bf16 %v453
    %v1322 = vunpack.c.h.s8.bf16 %v454
    %v1323 = vunpack.c.l.s8.bf16 %v455
    %v1324 = vunpack.c.l.s8.bf16 %v456
    %v1325 = vunpack.c.l.s8.bf16 %v457
    %v1326 = vunpack.c.l.s8.bf16 %v458
    %v1327 = vunpack.c.h.s8.bf16 %v455
    %v1328 = vunpack.c.h.s8.bf16 %v456
    %v1329 = vunpack.c.h.s8.bf16 %v457
    %v1330 = vunpack.c.h.s8.bf16 %v458
    %v1331 = vunpack.c.l.s8.bf16 %v459
    %v1332 = vunpack.c.l.s8.bf16 %v460
    %v1333 = vunpack.c.l.s8.bf16 %v461
    %v1334 = vunpack.c.l.s8.bf16 %v462
    %v1335 = vunpack.c.h.s8.bf16 %v459
    %v1336 = vunpack.c.h.s8.bf16 %v460
    %v1337 = vunpack.c.h.s8.bf16 %v461
    %v1338 = vunpack.c.h.s8.bf16 %v462
    %v1339 = vunpack.c.l.s8.bf16 %v463
    %v1340 = vunpack.c.l.s8.bf16 %v464
    %v1341 = vunpack.c.l.s8.bf16 %v465
    %v1342 = vunpack.c.l.s8.bf16 %v466
    %v1343 = vunpack.c.h.s8.bf16 %v463
    %v1344 = vunpack.c.h.s8.bf16 %v464
    %v1345 = vunpack.c.h.s8.bf16 %v465
    %v1346 = vunpack.c.h.s8.bf16 %v466
    %v1347 = vunpack.c.l.s8.bf16 %v467
    %v1348 = vunpack.c.l.s8.bf16 %v468
    %v1349 = vunpack.c.l.s8.bf16 %v469
    %v1350 = vunpack.c.l.s8.bf16 %v470
    %v1351 = vunpack.c.h.s8.bf16 %v467
    %v1352 = vunpack.c.h.s8.bf16 %v468
    %v1353 = vunpack.c.h.s8.bf16 %v469
    %v1354 = vunpack.c.h.s8.bf16 %v470
    %v1355 = vunpack.c.l.s8.bf16 %v471
    %v1356 = vunpack.c.l.s8.bf16 %v472
    %v1357 = vunpack.c.l.s8.bf16 %v473
    %v1358 = vunpack.c.l.s8.bf16 %v474
    %v1359 = vunpack.c.h.s8.bf16 %v471
    %v1360 = vunpack.c.h.s8.bf16 %v472
    %v1361 = vunpack.c.h.s8.bf16 %v473
    %v1362 = vunpack.c.h.s8.bf16 %v474
    %v1363 = vunpack.c.l.s8.bf16 %v475
    %v1364 = vunpack.c.l.s8.bf16 %v476
    %v1365 = vunpack.c.l.s8.bf16 %v477
    %v1366 = vunpack.c.l.s8.bf16 %v478
    %v1367 = vunpack.c.h.s8.bf16 %v475
    %v1368 = vunpack.c.h.s8.bf16 %v476
    %v1369 = vunpack.c.h.s8.bf16 %v477
    %v1370 = vunpack.c.h.s8.bf16 %v478
    %v1371 = vunpack.c.l.s8.bf16 %v479
    %v1372 = vunpack.c.l.s8.bf16 %v480
    %v1373 = vunpack.c.l.s8.bf16 %v481
    %v1374 = vunpack.c.l.s8.bf16 %v482
    %v1375 = vunpack.c.h.s8.bf16 %v479
    %v1376 = vunpack.c.h.s8.bf16 %v480
    %v1377 = vunpack.c.h.s8.bf16 %v481
    %v1378 = vunpack.c.h.s8.bf16 %v482
    %v1379 = vunpack.c.l.s8.bf16 %v483
    %v1380 = vunpack.c.l.s8.bf16 %v484
    %v1381 = vunpack.c.l.s8.bf16 %v485
    %v1382 = vunpack.c.l.s8.bf16 %v486
    %v1383 = vunpack.c.h.s8.bf16 %v483
    %v1384 = vunpack.c.h.s8.bf16 %v484
    %v1385 = vunpack.c.h.s8.bf16 %v485
    %v1386 = vunpack.c.h.s8.bf16 %v486
    %v1387 = vunpack.c.l.s8.bf16 %v487
    %v1388 = vunpack.c.l.s8.bf16 %v488
    %v1389 = vunpack.c.l.s8.bf16 %v489
    %v1390 = vunpack.c.l.s8.bf16 %v490
    %v1391 = vunpack.c.h.s8.bf16 %v487
    %v1392 = vunpack.c.h.s8.bf16 %v488
    %v1393 = vunpack.c.h.s8.bf16 %v489
    %v1394 = vunpack.c.h.s8.bf16 %v490
    %v1395 = vunpack.c.l.s8.bf16 %v491
    %v1396 = vunpack.c.l.s8.bf16 %v492
    %v1397 = vunpack.c.l.s8.bf16 %v493
    %v1398 = vunpack.c.l.s8.bf16 %v494
    %v1399 = vunpack.c.h.s8.bf16 %v491
    %v1400 = vunpack.c.h.s8.bf16 %v492
    %v1401 = vunpack.c.h.s8.bf16 %v493
    %v1402 = vunpack.c.h.s8.bf16 %v494
    %v1403 = vunpack.c.l.s8.bf16 %v495
    %v1404 = vunpack.c.l.s8.bf16 %v496
    %v1405 = vunpack.c.l.s8.bf16 %v497
    %v1406 = vunpack.c.l.s8.bf16 %v498
    %v1407 = vunpack.c.h.s8.bf16 %v495
    %v1408 = vunpack.c.h.s8.bf16 %v496
    %v1409 = vunpack.c.h.s8.bf16 %v497
    %v1410 = vunpack.c.h.s8.bf16 %v498
    %v1411 = vunpack.c.l.s8.bf16 %v499
    %v1412 = vunpack.c.l.s8.bf16 %v500
    %v1413 = vunpack.c.l.s8.bf16 %v501
    %v1414 = vunpack.c.l.s8.bf16 %v502
    %v1415 = vunpack.c.h.s8.bf16 %v499
    %v1416 = vunpack.c.h.s8.bf16 %v500
    %v1417 = vunpack.c.h.s8.bf16 %v501
    %v1418 = vunpack.c.h.s8.bf16 %v502
    %v1419 = vunpack.c.l.s8.bf16 %v503
    %v1420 = vunpack.c.l.s8.bf16 %v504
    %v1421 = vunpack.c.l.s8.bf16 %v505
    %v1422 = vunpack.c.l.s8.bf16 %v506
    %v1423 = vunpack.c.h.s8.bf16 %v503
    %v1424 = vunpack.c.h.s8.bf16 %v504
    %v1425 = vunpack.c.h.s8.bf16 %v505
    %v1426 = vunpack.c.h.s8.bf16 %v506
    %v1427 = vunpack.c.l.s8.bf16 %v507
    %v1428 = vunpack.c.l.s8.bf16 %v508
    %v1429 = vunpack.c.l.s8.bf16 %v509
    %v1430 = vunpack.c.l.s8.bf16 %v510
    %v1431 = vunpack.c.h.s8.bf16 %v507
    %v1432 = vunpack.c.h.s8.bf16 %v508
    %v1433 = vunpack.c.h.s8.bf16 %v509
    %v1434 = vunpack.c.h.s8.bf16 %v510
    %v1435 = vunpack.c.l.s8.bf16 %v511
    %v1436 = vunpack.c.l.s8.bf16 %v512
    %v1437 = vunpack.c.l.s8.bf16 %v513
    %v1438 = vunpack.c.l.s8.bf16 %v514
    %v1439 = vunpack.c.h.s8.bf16 %v511
    %v1440 = vunpack.c.h.s8.bf16 %v512
    %v1441 = vunpack.c.h.s8.bf16 %v513
    %v1442 = vunpack.c.h.s8.bf16 %v514
    %v1443 = vunpack.c.l.s8.bf16 %v515
    %v1444 = vunpack.c.l.s8.bf16 %v516
    %v1445 = vunpack.c.l.s8.bf16 %v517
    %v1446 = vunpack.c.l.s8.bf16 %v518
    %v1447 = vunpack.c.h.s8.bf16 %v515
    %v1448 = vunpack.c.h.s8.bf16 %v516
    %v1449 = vunpack.c.h.s8.bf16 %v517
    %v1450 = vunpack.c.h.s8.bf16 %v518
    %v1451 = vunpack.c.l.s8.bf16 %v519
    %v1452 = vunpack.c.l.s8.bf16 %v520
    %v1453 = vunpack.c.l.s8.bf16 %v521
    %v1454 = vunpack.c.l.s8.bf16 %v522
    %v1455 = vunpack.c.h.s8.bf16 %v519
    %v1456 = vunpack.c.h.s8.bf16 %v520
    %v1457 = vunpack.c.h.s8.bf16 %v521
    %v1458 = vunpack.c.h.s8.bf16 %v522
    %v1459 = vunpack.c.l.s8.bf16 %v523
    %v1460 = vunpack.c.l.s8.bf16 %v524
    %v1461 = vunpack.c.l.s8.bf16 %v525
    %v1462 = vunpack.c.l.s8.bf16 %v526
    %v1463 = vunpack.c.h.s8.bf16 %v523
    %v1464 = vunpack.c.h.s8.bf16 %v524
    %v1465 = vunpack.c.h.s8.bf16 %v525
    %v1466 = vunpack.c.h.s8.bf16 %v526
    %v1467 = vunpack.c.l.s8.bf16 %v527
    %v1468 = vunpack.c.l.s8.bf16 %v528
    %v1469 = vunpack.c.l.s8.bf16 %v529
    %v1470 = vunpack.c.l.s8.bf16 %v530
    %v1471 = vunpack.c.h.s8.bf16 %v527
    %v1472 = vunpack.c.h.s8.bf16 %v528
    %v1473 = vunpack.c.h.s8.bf16 %v529
    %v1474 = vunpack.c.h.s8.bf16 %v530
    %v1475 = vunpack.c.l.s8.bf16 %v531
    %v1476 = vunpack.c.l.s8.bf16 %v532
    %v1477 = vunpack.c.l.s8.bf16 %v533
    %v1478 = vunpack.c.l.s8.bf16 %v534
    %v1479 = vunpack.c.h.s8.bf16 %v531
    %v1480 = vunpack.c.h.s8.bf16 %v532
    %v1481 = vunpack.c.h.s8.bf16 %v533
    %v1482 = vunpack.c.h.s8.bf16 %v534
    %v1483 = vunpack.c.l.s8.bf16 %v535
    %v1484 = vunpack.c.l.s8.bf16 %v536
    %v1485 = vunpack.c.l.s8.bf16 %v537
    %v1486 = vunpack.c.l.s8.bf16 %v538
    %v1487 = vunpack.c.h.s8.bf16 %v535
    %v1488 = vunpack.c.h.s8.bf16 %v536
    %v1489 = vunpack.c.h.s8.bf16 %v537
    %v1490 = vunpack.c.h.s8.bf16 %v538
    %v1491 = vunpack.c.l.s8.bf16 %v539
    %v1492 = vunpack.c.l.s8.bf16 %v540
    %v1493 = vunpack.c.l.s8.bf16 %v541
    %v1494 = vunpack.c.l.s8.bf16 %v542
    %v1495 = vunpack.c.h.s8.bf16 %v539
    %v1496 = vunpack.c.h.s8.bf16 %v540
    %v1497 = vunpack.c.h.s8.bf16 %v541
    %v1498 = vunpack.c.h.s8.bf16 %v542
    %v1499 = vunpack.c.l.s8.bf16 %v543
    %v1500 = vunpack.c.l.s8.bf16 %v544
    %v1501 = vunpack.c.l.s8.bf16 %v545
    %v1502 = vunpack.c.l.s8.bf16 %v546
    %v1503 = vunpack.c.h.s8.bf16 %v543
    %v1504 = vunpack.c.h.s8.bf16 %v544
    %v1505 = vunpack.c.h.s8.bf16 %v545
    %v1506 = vunpack.c.h.s8.bf16 %v546
    %v1507 = vunpack.c.l.s8.bf16 %v547
    %v1508 = vunpack.c.l.s8.bf16 %v548
    %v1509 = vunpack.c.l.s8.bf16 %v549
    %v1510 = vunpack.c.l.s8.bf16 %v550
    %v1511 = vunpack.c.h.s8.bf16 %v547
    %v1512 = vunpack.c.h.s8.bf16 %v548
    %v1513 = vunpack.c.h.s8.bf16 %v549
    %v1514 = vunpack.c.h.s8.bf16 %v550
    %v1515 = vunpack.c.l.s8.bf16 %v551
    %v1516 = vunpack.c.l.s8.bf16 %v552
    %v1517 = vunpack.c.l.s8.bf16 %v553
    %v1518 = vunpack.c.l.s8.bf16 %v554
    %v1519 = vunpack.c.h.s8.bf16 %v551
    %v1520 = vunpack.c.h.s8.bf16 %v552
    %v1521 = vunpack.c.h.s8.bf16 %v553
    %v1522 = vunpack.c.h.s8.bf16 %v554
    %v1523 = vunpack.c.l.s8.bf16 %v555
    %v1524 = vunpack.c.l.s8.bf16 %v556
    %v1525 = vunpack.c.l.s8.bf16 %v557
    %v1526 = vunpack.c.l.s8.bf16 %v558
    %v1527 = vunpack.c.h.s8.bf16 %v555
    %v1528 = vunpack.c.h.s8.bf16 %v556
    %v1529 = vunpack.c.h.s8.bf16 %v557
    %v1530 = vunpack.c.h.s8.bf16 %v558
    %v1531 = vunpack.c.l.s8.bf16 %v559
    %v1532 = vunpack.c.l.s8.bf16 %v560
    %v1533 = vunpack.c.l.s8.bf16 %v561
    %v1534 = vunpack.c.l.s8.bf16 %v562
    %v1535 = vunpack.c.h.s8.bf16 %v559
    %v1536 = vunpack.c.h.s8.bf16 %v560
    %v1537 = vunpack.c.h.s8.bf16 %v561
    %v1538 = vunpack.c.h.s8.bf16 %v562
    %v1539 = vunpack.c.l.s8.bf16 %v563
    %v1540 = vunpack.c.l.s8.bf16 %v564
    %v1541 = vunpack.c.l.s8.bf16 %v565
    %v1542 = vunpack.c.l.s8.bf16 %v566
    %v1543 = vunpack.c.h.s8.bf16 %v563
    %v1544 = vunpack.c.h.s8.bf16 %v564
    %v1545 = vunpack.c.h.s8.bf16 %v565
    %v1546 = vunpack.c.h.s8.bf16 %v566
    %v1547 = vunpack.c.l.s8.bf16 %v567
    %v1548 = vunpack.c.l.s8.bf16 %v568
    %v1549 = vunpack.c.l.s8.bf16 %v569
    %v1550 = vunpack.c.l.s8.bf16 %v570
    %v1551 = vunpack.c.h.s8.bf16 %v567
    %v1552 = vunpack.c.h.s8.bf16 %v568
    %v1553 = vunpack.c.h.s8.bf16 %v569
    %v1554 = vunpack.c.h.s8.bf16 %v570
    %v1555 = vunpack.c.l.s8.bf16 %v571
    %v1556 = vunpack.c.l.s8.bf16 %v572
    %v1557 = vunpack.c.l.s8.bf16 %v573
    %v1558 = vunpack.c.l.s8.bf16 %v574
    %v1559 = vunpack.c.h.s8.bf16 %v571
    %v1560 = vunpack.c.h.s8.bf16 %v572
    %v1561 = vunpack.c.h.s8.bf16 %v573
    %v1562 = vunpack.c.h.s8.bf16 %v574
    %v1563 = vunpack.c.l.s8.bf16 %v575
    %v1564 = vunpack.c.l.s8.bf16 %v576
    %v1565 = vunpack.c.l.s8.bf16 %v577
    %v1566 = vunpack.c.l.s8.bf16 %v578
    %v1567 = vunpack.c.h.s8.bf16 %v575
    %v1568 = vunpack.c.h.s8.bf16 %v576
    %v1569 = vunpack.c.h.s8.bf16 %v577
    %v1570 = vunpack.c.h.s8.bf16 %v578
    %v1571 = vunpack.c.l.s8.bf16 %v579
    %v1572 = vunpack.c.l.s8.bf16 %v580
    %v1573 = vunpack.c.l.s8.bf16 %v581
    %v1574 = vunpack.c.l.s8.bf16 %v582
    %v1575 = vunpack.c.h.s8.bf16 %v579
    %v1576 = vunpack.c.h.s8.bf16 %v580
    %v1577 = vunpack.c.h.s8.bf16 %v581
    %v1578 = vunpack.c.h.s8.bf16 %v582
    %v1579 = vunpack.c.l.s8.bf16 %v583
    %v1580 = vunpack.c.l.s8.bf16 %v584
    %v1581 = vunpack.c.l.s8.bf16 %v585
    %v1582 = vunpack.c.l.s8.bf16 %v586
    %v1583 = vunpack.c.h.s8.bf16 %v583
    %v1584 = vunpack.c.h.s8.bf16 %v584
    %v1585 = vunpack.c.h.s8.bf16 %v585
    %v1586 = vunpack.c.h.s8.bf16 %v586
    %v1587 = vunpack.c.l.s8.bf16 %v587
    %v1588 = vunpack.c.l.s8.bf16 %v588
    %v1589 = vunpack.c.l.s8.bf16 %v589
    %v1590 = vunpack.c.l.s8.bf16 %v590
    %v1591 = vunpack.c.h.s8.bf16 %v587
    %v1592 = vunpack.c.h.s8.bf16 %v588
    %v1593 = vunpack.c.h.s8.bf16 %v589
    %v1594 = vunpack.c.h.s8.bf16 %v590
    %v1595 = vunpack.c.l.s8.bf16 %v591
    %v1596 = vunpack.c.l.s8.bf16 %v592
    %v1597 = vunpack.c.l.s8.bf16 %v593
    %v1598 = vunpack.c.l.s8.bf16 %v594
    %v1599 = vunpack.c.h.s8.bf16 %v591
    %v1600 = vunpack.c.h.s8.bf16 %v592
    %v1601 = vunpack.c.h.s8.bf16 %v593
    %v1602 = vunpack.c.h.s8.bf16 %v594
    %v1603 = vunpack.c.l.s8.bf16 %v595
    %v1604 = vunpack.c.l.s8.bf16 %v596
    %v1605 = vunpack.c.l.s8.bf16 %v597
    %v1606 = vunpack.c.l.s8.bf16 %v598
    %v1607 = vunpack.c.h.s8.bf16 %v595
    %v1608 = vunpack.c.h.s8.bf16 %v596
    %v1609 = vunpack.c.h.s8.bf16 %v597
    %v1610 = vunpack.c.h.s8.bf16 %v598
    %v1611 = vunpack.c.l.s8.bf16 %v599
    %v1612 = vunpack.c.l.s8.bf16 %v600
    %v1613 = vunpack.c.l.s8.bf16 %v601
    %v1614 = vunpack.c.l.s8.bf16 %v602
    %v1615 = vunpack.c.h.s8.bf16 %v599
    %v1616 = vunpack.c.h.s8.bf16 %v600
    %v1617 = vunpack.c.h.s8.bf16 %v601
    %v1618 = vunpack.c.h.s8.bf16 %v602
    %v1619 = vunpack.c.l.s8.bf16 %v603
    %v1620 = vunpack.c.l.s8.bf16 %v604
    %v1621 = vunpack.c.l.s8.bf16 %v605
    %v1622 = vunpack.c.l.s8.bf16 %v606
    %v1623 = vunpack.c.h.s8.bf16 %v603
    %v1624 = vunpack.c.h.s8.bf16 %v604
    %v1625 = vunpack.c.h.s8.bf16 %v605
    %v1626 = vunpack.c.h.s8.bf16 %v606
    %v1627 = vunpack.c.l.s8.bf16 %v607
    %v1628 = vunpack.c.l.s8.bf16 %v608
    %v1629 = vunpack.c.l.s8.bf16 %v609
    %v1630 = vunpack.c.l.s8.bf16 %v610
    %v1631 = vunpack.c.h.s8.bf16 %v607
    %v1632 = vunpack.c.h.s8.bf16 %v608
    %v1633 = vunpack.c.h.s8.bf16 %v609
    %v1634 = vunpack.c.h.s8.bf16 %v610
    %v1635 = vld [vmem:[#allocation2] sm:$0xff]
    %v1636 = vld [vmem:[#allocation2 + $0x8] sm:$0xff]
    %v1637 = vld [vmem:[#allocation2 + $0x10] sm:$0xff]
    %v1638 = vld [vmem:[#allocation2 + $0x18] sm:$0xff]
    %v1643 = vcombine.high %v1635, %v1635
    %v1645 = vunpack.c.l.s4 1966171168
    %v1646 = vunpack.c.0.s8 %v1645
    %v1647 = vlaneseq
    %v1648 = vshrl.u32 %v1647, 7
    %v1649 = vsub.s32 %v1646, %v1648
    %v1650 = vrot.slane %v1635, %v1649
    %v1652 = vunpack.c.l.s4 1966171168
    %v1653 = vunpack.c.0.s8 %v1652
    %v1654 = vlaneseq
    %v1655 = vshrl.u32 %v1654, 7
    %v1656 = vsub.s32 %v1653, %v1655
    %v1657 = vrot.slane %v1643, %v1656
    %v1658 = vcombine.high %v1650, %v1650
    %v1659 = vcombine.high %v1657, %v1657
    %v1661 = vunpack.c.l.s4 1966171168
    %v1662 = vunpack.c.0.s8 %v1661
    %v1663 = vlaneseq
    %v1664 = vshrl.u32 %v1663, 7
    %v1665 = vsub.s32 %v1662, %v1664
    %v1666 = vrot.slane %v1650, %v1665
    %v1668 = vunpack.c.l.s4 1966171168
    %v1669 = vunpack.c.0.s8 %v1668
    %v1670 = vlaneseq
    %v1671 = vshrl.u32 %v1670, 7
    %v1672 = vsub.s32 %v1669, %v1671
    %v1673 = vrot.slane %v1657, %v1672
    %v1675 = vunpack.c.l.s4 1966171168
    %v1676 = vunpack.c.0.s8 %v1675
    %v1677 = vlaneseq
    %v1678 = vshrl.u32 %v1677, 7
    %v1679 = vsub.s32 %v1676, %v1678
    %v1680 = vrot.slane %v1658, %v1679
    %v1682 = vunpack.c.l.s4 1966171168
    %v1683 = vunpack.c.0.s8 %v1682
    %v1684 = vlaneseq
    %v1685 = vshrl.u32 %v1684, 7
    %v1686 = vsub.s32 %v1683, %v1685
    %v1687 = vrot.slane %v1659, %v1686
    %v1688 = vcombine.high %v1666, %v1666
    %v1689 = vcombine.high %v1673, %v1673
    %v1690 = vcombine.high %v1680, %v1680
    %v1691 = vcombine.high %v1687, %v1687
    %v1692 = vcombine.high %v1636, %v1636
    %v1694 = vunpack.c.l.s4 1966171168
    %v1695 = vunpack.c.0.s8 %v1694
    %v1696 = vlaneseq
    %v1697 = vshrl.u32 %v1696, 7
    %v1698 = vsub.s32 %v1695, %v1697
    %v1699 = vrot.slane %v1636, %v1698
    %v1701 = vunpack.c.l.s4 1966171168
    %v1702 = vunpack.c.0.s8 %v1701
    %v1703 = vlaneseq
    %v1704 = vshrl.u32 %v1703, 7
    %v1705 = vsub.s32 %v1702, %v1704
    %v1706 = vrot.slane %v1692, %v1705
    %v1707 = vcombine.high %v1699, %v1699
    %v1708 = vcombine.high %v1706, %v1706
    %v1710 = vunpack.c.l.s4 1966171168
    %v1711 = vunpack.c.0.s8 %v1710
    %v1712 = vlaneseq
    %v1713 = vshrl.u32 %v1712, 7
    %v1714 = vsub.s32 %v1711, %v1713
    %v1715 = vrot.slane %v1699, %v1714
    %v1717 = vunpack.c.l.s4 1966171168
    %v1718 = vunpack.c.0.s8 %v1717
    %v1719 = vlaneseq
    %v1720 = vshrl.u32 %v1719, 7
    %v1721 = vsub.s32 %v1718, %v1720
    %v1722 = vrot.slane %v1706, %v1721
    %v1724 = vunpack.c.l.s4 1966171168
    %v1725 = vunpack.c.0.s8 %v1724
    %v1726 = vlaneseq
    %v1727 = vshrl.u32 %v1726, 7
    %v1728 = vsub.s32 %v1725, %v1727
    %v1729 = vrot.slane %v1707, %v1728
    %v1731 = vunpack.c.l.s4 1966171168
    %v1732 = vunpack.c.0.s8 %v1731
    %v1733 = vlaneseq
    %v1734 = vshrl.u32 %v1733, 7
    %v1735 = vsub.s32 %v1732, %v1734
    %v1736 = vrot.slane %v1708, %v1735
    %v1737 = vcombine.high %v1715, %v1715
    %v1738 = vcombine.high %v1722, %v1722
    %v1739 = vcombine.high %v1729, %v1729
    %v1740 = vcombine.high %v1736, %v1736
    %v1741 = vcombine.high %v1637, %v1637
    %v1743 = vunpack.c.l.s4 1966171168
    %v1744 = vunpack.c.0.s8 %v1743
    %v1745 = vlaneseq
    %v1746 = vshrl.u32 %v1745, 7
    %v1747 = vsub.s32 %v1744, %v1746
    %v1748 = vrot.slane %v1637, %v1747
    %v1750 = vunpack.c.l.s4 1966171168
    %v1751 = vunpack.c.0.s8 %v1750
    %v1752 = vlaneseq
    %v1753 = vshrl.u32 %v1752, 7
    %v1754 = vsub.s32 %v1751, %v1753
    %v1755 = vrot.slane %v1741, %v1754
    %v1756 = vcombine.high %v1748, %v1748
    %v1757 = vcombine.high %v1755, %v1755
    %v1759 = vunpack.c.l.s4 1966171168
    %v1760 = vunpack.c.0.s8 %v1759
    %v1761 = vlaneseq
    %v1762 = vshrl.u32 %v1761, 7
    %v1763 = vsub.s32 %v1760, %v1762
    %v1764 = vrot.slane %v1748, %v1763
    %v1766 = vunpack.c.l.s4 1966171168
    %v1767 = vunpack.c.0.s8 %v1766
    %v1768 = vlaneseq
    %v1769 = vshrl.u32 %v1768, 7
    %v1770 = vsub.s32 %v1767, %v1769
    %v1771 = vrot.slane %v1755, %v1770
    %v1773 = vunpack.c.l.s4 1966171168
    %v1774 = vunpack.c.0.s8 %v1773
    %v1775 = vlaneseq
    %v1776 = vshrl.u32 %v1775, 7
    %v1777 = vsub.s32 %v1774, %v1776
    %v1778 = vrot.slane %v1756, %v1777
    %v1780 = vunpack.c.l.s4 1966171168
    %v1781 = vunpack.c.0.s8 %v1780
    %v1782 = vlaneseq
    %v1783 = vshrl.u32 %v1782, 7
    %v1784 = vsub.s32 %v1781, %v1783
    %v1785 = vrot.slane %v1757, %v1784
    %v1786 = vcombine.high %v1764, %v1764
    %v1787 = vcombine.high %v1771, %v1771
    %v1788 = vcombine.high %v1778, %v1778
    %v1789 = vcombine.high %v1785, %v1785
    %v1790 = vcombine.high %v1638, %v1638
    %v1792 = vunpack.c.l.s4 1966171168
    %v1793 = vunpack.c.0.s8 %v1792
    %v1794 = vlaneseq
    %v1795 = vshrl.u32 %v1794, 7
    %v1796 = vsub.s32 %v1793, %v1795
    %v1797 = vrot.slane %v1638, %v1796
    %v1799 = vunpack.c.l.s4 1966171168
    %v1800 = vunpack.c.0.s8 %v1799
    %v1801 = vlaneseq
    %v1802 = vshrl.u32 %v1801, 7
    %v1803 = vsub.s32 %v1800, %v1802
    %v1804 = vrot.slane %v1790, %v1803
    %v1805 = vcombine.high %v1797, %v1797
    %v1806 = vcombine.high %v1804, %v1804
    %v1808 = vunpack.c.l.s4 1966171168
    %v1809 = vunpack.c.0.s8 %v1808
    %v1810 = vlaneseq
    %v1811 = vshrl.u32 %v1810, 7
    %v1812 = vsub.s32 %v1809, %v1811
    %v1813 = vrot.slane %v1797, %v1812
    %v1815 = vunpack.c.l.s4 1966171168
    %v1816 = vunpack.c.0.s8 %v1815
    %v1817 = vlaneseq
    %v1818 = vshrl.u32 %v1817, 7
    %v1819 = vsub.s32 %v1816, %v1818
    %v1820 = vrot.slane %v1804, %v1819
    %v1822 = vunpack.c.l.s4 1966171168
    %v1823 = vunpack.c.0.s8 %v1822
    %v1824 = vlaneseq
    %v1825 = vshrl.u32 %v1824, 7
    %v1826 = vsub.s32 %v1823, %v1825
    %v1827 = vrot.slane %v1805, %v1826
    %v1829 = vunpack.c.l.s4 1966171168
    %v1830 = vunpack.c.0.s8 %v1829
    %v1831 = vlaneseq
    %v1832 = vshrl.u32 %v1831, 7
    %v1833 = vsub.s32 %v1830, %v1832
    %v1834 = vrot.slane %v1806, %v1833
    %v1835 = vcombine.high %v1813, %v1813
    %v1836 = vcombine.high %v1820, %v1820
    %v1837 = vcombine.high %v1827, %v1827
    %v1838 = vcombine.high %v1834, %v1834
    %1871 = vmatprep.subr.bf16.mxu0 %v612
    %1872 = vmatpush1.bf16.msra.mxu0 %v611
    %1873 = vmatprep.subr.bf16.mxu0 %v616
    %1874 = vmatpush1.bf16.msra.mxu0 %v615
    %1875 = vmatprep.subr.bf16.mxu0 %v620
    %1876 = vmatpush1.bf16.msra.mxu0 %v619
    %1877 = vmatprep.subr.bf16.mxu0 %v624
    %1878 = vmatpush1.bf16.msra.mxu0 %v623
    %1879 = vmatprep.subr.bf16.mxu0 %v628
    %1880 = vmatpush1.bf16.msra.mxu0 %v627
    %1881 = vmatprep.subr.bf16.mxu0 %v632
    %1882 = vmatpush1.bf16.msra.mxu0 %v631
    %1883 = vmatprep.subr.bf16.mxu0 %v636
    %1884 = vmatpush1.bf16.msra.mxu0 %v635
    %1885 = vmatprep.subr.bf16.mxu0 %v640
    %1886 = vmatpush1.bf16.msra.mxu0 %v639
    %1887 = vmatprep.subr.bf16.mxu0 %v644
    %1888 = vmatpush1.bf16.msra.mxu0 %v643
    %1889 = vmatprep.subr.bf16.mxu0 %v648
    %1890 = vmatpush1.bf16.msra.mxu0 %v647
    %1891 = vmatprep.subr.bf16.mxu0 %v652
    %1892 = vmatpush1.bf16.msra.mxu0 %v651
    %1893 = vmatprep.subr.bf16.mxu0 %v656
    %1894 = vmatpush1.bf16.msra.mxu0 %v655
    %1895 = vmatprep.subr.bf16.mxu0 %v660
    %1896 = vmatpush1.bf16.msra.mxu0 %v659
    %1897 = vmatprep.subr.bf16.mxu0 %v664
    %1898 = vmatpush1.bf16.msra.mxu0 %v663
    %1899 = vmatprep.subr.bf16.mxu0 %v668
    %1900 = vmatpush1.bf16.msra.mxu0 %v667
    %1901 = vmatprep.subr.bf16.mxu0 %v672
    %1902 = vmatpush1.bf16.msra.mxu0 %v671
    %1903 = vmatprep.mubr.bf16.mxu0 %v1680
    %1904 = vmatmul.mubr.bf16.gmra.mrb[0].mxu0 %v1666
    %v1905 = vpop.f32.mrb[0].mxu0
    %v1906 = vadd.f32 0.0, %v1905
    %v1907 = vpop.f32.mrb[0].mxu0
    %v1908 = vadd.f32 0.0, %v1907
    %v1909 = vpop.f32.mrb[0].mxu0
    %v1910 = vpop.f32.mrb[0].mxu0
    %1911 = vdwg.mxu0
    %1912 = vmatprep.subr.bf16.mxu0 %v676
    %1913 = vmatpush1.bf16.msra.mxu0 %v675
    %1914 = vmatprep.subr.bf16.mxu0 %v680
    %1915 = vmatpush1.bf16.msra.mxu0 %v679
    %1916 = vmatprep.subr.bf16.mxu0 %v684
    %1917 = vmatpush1.bf16.msra.mxu0 %v683
    %1918 = vmatprep.subr.bf16.mxu0 %v688
    %1919 = vmatpush1.bf16.msra.mxu0 %v687
    %1920 = vmatprep.subr.bf16.mxu0 %v692
    %1921 = vmatpush1.bf16.msra.mxu0 %v691
    %1922 = vmatprep.subr.bf16.mxu0 %v696
    %1923 = vmatpush1.bf16.msra.mxu0 %v695
    %1924 = vmatprep.subr.bf16.mxu0 %v700
    %1925 = vmatpush1.bf16.msra.mxu0 %v699
    %1926 = vmatprep.subr.bf16.mxu0 %v704
    %1927 = vmatpush1.bf16.msra.mxu0 %v703
    %1928 = vmatprep.subr.bf16.mxu0 %v708
    %1929 = vmatpush1.bf16.msra.mxu0 %v707
    %1930 = vmatprep.subr.bf16.mxu0 %v712
    %1931 = vmatpush1.bf16.msra.mxu0 %v711
    %1932 = vmatprep.subr.bf16.mxu0 %v716
    %1933 = vmatpush1.bf16.msra.mxu0 %v715
    %1934 = vmatprep.subr.bf16.mxu0 %v720
    %1935 = vmatpush1.bf16.msra.mxu0 %v719
    %1936 = vmatprep.subr.bf16.mxu0 %v724
    %1937 = vmatpush1.bf16.msra.mxu0 %v723
    %1938 = vmatprep.subr.bf16.mxu0 %v728
    %1939 = vmatpush1.bf16.msra.mxu0 %v727
    %1940 = vmatprep.subr.bf16.mxu0 %v732
    %1941 = vmatpush1.bf16.msra.mxu0 %v731
    %1942 = vmatprep.subr.bf16.mxu0 %v736
    %1943 = vmatpush1.bf16.msra.mxu0 %v735
    %1944 = vmatprep.mubr.bf16.mxu0 %v1690
    %1945 = vmatmul.mubr.bf16.gmra.mrb[0].mxu0 %v1688
    %v1946 = vpop.f32.mrb[0].mxu0
    %v1947 = vadd.f32 %v1906, %v1946
    %v1948 = vpop.f32.mrb[0].mxu0
    %v1949 = vadd.f32 %v1908, %v1948
    %v1950 = vpop.f32.mrb[0].mxu0
    %v1951 = vpop.f32.mrb[0].mxu0
    %1952 = vdwg.mxu0
    %1953 = vmatprep.subr.bf16.mxu0 %v740
    %1954 = vmatpush1.bf16.msra.mxu0 %v739
    %1955 = vmatprep.subr.bf16.mxu0 %v744
    %1956 = vmatpush1.bf16.msra.mxu0 %v743
    %1957 = vmatprep.subr.bf16.mxu0 %v748
    %1958 = vmatpush1.bf16.msra.mxu0 %v747
    %1959 = vmatprep.subr.bf16.mxu0 %v752
    %1960 = vmatpush1.bf16.msra.mxu0 %v751
    %1961 = vmatprep.subr.bf16.mxu0 %v756
    %1962 = vmatpush1.bf16.msra.mxu0 %v755
    %1963 = vmatprep.subr.bf16.mxu0 %v760
    %1964 = vmatpush1.bf16.msra.mxu0 %v759
    %1965 = vmatprep.subr.bf16.mxu0 %v764
    %1966 = vmatpush1.bf16.msra.mxu0 %v763
    %1967 = vmatprep.subr.bf16.mxu0 %v768
    %1968 = vmatpush1.bf16.msra.mxu0 %v767
    %1969 = vmatprep.subr.bf16.mxu0 %v772
    %1970 = vmatpush1.bf16.msra.mxu0 %v771
    %1971 = vmatprep.subr.bf16.mxu0 %v776
    %1972 = vmatpush1.bf16.msra.mxu0 %v775
    %1973 = vmatprep.subr.bf16.mxu0 %v780
    %1974 = vmatpush1.bf16.msra.mxu0 %v779
    %1975 = vmatprep.subr.bf16.mxu0 %v784
    %1976 = vmatpush1.bf16.msra.mxu0 %v783
    %1977 = vmatprep.subr.bf16.mxu0 %v788
    %1978 = vmatpush1.bf16.msra.mxu0 %v787
    %1979 = vmatprep.subr.bf16.mxu0 %v792
    %1980 = vmatpush1.bf16.msra.mxu0 %v791
    %1981 = vmatprep.subr.bf16.mxu0 %v796
    %1982 = vmatpush1.bf16.msra.mxu0 %v795
    %1983 = vmatprep.subr.bf16.mxu0 %v800
    %1984 = vmatpush1.bf16.msra.mxu0 %v799
    %1985 = vmatprep.mubr.bf16.mxu0 %v1687
    %1986 = vmatmul.mubr.bf16.gmra.mrb[0].mxu0 %v1673
    %v1987 = vpop.f32.mrb[0].mxu0
    %v1988 = vadd.f32 %v1947, %v1987
    %v1989 = vpop.f32.mrb[0].mxu0
    %v1990 = vadd.f32 %v1949, %v1989
    %v1991 = vpop.f32.mrb[0].mxu0
    %v1992 = vpop.f32.mrb[0].mxu0
    %1993 = vdwg.mxu0
    %1994 = vmatprep.subr.bf16.mxu0 %v804
    %1995 = vmatpush1.bf16.msra.mxu0 %v803
    %1996 = vmatprep.subr.bf16.mxu0 %v808
    %1997 = vmatpush1.bf16.msra.mxu0 %v807
    %1998 = vmatprep.subr.bf16.mxu0 %v812
    %1999 = vmatpush1.bf16.msra.mxu0 %v811
    %2000 = vmatprep.subr.bf16.mxu0 %v816
    %2001 = vmatpush1.bf16.msra.mxu0 %v815
    %2002 = vmatprep.subr.bf16.mxu0 %v820
    %2003 = vmatpush1.bf16.msra.mxu0 %v819
    %2004 = vmatprep.subr.bf16.mxu0 %v824
    %2005 = vmatpush1.bf16.msra.mxu0 %v823
    %2006 = vmatprep.subr.bf16.mxu0 %v828
    %2007 = vmatpush1.bf16.msra.mxu0 %v827
    %2008 = vmatprep.subr.bf16.mxu0 %v832
    %2009 = vmatpush1.bf16.msra.mxu0 %v831
    %2010 = vmatprep.subr.bf16.mxu0 %v836
    %2011 = vmatpush1.bf16.msra.mxu0 %v835
    %2012 = vmatprep.subr.bf16.mxu0 %v840
    %2013 = vmatpush1.bf16.msra.mxu0 %v839
    %2014 = vmatprep.subr.bf16.mxu0 %v844
    %2015 = vmatpush1.bf16.msra.mxu0 %v843
    %2016 = vmatprep.subr.bf16.mxu0 %v848
    %2017 = vmatpush1.bf16.msra.mxu0 %v847
    %2018 = vmatprep.subr.bf16.mxu0 %v852
    %2019 = vmatpush1.bf16.msra.mxu0 %v851
    %2020 = vmatprep.subr.bf16.mxu0 %v856
    %2021 = vmatpush1.bf16.msra.mxu0 %v855
    %2022 = vmatprep.subr.bf16.mxu0 %v860
    %2023 = vmatpush1.bf16.msra.mxu0 %v859
    %2024 = vmatprep.subr.bf16.mxu0 %v864
    %2025 = vmatpush1.bf16.msra.mxu0 %v863
    %2026 = vmatprep.mubr.bf16.mxu0 %v1691
    %2027 = vmatmul.mubr.bf16.gmra.mrb[0].mxu0 %v1689
    %v2028 = vpop.f32.mrb[0].mxu0
    %v2029 = vadd.f32 %v1988, %v2028
    %v2030 = vpop.f32.mrb[0].mxu0
    %v2031 = vadd.f32 %v1990, %v2030
    %v2032 = vpop.f32.mrb[0].mxu0
    %v2033 = vpop.f32.mrb[0].mxu0
    %2034 = vdwg.mxu0
    %2035 = vmatprep.subr.bf16.mxu0 %v868
    %2036 = vmatpush1.bf16.msra.mxu0 %v867
    %2037 = vmatprep.subr.bf16.mxu0 %v872
    %2038 = vmatpush1.bf16.msra.mxu0 %v871
    %2039 = vmatprep.subr.bf16.mxu0 %v876
    %2040 = vmatpush1.bf16.msra.mxu0 %v875
    %2041 = vmatprep.subr.bf16.mxu0 %v880
    %2042 = vmatpush1.bf16.msra.mxu0 %v879
    %2043 = vmatprep.subr.bf16.mxu0 %v884
    %2044 = vmatpush1.bf16.msra.mxu0 %v883
    %2045 = vmatprep.subr.bf16.mxu0 %v888
    %2046 = vmatpush1.bf16.msra.mxu0 %v887
    %2047 = vmatprep.subr.bf16.mxu0 %v892
    %2048 = vmatpush1.bf16.msra.mxu0 %v891
    %2049 = vmatprep.subr.bf16.mxu0 %v896
    %2050 = vmatpush1.bf16.msra.mxu0 %v895
    %2051 = vmatprep.subr.bf16.mxu0 %v900
    %2052 = vmatpush1.bf16.msra.mxu0 %v899
    %2053 = vmatprep.subr.bf16.mxu0 %v904
    %2054 = vmatpush1.bf16.msra.mxu0 %v903
    %2055 = vmatprep.subr.bf16.mxu0 %v908
    %2056 = vmatpush1.bf16.msra.mxu0 %v907
    %2057 = vmatprep.subr.bf16.mxu0 %v912
    %2058 = vmatpush1.bf16.msra.mxu0 %v911
    %2059 = vmatprep.subr.bf16.mxu0 %v916
    %2060 = vmatpush1.bf16.msra.mxu0 %v915
    %2061 = vmatprep.subr.bf16.mxu0 %v920
    %2062 = vmatpush1.bf16.msra.mxu0 %v919
    %2063 = vmatprep.subr.bf16.mxu0 %v924
    %2064 = vmatpush1.bf16.msra.mxu0 %v923
    %2065 = vmatprep.subr.bf16.mxu0 %v928
    %2066 = vmatpush1.bf16.msra.mxu0 %v927
    %2067 = vmatprep.mubr.bf16.mxu0 %v1729
    %2068 = vmatmul.mubr.bf16.gmra.mrb[0].mxu0 %v1715
    %v2069 = vpop.f32.mrb[0].mxu0
    %v2070 = vadd.f32 %v2029, %v2069
    %v2071 = vpop.f32.mrb[0].mxu0
    %v2072 = vadd.f32 %v2031, %v2071
    %v2073 = vpop.f32.mrb[0].mxu0
    %v2074 = vpop.f32.mrb[0].mxu0
    %2075 = vdwg.mxu0
    %2076 = vmatprep.subr.bf16.mxu0 %v932
    %2077 = vmatpush1.bf16.msra.mxu0 %v931
    %2078 = vmatprep.subr.bf16.mxu0 %v936
    %2079 = vmatpush1.bf16.msra.mxu0 %v935
    %2080 = vmatprep.subr.bf16.mxu0 %v940
    %2081 = vmatpush1.bf16.msra.mxu0 %v939
    %2082 = vmatprep.subr.bf16.mxu0 %v944
    %2083 = vmatpush1.bf16.msra.mxu0 %v943
    %2084 = vmatprep.subr.bf16.mxu0 %v948
    %2085 = vmatpush1.bf16.msra.mxu0 %v947
    %2086 = vmatprep.subr.bf16.mxu0 %v952
    %2087 = vmatpush1.bf16.msra.mxu0 %v951
    %2088 = vmatprep.subr.bf16.mxu0 %v956
    %2089 = vmatpush1.bf16.msra.mxu0 %v955
    %2090 = vmatprep.subr.bf16.mxu0 %v960
    %2091 = vmatpush1.bf16.msra.mxu0 %v959
    %2092 = vmatprep.subr.bf16.mxu0 %v964
    %2093 = vmatpush1.bf16.msra.mxu0 %v963
    %2094 = vmatprep.subr.bf16.mxu0 %v968
    %2095 = vmatpush1.bf16.msra.mxu0 %v967
    %2096 = vmatprep.subr.bf16.mxu0 %v972
    %2097 = vmatpush1.bf16.msra.mxu0 %v971
    %2098 = vmatprep.subr.bf16.mxu0 %v976
    %2099 = vmatpush1.bf16.msra.mxu0 %v975
    %2100 = vmatprep.subr.bf16.mxu0 %v980
    %2101 = vmatpush1.bf16.msra.mxu0 %v979
    %2102 = vmatprep.subr.bf16.mxu0 %v984
    %2103 = vmatpush1.bf16.msra.mxu0 %v983
    %2104 = vmatprep.subr.bf16.mxu0 %v988
    %2105 = vmatpush1.bf16.msra.mxu0 %v987
    %2106 = vmatprep.subr.bf16.mxu0 %v992
    %2107 = vmatpush1.bf16.msra.mxu0 %v991
    %2108 = vmatprep.mubr.bf16.mxu0 %v1739
    %2109 = vmatmul.mubr.bf16.gmra.mrb[0].mxu0 %v1737
    %v2110 = vpop.f32.mrb[0].mxu0
    %v2111 = vadd.f32 %v2070, %v2110
    %v2112 = vpop.f32.mrb[0].mxu0
    %v2113 = vadd.f32 %v2072, %v2112
    %v2114 = vpop.f32.mrb[0].mxu0
    %v2115 = vpop.f32.mrb[0].mxu0
    %2116 = vdwg.mxu0
    %2117 = vmatprep.subr.bf16.mxu0 %v996
    %2118 = vmatpush1.bf16.msra.mxu0 %v995
    %2119 = vmatprep.subr.bf16.mxu0 %v1000
    %2120 = vmatpush1.bf16.msra.mxu0 %v999
    %2121 = vmatprep.subr.bf16.mxu0 %v1004
    %2122 = vmatpush1.bf16.msra.mxu0 %v1003
    %2123 = vmatprep.subr.bf16.mxu0 %v1008
    %2124 = vmatpush1.bf16.msra.mxu0 %v1007
    %2125 = vmatprep.subr.bf16.mxu0 %v1012
    %2126 = vmatpush1.bf16.msra.mxu0 %v1011
    %2127 = vmatprep.subr.bf16.mxu0 %v1016
    %2128 = vmatpush1.bf16.msra.mxu0 %v1015
    %2129 = vmatprep.subr.bf16.mxu0 %v1020
    %2130 = vmatpush1.bf16.msra.mxu0 %v1019
    %2131 = vmatprep.subr.bf16.mxu0 %v1024
    %2132 = vmatpush1.bf16.msra.mxu0 %v1023
    %2133 = vmatprep.subr.bf16.mxu0 %v1028
    %2134 = vmatpush1.bf16.msra.mxu0 %v1027
    %2135 = vmatprep.subr.bf16.mxu0 %v1032
    %2136 = vmatpush1.bf16.msra.mxu0 %v1031
    %2137 = vmatprep.subr.bf16.mxu0 %v1036
    %2138 = vmatpush1.bf16.msra.mxu0 %v1035
    %2139 = vmatprep.subr.bf16.mxu0 %v1040
    %2140 = vmatpush1.bf16.msra.mxu0 %v1039
    %2141 = vmatprep.subr.bf16.mxu0 %v1044
    %2142 = vmatpush1.bf16.msra.mxu0 %v1043
    %2143 = vmatprep.subr.bf16.mxu0 %v1048
    %2144 = vmatpush1.bf16.msra.mxu0 %v1047
    %2145 = vmatprep.subr.bf16.mxu0 %v1052
    %2146 = vmatpush1.bf16.msra.mxu0 %v1051
    %2147 = vmatprep.subr.bf16.mxu0 %v1056
    %2148 = vmatpush1.bf16.msra.mxu0 %v1055
    %2149 = vmatprep.mubr.bf16.mxu0 %v1736
    %2150 = vmatmul.mubr.bf16.gmra.mrb[0].mxu0 %v1722
    %v2151 = vpop.f32.mrb[0].mxu0
    %v2152 = vadd.f32 %v2111, %v2151
    %v2153 = vpop.f32.mrb[0].mxu0
    %v2154 = vadd.f32 %v2113, %v2153
    %v2155 = vpop.f32.mrb[0].mxu0
    %v2156 = vpop.f32.mrb[0].mxu0
    %2157 = vdwg.mxu0
    %2158 = vmatprep.subr.bf16.mxu0 %v1060
    %2159 = vmatpush1.bf16.msra.mxu0 %v1059
    %2160 = vmatprep.subr.bf16.mxu0 %v1064
    %2161 = vmatpush1.bf16.msra.mxu0 %v1063
    %2162 = vmatprep.subr.bf16.mxu0 %v1068
    %2163 = vmatpush1.bf16.msra.mxu0 %v1067
    %2164 = vmatprep.subr.bf16.mxu0 %v1072
    %2165 = vmatpush1.bf16.msra.mxu0 %v1071
    %2166 = vmatprep.subr.bf16.mxu0 %v1076
    %2167 = vmatpush1.bf16.msra.mxu0 %v1075
    %2168 = vmatprep.subr.bf16.mxu0 %v1080
    %2169 = vmatpush1.bf16.msra.mxu0 %v1079
    %2170 = vmatprep.subr.bf16.mxu0 %v1084
    %2171 = vmatpush1.bf16.msra.mxu0 %v1083
    %2172 = vmatprep.subr.bf16.mxu0 %v1088
    %2173 = vmatpush1.bf16.msra.mxu0 %v1087
    %2174 = vmatprep.subr.bf16.mxu0 %v1092
    %2175 = vmatpush1.bf16.msra.mxu0 %v1091
    %2176 = vmatprep.subr.bf16.mxu0 %v1096
    %2177 = vmatpush1.bf16.msra.mxu0 %v1095
    %2178 = vmatprep.subr.bf16.mxu0 %v1100
    %2179 = vmatpush1.bf16.msra.mxu0 %v1099
    %2180 = vmatprep.subr.bf16.mxu0 %v1104
    %2181 = vmatpush1.bf16.msra.mxu0 %v1103
    %2182 = vmatprep.subr.bf16.mxu0 %v1108
    %2183 = vmatpush1.bf16.msra.mxu0 %v1107
    %2184 = vmatprep.subr.bf16.mxu0 %v1112
    %2185 = vmatpush1.bf16.msra.mxu0 %v1111
    %2186 = vmatprep.subr.bf16.mxu0 %v1116
    %2187 = vmatpush1.bf16.msra.mxu0 %v1115
    %2188 = vmatprep.subr.bf16.mxu0 %v1120
    %2189 = vmatpush1.bf16.msra.mxu0 %v1119
    %2190 = vmatprep.mubr.bf16.mxu0 %v1740
    %2191 = vmatmul.mubr.bf16.gmra.mrb[0].mxu0 %v1738
    %v2192 = vpop.f32.mrb[0].mxu0
    %v2193 = vadd.f32 %v2152, %v2192
    %v2194 = vpop.f32.mrb[0].mxu0
    %v2195 = vadd.f32 %v2154, %v2194
    %v2196 = vpop.f32.mrb[0].mxu0
    %v2197 = vpop.f32.mrb[0].mxu0
    %2198 = vdwg.mxu0
    %2199 = vmatprep.subr.bf16.mxu0 %v1124
    %2200 = vmatpush1.bf16.msra.mxu0 %v1123
    %2201 = vmatprep.subr.bf16.mxu0 %v1128
    %2202 = vmatpush1.bf16.msra.mxu0 %v1127
    %2203 = vmatprep.subr.bf16.mxu0 %v1132
    %2204 = vmatpush1.bf16.msra.mxu0 %v1131
    %2205 = vmatprep.subr.bf16.mxu0 %v1136
    %2206 = vmatpush1.bf16.msra.mxu0 %v1135
    %2207 = vmatprep.subr.bf16.mxu0 %v1140
    %2208 = vmatpush1.bf16.msra.mxu0 %v1139
    %2209 = vmatprep.subr.bf16.mxu0 %v1144
    %2210 = vmatpush1.bf16.msra.mxu0 %v1143
    %2211 = vmatprep.subr.bf16.mxu0 %v1148
    %2212 = vmatpush1.bf16.msra.mxu0 %v1147
    %2213 = vmatprep.subr.bf16.mxu0 %v1152
    %2214 = vmatpush1.bf16.msra.mxu0 %v1151
    %2215 = vmatprep.subr.bf16.mxu0 %v1156
    %2216 = vmatpush1.bf16.msra.mxu0 %v1155
    %2217 = vmatprep.subr.bf16.mxu0 %v1160
    %2218 = vmatpush1.bf16.msra.mxu0 %v1159
    %2219 = vmatprep.subr.bf16.mxu0 %v1164
    %2220 = vmatpush1.bf16.msra.mxu0 %v1163
    %2221 = vmatprep.subr.bf16.mxu0 %v1168
    %2222 = vmatpush1.bf16.msra.mxu0 %v1167
    %2223 = vmatprep.subr.bf16.mxu0 %v1172
    %2224 = vmatpush1.bf16.msra.mxu0 %v1171
    %2225 = vmatprep.subr.bf16.mxu0 %v1176
    %2226 = vmatpush1.bf16.msra.mxu0 %v1175
    %2227 = vmatprep.subr.bf16.mxu0 %v1180
    %2228 = vmatpush1.bf16.msra.mxu0 %v1179
    %2229 = vmatprep.subr.bf16.mxu0 %v1184
    %2230 = vmatpush1.bf16.msra.mxu0 %v1183
    %2231 = vmatprep.mubr.bf16.mxu0 %v1778
    %2232 = vmatmul.mubr.bf16.gmra.mrb[0].mxu0 %v1764
    %v2233 = vpop.f32.mrb[0].mxu0
    %v2234 = vadd.f32 %v2193, %v2233
    %v2235 = vpop.f32.mrb[0].mxu0
    %v2236 = vadd.f32 %v2195, %v2235
    %v2237 = vpop.f32.mrb[0].mxu0
    %v2238 = vpop.f32.mrb[0].mxu0
    %2239 = vdwg.mxu0
    %2240 = vmatprep.subr.bf16.mxu0 %v1188
    %2241 = vmatpush1.bf16.msra.mxu0 %v1187
    %2242 = vmatprep.subr.bf16.mxu0 %v1192
    %2243 = vmatpush1.bf16.msra.mxu0 %v1191
    %2244 = vmatprep.subr.bf16.mxu0 %v1196
    %2245 = vmatpush1.bf16.msra.mxu0 %v1195
    %2246 = vmatprep.subr.bf16.mxu0 %v1200
    %2247 = vmatpush1.bf16.msra.mxu0 %v1199
    %2248 = vmatprep.subr.bf16.mxu0 %v1204
    %2249 = vmatpush1.bf16.msra.mxu0 %v1203
    %2250 = vmatprep.subr.bf16.mxu0 %v1208
    %2251 = vmatpush1.bf16.msra.mxu0 %v1207
    %2252 = vmatprep.subr.bf16.mxu0 %v1212
    %2253 = vmatpush1.bf16.msra.mxu0 %v1211
    %2254 = vmatprep.subr.bf16.mxu0 %v1216
    %2255 = vmatpush1.bf16.msra.mxu0 %v1215
    %2256 = vmatprep.subr.bf16.mxu0 %v1220
    %2257 = vmatpush1.bf16.msra.mxu0 %v1219
    %2258 = vmatprep.subr.bf16.mxu0 %v1224
    %2259 = vmatpush1.bf16.msra.mxu0 %v1223
    %2260 = vmatprep.subr.bf16.mxu0 %v1228
    %2261 = vmatpush1.bf16.msra.mxu0 %v1227
    %2262 = vmatprep.subr.bf16.mxu0 %v1232
    %2263 = vmatpush1.bf16.msra.mxu0 %v1231
    %2264 = vmatprep.subr.bf16.mxu0 %v1236
    %2265 = vmatpush1.bf16.msra.mxu0 %v1235
    %2266 = vmatprep.subr.bf16.mxu0 %v1240
    %2267 = vmatpush1.bf16.msra.mxu0 %v1239
    %2268 = vmatprep.subr.bf16.mxu0 %v1244
    %2269 = vmatpush1.bf16.msra.mxu0 %v1243
    %2270 = vmatprep.subr.bf16.mxu0 %v1248
    %2271 = vmatpush1.bf16.msra.mxu0 %v1247
    %2272 = vmatprep.mubr.bf16.mxu0 %v1788
    %2273 = vmatmul.mubr.bf16.gmra.mrb[0].mxu0 %v1786
    %v2274 = vpop.f32.mrb[0].mxu0
    %v2275 = vadd.f32 %v2234, %v2274
    %v2276 = vpop.f32.mrb[0].mxu0
    %v2277 = vadd.f32 %v2236, %v2276
    %v2278 = vpop.f32.mrb[0].mxu0
    %v2279 = vpop.f32.mrb[0].mxu0
    %2280 = vdwg.mxu0
    %2281 = vmatprep.subr.bf16.mxu0 %v1252
    %2282 = vmatpush1.bf16.msra.mxu0 %v1251
    %2283 = vmatprep.subr.bf16.mxu0 %v1256
    %2284 = vmatpush1.bf16.msra.mxu0 %v1255
    %2285 = vmatprep.subr.bf16.mxu0 %v1260
    %2286 = vmatpush1.bf16.msra.mxu0 %v1259
    %2287 = vmatprep.subr.bf16.mxu0 %v1264
    %2288 = vmatpush1.bf16.msra.mxu0 %v1263
    %2289 = vmatprep.subr.bf16.mxu0 %v1268
    %2290 = vmatpush1.bf16.msra.mxu0 %v1267
    %2291 = vmatprep.subr.bf16.mxu0 %v1272
    %2292 = vmatpush1.bf16.msra.mxu0 %v1271
    %2293 = vmatprep.subr.bf16.mxu0 %v1276
    %2294 = vmatpush1.bf16.msra.mxu0 %v1275
    %2295 = vmatprep.subr.bf16.mxu0 %v1280
    %2296 = vmatpush1.bf16.msra.mxu0 %v1279
    %2297 = vmatprep.subr.bf16.mxu0 %v1284
    %2298 = vmatpush1.bf16.msra.mxu0 %v1283
    %2299 = vmatprep.subr.bf16.mxu0 %v1288
    %2300 = vmatpush1.bf16.msra.mxu0 %v1287
    %2301 = vmatprep.subr.bf16.mxu0 %v1292
    %2302 = vmatpush1.bf16.msra.mxu0 %v1291
    %2303 = vmatprep.subr.bf16.mxu0 %v1296
    %2304 = vmatpush1.bf16.msra.mxu0 %v1295
    %2305 = vmatprep.subr.bf16.mxu0 %v1300
    %2306 = vmatpush1.bf16.msra.mxu0 %v1299
    %2307 = vmatprep.subr.bf16.mxu0 %v1304
    %2308 = vmatpush1.bf16.msra.mxu0 %v1303
    %2309 = vmatprep.subr.bf16.mxu0 %v1308
    %2310 = vmatpush1.bf16.msra.mxu0 %v1307
    %2311 = vmatprep.subr.bf16.mxu0 %v1312
    %2312 = vmatpush1.bf16.msra.mxu0 %v1311
    %2313 = vmatprep.mubr.bf16.mxu0 %v1785
    %2314 = vmatmul.mubr.bf16.gmra.mrb[0].mxu0 %v1771
    %v2315 = vpop.f32.mrb[0].mxu0
    %v2316 = vadd.f32 %v2275, %v2315
    %v2317 = vpop.f32.mrb[0].mxu0
    %v2318 = vadd.f32 %v2277, %v2317
    %v2319 = vpop.f32.mrb[0].mxu0
    %v2320 = vpop.f32.mrb[0].mxu0
    %2321 = vdwg.mxu0
    %2322 = vmatprep.subr.bf16.mxu0 %v1316
    %2323 = vmatpush1.bf16.msra.mxu0 %v1315
    %2324 = vmatprep.subr.bf16.mxu0 %v1320
    %2325 = vmatpush1.bf16.msra.mxu0 %v1319
    %2326 = vmatprep.subr.bf16.mxu0 %v1324
    %2327 = vmatpush1.bf16.msra.mxu0 %v1323
    %2328 = vmatprep.subr.bf16.mxu0 %v1328
    %2329 = vmatpush1.bf16.msra.mxu0 %v1327
    %2330 = vmatprep.subr.bf16.mxu0 %v1332
    %2331 = vmatpush1.bf16.msra.mxu0 %v1331
    %2332 = vmatprep.subr.bf16.mxu0 %v1336
    %2333 = vmatpush1.bf16.msra.mxu0 %v1335
    %2334 = vmatprep.subr.bf16.mxu0 %v1340
    %2335 = vmatpush1.bf16.msra.mxu0 %v1339
    %2336 = vmatprep.subr.bf16.mxu0 %v1344
    %2337 = vmatpush1.bf16.msra.mxu0 %v1343
    %2338 = vmatprep.subr.bf16.mxu0 %v1348
    %2339 = vmatpush1.bf16.msra.mxu0 %v1347
    %2340 = vmatprep.subr.bf16.mxu0 %v1352
    %2341 = vmatpush1.bf16.msra.mxu0 %v1351
    %2342 = vmatprep.subr.bf16.mxu0 %v1356
    %2343 = vmatpush1.bf16.msra.mxu0 %v1355
    %2344 = vmatprep.subr.bf16.mxu0 %v1360
    %2345 = vmatpush1.bf16.msra.mxu0 %v1359
    %2346 = vmatprep.subr.bf16.mxu0 %v1364
    %2347 = vmatpush1.bf16.msra.mxu0 %v1363
    %2348 = vmatprep.subr.bf16.mxu0 %v1368
    %2349 = vmatpush1.bf16.msra.mxu0 %v1367
    %2350 = vmatprep.subr.bf16.mxu0 %v1372
    %2351 = vmatpush1.bf16.msra.mxu0 %v1371
    %2352 = vmatprep.subr.bf16.mxu0 %v1376
    %2353 = vmatpush1.bf16.msra.mxu0 %v1375
    %2354 = vmatprep.mubr.bf16.mxu0 %v1789
    %2355 = vmatmul.mubr.bf16.gmra.mrb[0].mxu0 %v1787
    %v2356 = vpop.f32.mrb[0].mxu0
    %v2357 = vadd.f32 %v2316, %v2356
    %v2358 = vpop.f32.mrb[0].mxu0
    %v2359 = vadd.f32 %v2318, %v2358
    %v2360 = vpop.f32.mrb[0].mxu0
    %v2361 = vpop.f32.mrb[0].mxu0
    %2362 = vdwg.mxu0
    %2363 = vmatprep.subr.bf16.mxu0 %v1380
    %2364 = vmatpush1.bf16.msra.mxu0 %v1379
    %2365 = vmatprep.subr.bf16.mxu0 %v1384
    %2366 = vmatpush1.bf16.msra.mxu0 %v1383
    %2367 = vmatprep.subr.bf16.mxu0 %v1388
    %2368 = vmatpush1.bf16.msra.mxu0 %v1387
    %2369 = vmatprep.subr.bf16.mxu0 %v1392
    %2370 = vmatpush1.bf16.msra.mxu0 %v1391
    %2371 = vmatprep.subr.bf16.mxu0 %v1396
    %2372 = vmatpush1.bf16.msra.mxu0 %v1395
    %2373 = vmatprep.subr.bf16.mxu0 %v1400
    %2374 = vmatpush1.bf16.msra.mxu0 %v1399
    %2375 = vmatprep.subr.bf16.mxu0 %v1404
    %2376 = vmatpush1.bf16.msra.mxu0 %v1403
    %2377 = vmatprep.subr.bf16.mxu0 %v1408
    %2378 = vmatpush1.bf16.msra.mxu0 %v1407
    %2379 = vmatprep.subr.bf16.mxu0 %v1412
    %2380 = vmatpush1.bf16.msra.mxu0 %v1411
    %2381 = vmatprep.subr.bf16.mxu0 %v1416
    %2382 = vmatpush1.bf16.msra.mxu0 %v1415
    %2383 = vmatprep.subr.bf16.mxu0 %v1420
    %2384 = vmatpush1.bf16.msra.mxu0 %v1419
    %2385 = vmatprep.subr.bf16.mxu0 %v1424
    %2386 = vmatpush1.bf16.msra.mxu0 %v1423
    %2387 = vmatprep.subr.bf16.mxu0 %v1428
    %2388 = vmatpush1.bf16.msra.mxu0 %v1427
    %2389 = vmatprep.subr.bf16.mxu0 %v1432
    %2390 = vmatpush1.bf16.msra.mxu0 %v1431
    %2391 = vmatprep.subr.bf16.mxu0 %v1436
    %2392 = vmatpush1.bf16.msra.mxu0 %v1435
    %2393 = vmatprep.subr.bf16.mxu0 %v1440
    %2394 = vmatpush1.bf16.msra.mxu0 %v1439
    %2395 = vmatprep.mubr.bf16.mxu0 %v1827
    %2396 = vmatmul.mubr.bf16.gmra.mrb[0].mxu0 %v1813
    %v2397 = vpop.f32.mrb[0].mxu0
    %v2398 = vadd.f32 %v2357, %v2397
    %v2399 = vpop.f32.mrb[0].mxu0
    %v2400 = vadd.f32 %v2359, %v2399
    %v2401 = vpop.f32.mrb[0].mxu0
    %v2402 = vpop.f32.mrb[0].mxu0
    %2403 = vdwg.mxu0
    %2404 = vmatprep.subr.bf16.mxu0 %v1444
    %2405 = vmatpush1.bf16.msra.mxu0 %v1443
    %2406 = vmatprep.subr.bf16.mxu0 %v1448
    %2407 = vmatpush1.bf16.msra.mxu0 %v1447
    %2408 = vmatprep.subr.bf16.mxu0 %v1452
    %2409 = vmatpush1.bf16.msra.mxu0 %v1451
    %2410 = vmatprep.subr.bf16.mxu0 %v1456
    %2411 = vmatpush1.bf16.msra.mxu0 %v1455
    %2412 = vmatprep.subr.bf16.mxu0 %v1460
    %2413 = vmatpush1.bf16.msra.mxu0 %v1459
    %2414 = vmatprep.subr.bf16.mxu0 %v1464
    %2415 = vmatpush1.bf16.msra.mxu0 %v1463
    %2416 = vmatprep.subr.bf16.mxu0 %v1468
    %2417 = vmatpush1.bf16.msra.mxu0 %v1467
    %2418 = vmatprep.subr.bf16.mxu0 %v1472
    %2419 = vmatpush1.bf16.msra.mxu0 %v1471
    %2420 = vmatprep.subr.bf16.mxu0 %v1476
    %2421 = vmatpush1.bf16.msra.mxu0 %v1475
    %2422 = vmatprep.subr.bf16.mxu0 %v1480
    %2423 = vmatpush1.bf16.msra.mxu0 %v1479
    %2424 = vmatprep.subr.bf16.mxu0 %v1484
    %2425 = vmatpush1.bf16.msra.mxu0 %v1483
    %2426 = vmatprep.subr.bf16.mxu0 %v1488
    %2427 = vmatpush1.bf16.msra.mxu0 %v1487
    %2428 = vmatprep.subr.bf16.mxu0 %v1492
    %2429 = vmatpush1.bf16.msra.mxu0 %v1491
    %2430 = vmatprep.subr.bf16.mxu0 %v1496
    %2431 = vmatpush1.bf16.msra.mxu0 %v1495
    %2432 = vmatprep.subr.bf16.mxu0 %v1500
    %2433 = vmatpush1.bf16.msra.mxu0 %v1499
    %2434 = vmatprep.subr.bf16.mxu0 %v1504
    %2435 = vmatpush1.bf16.msra.mxu0 %v1503
    %2436 = vmatprep.mubr.bf16.mxu0 %v1837
    %2437 = vmatmul.mubr.bf16.gmra.mrb[0].mxu0 %v1835
    %v2438 = vpop.f32.mrb[0].mxu0
    %v2439 = vadd.f32 %v2398, %v2438
    %v2440 = vpop.f32.mrb[0].mxu0
    %v2441 = vadd.f32 %v2400, %v2440
    %v2442 = vpop.f32.mrb[0].mxu0
    %v2443 = vpop.f32.mrb[0].mxu0
    %2444 = vdwg.mxu0
    %2445 = vmatprep.subr.bf16.mxu0 %v1508
    %2446 = vmatpush1.bf16.msra.mxu0 %v1507
    %2447 = vmatprep.subr.bf16.mxu0 %v1512
    %2448 = vmatpush1.bf16.msra.mxu0 %v1511
    %2449 = vmatprep.subr.bf16.mxu0 %v1516
    %2450 = vmatpush1.bf16.msra.mxu0 %v1515
    %2451 = vmatprep.subr.bf16.mxu0 %v1520
    %2452 = vmatpush1.bf16.msra.mxu0 %v1519
    %2453 = vmatprep.subr.bf16.mxu0 %v1524
    %2454 = vmatpush1.bf16.msra.mxu0 %v1523
    %2455 = vmatprep.subr.bf16.mxu0 %v1528
    %2456 = vmatpush1.bf16.msra.mxu0 %v1527
    %2457 = vmatprep.subr.bf16.mxu0 %v1532
    %2458 = vmatpush1.bf16.msra.mxu0 %v1531
    %2459 = vmatprep.subr.bf16.mxu0 %v1536
    %2460 = vmatpush1.bf16.msra.mxu0 %v1535
    %2461 = vmatprep.subr.bf16.mxu0 %v1540
    %2462 = vmatpush1.bf16.msra.mxu0 %v1539
    %2463 = vmatprep.subr.bf16.mxu0 %v1544
    %2464 = vmatpush1.bf16.msra.mxu0 %v1543
    %2465 = vmatprep.subr.bf16.mxu0 %v1548
    %2466 = vmatpush1.bf16.msra.mxu0 %v1547
    %2467 = vmatprep.subr.bf16.mxu0 %v1552
    %2468 = vmatpush1.bf16.msra.mxu0 %v1551
    %2469 = vmatprep.subr.bf16.mxu0 %v1556
    %2470 = vmatpush1.bf16.msra.mxu0 %v1555
    %2471 = vmatprep.subr.bf16.mxu0 %v1560
    %2472 = vmatpush1.bf16.msra.mxu0 %v1559
    %2473 = vmatprep.subr.bf16.mxu0 %v1564
    %2474 = vmatpush1.bf16.msra.mxu0 %v1563
    %2475 = vmatprep.subr.bf16.mxu0 %v1568
    %2476 = vmatpush1.bf16.msra.mxu0 %v1567
    %2477 = vmatprep.mubr.bf16.mxu0 %v1834
    %2478 = vmatmul.mubr.bf16.gmra.mrb[0].mxu0 %v1820
    %v2479 = vpop.f32.mrb[0].mxu0
    %v2480 = vadd.f32 %v2439, %v2479
    %v2481 = vpop.f32.mrb[0].mxu0
    %v2482 = vadd.f32 %v2441, %v2481
    %v2483 = vpop.f32.mrb[0].mxu0
    %v2484 = vpop.f32.mrb[0].mxu0
    %2485 = vdwg.mxu0
    %2486 = vmatprep.subr.bf16.mxu0 %v1572
    %2487 = vmatpush1.bf16.msra.mxu0 %v1571
    %2488 = vmatprep.subr.bf16.mxu0 %v1576
    %2489 = vmatpush1.bf16.msra.mxu0 %v1575
    %2490 = vmatprep.subr.bf16.mxu0 %v1580
    %2491 = vmatpush1.bf16.msra.mxu0 %v1579
    %2492 = vmatprep.subr.bf16.mxu0 %v1584
    %2493 = vmatpush1.bf16.msra.mxu0 %v1583
    %2494 = vmatprep.subr.bf16.mxu0 %v1588
    %2495 = vmatpush1.bf16.msra.mxu0 %v1587
    %2496 = vmatprep.subr.bf16.mxu0 %v1592
    %2497 = vmatpush1.bf16.msra.mxu0 %v1591
    %2498 = vmatprep.subr.bf16.mxu0 %v1596
    %2499 = vmatpush1.bf16.msra.mxu0 %v1595
    %2500 = vmatprep.subr.bf16.mxu0 %v1600
    %2501 = vmatpush1.bf16.msra.mxu0 %v1599
    %2502 = vmatprep.subr.bf16.mxu0 %v1604
    %2503 = vmatpush1.bf16.msra.mxu0 %v1603
    %2504 = vmatprep.subr.bf16.mxu0 %v1608
    %2505 = vmatpush1.bf16.msra.mxu0 %v1607
    %2506 = vmatprep.subr.bf16.mxu0 %v1612
    %2507 = vmatpush1.bf16.msra.mxu0 %v1611
    %2508 = vmatprep.subr.bf16.mxu0 %v1616
    %2509 = vmatpush1.bf16.msra.mxu0 %v1615
    %2510 = vmatprep.subr.bf16.mxu0 %v1620
    %2511 = vmatpush1.bf16.msra.mxu0 %v1619
    %2512 = vmatprep.subr.bf16.mxu0 %v1624
    %2513 = vmatpush1.bf16.msra.mxu0 %v1623
    %2514 = vmatprep.subr.bf16.mxu0 %v1628
    %2515 = vmatpush1.bf16.msra.mxu0 %v1627
    %2516 = vmatprep.subr.bf16.mxu0 %v1632
    %2517 = vmatpush1.bf16.msra.mxu0 %v1631
    %2518 = vmatprep.mubr.bf16.mxu0 %v1838
    %2519 = vmatmul.mubr.bf16.gmra.mrb[0].mxu0 %v1836
    %v2520 = vpop.f32.mrb[0].mxu0
    %v2521 = vadd.f32 %v2480, %v2520
    %v2522 = vpop.f32.mrb[0].mxu0
    %v2523 = vadd.f32 %v2482, %v2522
    %v2524 = vpop.f32.mrb[0].mxu0
    %v2525 = vpop.f32.mrb[0].mxu0
    %2526 = vdwg.mxu0
    %2527 = vmatprep.subr.bf16.mxu0 %v614
    %2528 = vmatpush1.bf16.msra.mxu0 %v613
    %2529 = vmatprep.subr.bf16.mxu0 %v618
    %2530 = vmatpush1.bf16.msra.mxu0 %v617
    %2531 = vmatprep.subr.bf16.mxu0 %v622
    %2532 = vmatpush1.bf16.msra.mxu0 %v621
    %2533 = vmatprep.subr.bf16.mxu0 %v626
    %2534 = vmatpush1.bf16.msra.mxu0 %v625
    %2535 = vmatprep.subr.bf16.mxu0 %v630
    %2536 = vmatpush1.bf16.msra.mxu0 %v629
    %2537 = vmatprep.subr.bf16.mxu0 %v634
    %2538 = vmatpush1.bf16.msra.mxu0 %v633
    %2539 = vmatprep.subr.bf16.mxu0 %v638
    %2540 = vmatpush1.bf16.msra.mxu0 %v637
    %2541 = vmatprep.subr.bf16.mxu0 %v642
    %2542 = vmatpush1.bf16.msra.mxu0 %v641
    %2543 = vmatprep.subr.bf16.mxu0 %v646
    %2544 = vmatpush1.bf16.msra.mxu0 %v645
    %2545 = vmatprep.subr.bf16.mxu0 %v650
    %2546 = vmatpush1.bf16.msra.mxu0 %v649
    %2547 = vmatprep.subr.bf16.mxu0 %v654
    %2548 = vmatpush1.bf16.msra.mxu0 %v653
    %2549 = vmatprep.subr.bf16.mxu0 %v658
    %2550 = vmatpush1.bf16.msra.mxu0 %v657
    %2551 = vmatprep.subr.bf16.mxu0 %v662
    %2552 = vmatpush1.bf16.msra.mxu0 %v661
    %2553 = vmatprep.subr.bf16.mxu0 %v666
    %2554 = vmatpush1.bf16.msra.mxu0 %v665
    %2555 = vmatprep.subr.bf16.mxu0 %v670
    %2556 = vmatpush1.bf16.msra.mxu0 %v669
    %2557 = vmatprep.subr.bf16.mxu0 %v674
    %2558 = vmatpush1.bf16.msra.mxu0 %v673
    %2559 = vmatprep.mubr.bf16.mxu0 %v1680
    %2560 = vmatmul.mubr.bf16.gmra.mrb[0].mxu0 %v1666
    %v2561 = vpop.f32.mrb[0].mxu0
    %v2562 = vadd.f32 0.0, %v2561
    %v2563 = vpop.f32.mrb[0].mxu0
    %v2564 = vadd.f32 0.0, %v2563
    %v2565 = vpop.f32.mrb[0].mxu0
    %v2566 = vpop.f32.mrb[0].mxu0
    %2567 = vdwg.mxu0
    %2568 = vmatprep.subr.bf16.mxu0 %v678
    %2569 = vmatpush1.bf16.msra.mxu0 %v677
    %2570 = vmatprep.subr.bf16.mxu0 %v682
    %2571 = vmatpush1.bf16.msra.mxu0 %v681
    %2572 = vmatprep.subr.bf16.mxu0 %v686
    %2573 = vmatpush1.bf16.msra.mxu0 %v685
    %2574 = vmatprep.subr.bf16.mxu0 %v690
    %2575 = vmatpush1.bf16.msra.mxu0 %v689
    %2576 = vmatprep.subr.bf16.mxu0 %v694
    %2577 = vmatpush1.bf16.msra.mxu0 %v693
    %2578 = vmatprep.subr.bf16.mxu0 %v698
    %2579 = vmatpush1.bf16.msra.mxu0 %v697
    %2580 = vmatprep.subr.bf16.mxu0 %v702
    %2581 = vmatpush1.bf16.msra.mxu0 %v701
    %2582 = vmatprep.subr.bf16.mxu0 %v706
    %2583 = vmatpush1.bf16.msra.mxu0 %v705
    %2584 = vmatprep.subr.bf16.mxu0 %v710
    %2585 = vmatpush1.bf16.msra.mxu0 %v709
    %2586 = vmatprep.subr.bf16.mxu0 %v714
    %2587 = vmatpush1.bf16.msra.mxu0 %v713
    %2588 = vmatprep.subr.bf16.mxu0 %v718
    %2589 = vmatpush1.bf16.msra.mxu0 %v717
    %2590 = vmatprep.subr.bf16.mxu0 %v722
    %2591 = vmatpush1.bf16.msra.mxu0 %v721
    %2592 = vmatprep.subr.bf16.mxu0 %v726
    %2593 = vmatpush1.bf16.msra.mxu0 %v725
    %2594 = vmatprep.subr.bf16.mxu0 %v730
    %2595 = vmatpush1.bf16.msra.mxu0 %v729
    %2596 = vmatprep.subr.bf16.mxu0 %v734
    %2597 = vmatpush1.bf16.msra.mxu0 %v733
    %2598 = vmatprep.subr.bf16.mxu0 %v738
    %2599 = vmatpush1.bf16.msra.mxu0 %v737
    %2600 = vmatprep.mubr.bf16.mxu0 %v1690
    %2601 = vmatmul.mubr.bf16.gmra.mrb[0].mxu0 %v1688
    %v2602 = vpop.f32.mrb[0].mxu0
    %v2603 = vadd.f32 %v2562, %v2602
    %v2604 = vpop.f32.mrb[0].mxu0
    %v2605 = vadd.f32 %v2564, %v2604
    %v2606 = vpop.f32.mrb[0].mxu0
    %v2607 = vpop.f32.mrb[0].mxu0
    %2608 = vdwg.mxu0
    %2609 = vmatprep.subr.bf16.mxu0 %v742
    %2610 = vmatpush1.bf16.msra.mxu0 %v741
    %2611 = vmatprep.subr.bf16.mxu0 %v746
    %2612 = vmatpush1.bf16.msra.mxu0 %v745
    %2613 = vmatprep.subr.bf16.mxu0 %v750
    %2614 = vmatpush1.bf16.msra.mxu0 %v749
    %2615 = vmatprep.subr.bf16.mxu0 %v754
    %2616 = vmatpush1.bf16.msra.mxu0 %v753
    %2617 = vmatprep.subr.bf16.mxu0 %v758
    %2618 = vmatpush1.bf16.msra.mxu0 %v757
    %2619 = vmatprep.subr.bf16.mxu0 %v762
    %2620 = vmatpush1.bf16.msra.mxu0 %v761
    %2621 = vmatprep.subr.bf16.mxu0 %v766
    %2622 = vmatpush1.bf16.msra.mxu0 %v765
    %2623 = vmatprep.subr.bf16.mxu0 %v770
    %2624 = vmatpush1.bf16.msra.mxu0 %v769
    %2625 = vmatprep.subr.bf16.mxu0 %v774
    %2626 = vmatpush1.bf16.msra.mxu0 %v773
    %2627 = vmatprep.subr.bf16.mxu0 %v778
    %2628 = vmatpush1.bf16.msra.mxu0 %v777
    %2629 = vmatprep.subr.bf16.mxu0 %v782
    %2630 = vmatpush1.bf16.msra.mxu0 %v781
    %2631 = vmatprep.subr.bf16.mxu0 %v786
    %2632 = vmatpush1.bf16.msra.mxu0 %v785
    %2633 = vmatprep.subr.bf16.mxu0 %v790
    %2634 = vmatpush1.bf16.msra.mxu0 %v789
    %2635 = vmatprep.subr.bf16.mxu0 %v794
    %2636 = vmatpush1.bf16.msra.mxu0 %v793
    %2637 = vmatprep.subr.bf16.mxu0 %v798
    %2638 = vmatpush1.bf16.msra.mxu0 %v797
    %2639 = vmatprep.subr.bf16.mxu0 %v802
    %2640 = vmatpush1.bf16.msra.mxu0 %v801
    %2641 = vmatprep.mubr.bf16.mxu0 %v1687
    %2642 = vmatmul.mubr.bf16.gmra.mrb[0].mxu0 %v1673
    %v2643 = vpop.f32.mrb[0].mxu0
    %v2644 = vadd.f32 %v2603, %v2643
    %v2645 = vpop.f32.mrb[0].mxu0
    %v2646 = vadd.f32 %v2605, %v2645
    %v2647 = vpop.f32.mrb[0].mxu0
    %v2648 = vpop.f32.mrb[0].mxu0
    %2649 = vdwg.mxu0
    %2650 = vmatprep.subr.bf16.mxu0 %v806
    %2651 = vmatpush1.bf16.msra.mxu0 %v805
    %2652 = vmatprep.subr.bf16.mxu0 %v810
    %2653 = vmatpush1.bf16.msra.mxu0 %v809
    %2654 = vmatprep.subr.bf16.mxu0 %v814
    %2655 = vmatpush1.bf16.msra.mxu0 %v813
    %2656 = vmatprep.subr.bf16.mxu0 %v818
    %2657 = vmatpush1.bf16.msra.mxu0 %v817
    %2658 = vmatprep.subr.bf16.mxu0 %v822
    %2659 = vmatpush1.bf16.msra.mxu0 %v821
    %2660 = vmatprep.subr.bf16.mxu0 %v826
    %2661 = vmatpush1.bf16.msra.mxu0 %v825
    %2662 = vmatprep.subr.bf16.mxu0 %v830
    %2663 = vmatpush1.bf16.msra.mxu0 %v829
    %2664 = vmatprep.subr.bf16.mxu0 %v834
    %2665 = vmatpush1.bf16.msra.mxu0 %v833
    %2666 = vmatprep.subr.bf16.mxu0 %v838
    %2667 = vmatpush1.bf16.msra.mxu0 %v837
    %2668 = vmatprep.subr.bf16.mxu0 %v842
    %2669 = vmatpush1.bf16.msra.mxu0 %v841
    %2670 = vmatprep.subr.bf16.mxu0 %v846
    %2671 = vmatpush1.bf16.msra.mxu0 %v845
    %2672 = vmatprep.subr.bf16.mxu0 %v850
    %2673 = vmatpush1.bf16.msra.mxu0 %v849
    %2674 = vmatprep.subr.bf16.mxu0 %v854
    %2675 = vmatpush1.bf16.msra.mxu0 %v853
    %2676 = vmatprep.subr.bf16.mxu0 %v858
    %2677 = vmatpush1.bf16.msra.mxu0 %v857
    %2678 = vmatprep.subr.bf16.mxu0 %v862
    %2679 = vmatpush1.bf16.msra.mxu0 %v861
    %2680 = vmatprep.subr.bf16.mxu0 %v866
    %2681 = vmatpush1.bf16.msra.mxu0 %v865
    %2682 = vmatprep.mubr.bf16.mxu0 %v1691
    %2683 = vmatmul.mubr.bf16.gmra.mrb[0].mxu0 %v1689
    %v2684 = vpop.f32.mrb[0].mxu0
    %v2685 = vadd.f32 %v2644, %v2684
    %v2686 = vpop.f32.mrb[0].mxu0
    %v2687 = vadd.f32 %v2646, %v2686
    %v2688 = vpop.f32.mrb[0].mxu0
    %v2689 = vpop.f32.mrb[0].mxu0
    %2690 = vdwg.mxu0
    %2691 = vmatprep.subr.bf16.mxu0 %v870
    %2692 = vmatpush1.bf16.msra.mxu0 %v869
    %2693 = vmatprep.subr.bf16.mxu0 %v874
    %2694 = vmatpush1.bf16.msra.mxu0 %v873
    %2695 = vmatprep.subr.bf16.mxu0 %v878
    %2696 = vmatpush1.bf16.msra.mxu0 %v877
    %2697 = vmatprep.subr.bf16.mxu0 %v882
    %2698 = vmatpush1.bf16.msra.mxu0 %v881
    %2699 = vmatprep.subr.bf16.mxu0 %v886
    %2700 = vmatpush1.bf16.msra.mxu0 %v885
    %2701 = vmatprep.subr.bf16.mxu0 %v890
    %2702 = vmatpush1.bf16.msra.mxu0 %v889
    %2703 = vmatprep.subr.bf16.mxu0 %v894
    %2704 = vmatpush1.bf16.msra.mxu0 %v893
    %2705 = vmatprep.subr.bf16.mxu0 %v898
    %2706 = vmatpush1.bf16.msra.mxu0 %v897
    %2707 = vmatprep.subr.bf16.mxu0 %v902
    %2708 = vmatpush1.bf16.msra.mxu0 %v901
    %2709 = vmatprep.subr.bf16.mxu0 %v906
    %2710 = vmatpush1.bf16.msra.mxu0 %v905
    %2711 = vmatprep.subr.bf16.mxu0 %v910
    %2712 = vmatpush1.bf16.msra.mxu0 %v909
    %2713 = vmatprep.subr.bf16.mxu0 %v914
    %2714 = vmatpush1.bf16.msra.mxu0 %v913
    %2715 = vmatprep.subr.bf16.mxu0 %v918
    %2716 = vmatpush1.bf16.msra.mxu0 %v917
    %2717 = vmatprep.subr.bf16.mxu0 %v922
    %2718 = vmatpush1.bf16.msra.mxu0 %v921
    %2719 = vmatprep.subr.bf16.mxu0 %v926
    %2720 = vmatpush1.bf16.msra.mxu0 %v925
    %2721 = vmatprep.subr.bf16.mxu0 %v930
    %2722 = vmatpush1.bf16.msra.mxu0 %v929
    %2723 = vmatprep.mubr.bf16.mxu0 %v1729
    %2724 = vmatmul.mubr.bf16.gmra.mrb[0].mxu0 %v1715
    %v2725 = vpop.f32.mrb[0].mxu0
    %v2726 = vadd.f32 %v2685, %v2725
    %v2727 = vpop.f32.mrb[0].mxu0
    %v2728 = vadd.f32 %v2687, %v2727
    %v2729 = vpop.f32.mrb[0].mxu0
    %v2730 = vpop.f32.mrb[0].mxu0
    %2731 = vdwg.mxu0
    %2732 = vmatprep.subr.bf16.mxu0 %v934
    %2733 = vmatpush1.bf16.msra.mxu0 %v933
    %2734 = vmatprep.subr.bf16.mxu0 %v938
    %2735 = vmatpush1.bf16.msra.mxu0 %v937
    %2736 = vmatprep.subr.bf16.mxu0 %v942
    %2737 = vmatpush1.bf16.msra.mxu0 %v941
    %2738 = vmatprep.subr.bf16.mxu0 %v946
    %2739 = vmatpush1.bf16.msra.mxu0 %v945
    %2740 = vmatprep.subr.bf16.mxu0 %v950
    %2741 = vmatpush1.bf16.msra.mxu0 %v949
    %2742 = vmatprep.subr.bf16.mxu0 %v954
    %2743 = vmatpush1.bf16.msra.mxu0 %v953
    %2744 = vmatprep.subr.bf16.mxu0 %v958
    %2745 = vmatpush1.bf16.msra.mxu0 %v957
    %2746 = vmatprep.subr.bf16.mxu0 %v962
    %2747 = vmatpush1.bf16.msra.mxu0 %v961
    %2748 = vmatprep.subr.bf16.mxu0 %v966
    %2749 = vmatpush1.bf16.msra.mxu0 %v965
    %2750 = vmatprep.subr.bf16.mxu0 %v970
    %2751 = vmatpush1.bf16.msra.mxu0 %v969
    %2752 = vmatprep.subr.bf16.mxu0 %v974
    %2753 = vmatpush1.bf16.msra.mxu0 %v973
    %2754 = vmatprep.subr.bf16.mxu0 %v978
    %2755 = vmatpush1.bf16.msra.mxu0 %v977
    %2756 = vmatprep.subr.bf16.mxu0 %v982
    %2757 = vmatpush1.bf16.msra.mxu0 %v981
    %2758 = vmatprep.subr.bf16.mxu0 %v986
    %2759 = vmatpush1.bf16.msra.mxu0 %v985
    %2760 = vmatprep.subr.bf16.mxu0 %v990
    %2761 = vmatpush1.bf16.msra.mxu0 %v989
    %2762 = vmatprep.subr.bf16.mxu0 %v994
    %2763 = vmatpush1.bf16.msra.mxu0 %v993
    %2764 = vmatprep.mubr.bf16.mxu0 %v1739
    %2765 = vmatmul.mubr.bf16.gmra.mrb[0].mxu0 %v1737
    %v2766 = vpop.f32.mrb[0].mxu0
    %v2767 = vadd.f32 %v2726, %v2766
    %v2768 = vpop.f32.mrb[0].mxu0
    %v2769 = vadd.f32 %v2728, %v2768
    %v2770 = vpop.f32.mrb[0].mxu0
    %v2771 = vpop.f32.mrb[0].mxu0
    %2772 = vdwg.mxu0
    %2773 = vmatprep.subr.bf16.mxu0 %v998
    %2774 = vmatpush1.bf16.msra.mxu0 %v997
    %2775 = vmatprep.subr.bf16.mxu0 %v1002
    %2776 = vmatpush1.bf16.msra.mxu0 %v1001
    %2777 = vmatprep.subr.bf16.mxu0 %v1006
    %2778 = vmatpush1.bf16.msra.mxu0 %v1005
    %2779 = vmatprep.subr.bf16.mxu0 %v1010
    %2780 = vmatpush1.bf16.msra.mxu0 %v1009
    %2781 = vmatprep.subr.bf16.mxu0 %v1014
    %2782 = vmatpush1.bf16.msra.mxu0 %v1013
    %2783 = vmatprep.subr.bf16.mxu0 %v1018
    %2784 = vmatpush1.bf16.msra.mxu0 %v1017
    %2785 = vmatprep.subr.bf16.mxu0 %v1022
    %2786 = vmatpush1.bf16.msra.mxu0 %v1021
    %2787 = vmatprep.subr.bf16.mxu0 %v1026
    %2788 = vmatpush1.bf16.msra.mxu0 %v1025
    %2789 = vmatprep.subr.bf16.mxu0 %v1030
    %2790 = vmatpush1.bf16.msra.mxu0 %v1029
    %2791 = vmatprep.subr.bf16.mxu0 %v1034
    %2792 = vmatpush1.bf16.msra.mxu0 %v1033
    %2793 = vmatprep.subr.bf16.mxu0 %v1038
    %2794 = vmatpush1.bf16.msra.mxu0 %v1037
    %2795 = vmatprep.subr.bf16.mxu0 %v1042
    %2796 = vmatpush1.bf16.msra.mxu0 %v1041
    %2797 = vmatprep.subr.bf16.mxu0 %v1046
    %2798 = vmatpush1.bf16.msra.mxu0 %v1045
    %2799 = vmatprep.subr.bf16.mxu0 %v1050
    %2800 = vmatpush1.bf16.msra.mxu0 %v1049
    %2801 = vmatprep.subr.bf16.mxu0 %v1054
    %2802 = vmatpush1.bf16.msra.mxu0 %v1053
    %2803 = vmatprep.subr.bf16.mxu0 %v1058
    %2804 = vmatpush1.bf16.msra.mxu0 %v1057
    %2805 = vmatprep.mubr.bf16.mxu0 %v1736
    %2806 = vmatmul.mubr.bf16.gmra.mrb[0].mxu0 %v1722
    %v2807 = vpop.f32.mrb[0].mxu0
    %v2808 = vadd.f32 %v2767, %v2807
    %v2809 = vpop.f32.mrb[0].mxu0
    %v2810 = vadd.f32 %v2769, %v2809
    %v2811 = vpop.f32.mrb[0].mxu0
    %v2812 = vpop.f32.mrb[0].mxu0
    %2813 = vdwg.mxu0
    %2814 = vmatprep.subr.bf16.mxu0 %v1062
    %2815 = vmatpush1.bf16.msra.mxu0 %v1061
    %2816 = vmatprep.subr.bf16.mxu0 %v1066
    %2817 = vmatpush1.bf16.msra.mxu0 %v1065
    %2818 = vmatprep.subr.bf16.mxu0 %v1070
    %2819 = vmatpush1.bf16.msra.mxu0 %v1069
    %2820 = vmatprep.subr.bf16.mxu0 %v1074
    %2821 = vmatpush1.bf16.msra.mxu0 %v1073
    %2822 = vmatprep.subr.bf16.mxu0 %v1078
    %2823 = vmatpush1.bf16.msra.mxu0 %v1077
    %2824 = vmatprep.subr.bf16.mxu0 %v1082
    %2825 = vmatpush1.bf16.msra.mxu0 %v1081
    %2826 = vmatprep.subr.bf16.mxu0 %v1086
    %2827 = vmatpush1.bf16.msra.mxu0 %v1085
    %2828 = vmatprep.subr.bf16.mxu0 %v1090
    %2829 = vmatpush1.bf16.msra.mxu0 %v1089
    %2830 = vmatprep.subr.bf16.mxu0 %v1094
    %2831 = vmatpush1.bf16.msra.mxu0 %v1093
    %2832 = vmatprep.subr.bf16.mxu0 %v1098
    %2833 = vmatpush1.bf16.msra.mxu0 %v1097
    %2834 = vmatprep.subr.bf16.mxu0 %v1102
    %2835 = vmatpush1.bf16.msra.mxu0 %v1101
    %2836 = vmatprep.subr.bf16.mxu0 %v1106
    %2837 = vmatpush1.bf16.msra.mxu0 %v1105
    %2838 = vmatprep.subr.bf16.mxu0 %v1110
    %2839 = vmatpush1.bf16.msra.mxu0 %v1109
    %2840 = vmatprep.subr.bf16.mxu0 %v1114
    %2841 = vmatpush1.bf16.msra.mxu0 %v1113
    %2842 = vmatprep.subr.bf16.mxu0 %v1118
    %2843 = vmatpush1.bf16.msra.mxu0 %v1117
    %2844 = vmatprep.subr.bf16.mxu0 %v1122
    %2845 = vmatpush1.bf16.msra.mxu0 %v1121
    %2846 = vmatprep.mubr.bf16.mxu0 %v1740
    %2847 = vmatmul.mubr.bf16.gmra.mrb[0].mxu0 %v1738
    %v2848 = vpop.f32.mrb[0].mxu0
    %v2849 = vadd.f32 %v2808, %v2848
    %v2850 = vpop.f32.mrb[0].mxu0
    %v2851 = vadd.f32 %v2810, %v2850
    %v2852 = vpop.f32.mrb[0].mxu0
    %v2853 = vpop.f32.mrb[0].mxu0
    %2854 = vdwg.mxu0
    %2855 = vmatprep.subr.bf16.mxu0 %v1126
    %2856 = vmatpush1.bf16.msra.mxu0 %v1125
    %2857 = vmatprep.subr.bf16.mxu0 %v1130
    %2858 = vmatpush1.bf16.msra.mxu0 %v1129
    %2859 = vmatprep.subr.bf16.mxu0 %v1134
    %2860 = vmatpush1.bf16.msra.mxu0 %v1133
    %2861 = vmatprep.subr.bf16.mxu0 %v1138
    %2862 = vmatpush1.bf16.msra.mxu0 %v1137
    %2863 = vmatprep.subr.bf16.mxu0 %v1142
    %2864 = vmatpush1.bf16.msra.mxu0 %v1141
    %2865 = vmatprep.subr.bf16.mxu0 %v1146
    %2866 = vmatpush1.bf16.msra.mxu0 %v1145
    %2867 = vmatprep.subr.bf16.mxu0 %v1150
    %2868 = vmatpush1.bf16.msra.mxu0 %v1149
    %2869 = vmatprep.subr.bf16.mxu0 %v1154
    %2870 = vmatpush1.bf16.msra.mxu0 %v1153
    %2871 = vmatprep.subr.bf16.mxu0 %v1158
    %2872 = vmatpush1.bf16.msra.mxu0 %v1157
    %2873 = vmatprep.subr.bf16.mxu0 %v1162
    %2874 = vmatpush1.bf16.msra.mxu0 %v1161
    %2875 = vmatprep.subr.bf16.mxu0 %v1166
    %2876 = vmatpush1.bf16.msra.mxu0 %v1165
    %2877 = vmatprep.subr.bf16.mxu0 %v1170
    %2878 = vmatpush1.bf16.msra.mxu0 %v1169
    %2879 = vmatprep.subr.bf16.mxu0 %v1174
    %2880 = vmatpush1.bf16.msra.mxu0 %v1173
    %2881 = vmatprep.subr.bf16.mxu0 %v1178
    %2882 = vmatpush1.bf16.msra.mxu0 %v1177
    %2883 = vmatprep.subr.bf16.mxu0 %v1182
    %2884 = vmatpush1.bf16.msra.mxu0 %v1181
    %2885 = vmatprep.subr.bf16.mxu0 %v1186
    %2886 = vmatpush1.bf16.msra.mxu0 %v1185
    %2887 = vmatprep.mubr.bf16.mxu0 %v1778
    %2888 = vmatmul.mubr.bf16.gmra.mrb[0].mxu0 %v1764
    %v2889 = vpop.f32.mrb[0].mxu0
    %v2890 = vadd.f32 %v2849, %v2889
    %v2891 = vpop.f32.mrb[0].mxu0
    %v2892 = vadd.f32 %v2851, %v2891
    %v2893 = vpop.f32.mrb[0].mxu0
    %v2894 = vpop.f32.mrb[0].mxu0
    %2895 = vdwg.mxu0
    %2896 = vmatprep.subr.bf16.mxu0 %v1190
    %2897 = vmatpush1.bf16.msra.mxu0 %v1189
    %2898 = vmatprep.subr.bf16.mxu0 %v1194
    %2899 = vmatpush1.bf16.msra.mxu0 %v1193
    %2900 = vmatprep.subr.bf16.mxu0 %v1198
    %2901 = vmatpush1.bf16.msra.mxu0 %v1197
    %2902 = vmatprep.subr.bf16.mxu0 %v1202
    %2903 = vmatpush1.bf16.msra.mxu0 %v1201
    %2904 = vmatprep.subr.bf16.mxu0 %v1206
    %2905 = vmatpush1.bf16.msra.mxu0 %v1205
    %2906 = vmatprep.subr.bf16.mxu0 %v1210
    %2907 = vmatpush1.bf16.msra.mxu0 %v1209
    %2908 = vmatprep.subr.bf16.mxu0 %v1214
    %2909 = vmatpush1.bf16.msra.mxu0 %v1213
    %2910 = vmatprep.subr.bf16.mxu0 %v1218
    %2911 = vmatpush1.bf16.msra.mxu0 %v1217
    %2912 = vmatprep.subr.bf16.mxu0 %v1222
    %2913 = vmatpush1.bf16.msra.mxu0 %v1221
    %2914 = vmatprep.subr.bf16.mxu0 %v1226
    %2915 = vmatpush1.bf16.msra.mxu0 %v1225
    %2916 = vmatprep.subr.bf16.mxu0 %v1230
    %2917 = vmatpush1.bf16.msra.mxu0 %v1229
    %2918 = vmatprep.subr.bf16.mxu0 %v1234
    %2919 = vmatpush1.bf16.msra.mxu0 %v1233
    %2920 = vmatprep.subr.bf16.mxu0 %v1238
    %2921 = vmatpush1.bf16.msra.mxu0 %v1237
    %2922 = vmatprep.subr.bf16.mxu0 %v1242
    %2923 = vmatpush1.bf16.msra.mxu0 %v1241
    %2924 = vmatprep.subr.bf16.mxu0 %v1246
    %2925 = vmatpush1.bf16.msra.mxu0 %v1245
    %2926 = vmatprep.subr.bf16.mxu0 %v1250
    %2927 = vmatpush1.bf16.msra.mxu0 %v1249
    %2928 = vmatprep.mubr.bf16.mxu0 %v1788
    %2929 = vmatmul.mubr.bf16.gmra.mrb[0].mxu0 %v1786
    %v2930 = vpop.f32.mrb[0].mxu0
    %v2931 = vadd.f32 %v2890, %v2930
    %v2932 = vpop.f32.mrb[0].mxu0
    %v2933 = vadd.f32 %v2892, %v2932
    %v2934 = vpop.f32.mrb[0].mxu0
    %v2935 = vpop.f32.mrb[0].mxu0
    %2936 = vdwg.mxu0
    %2937 = vmatprep.subr.bf16.mxu0 %v1254
    %2938 = vmatpush1.bf16.msra.mxu0 %v1253
    %2939 = vmatprep.subr.bf16.mxu0 %v1258
    %2940 = vmatpush1.bf16.msra.mxu0 %v1257
    %2941 = vmatprep.subr.bf16.mxu0 %v1262
    %2942 = vmatpush1.bf16.msra.mxu0 %v1261
    %2943 = vmatprep.subr.bf16.mxu0 %v1266
    %2944 = vmatpush1.bf16.msra.mxu0 %v1265
    %2945 = vmatprep.subr.bf16.mxu0 %v1270
    %2946 = vmatpush1.bf16.msra.mxu0 %v1269
    %2947 = vmatprep.subr.bf16.mxu0 %v1274
    %2948 = vmatpush1.bf16.msra.mxu0 %v1273
    %2949 = vmatprep.subr.bf16.mxu0 %v1278
    %2950 = vmatpush1.bf16.msra.mxu0 %v1277
    %2951 = vmatprep.subr.bf16.mxu0 %v1282
    %2952 = vmatpush1.bf16.msra.mxu0 %v1281
    %2953 = vmatprep.subr.bf16.mxu0 %v1286
    %2954 = vmatpush1.bf16.msra.mxu0 %v1285
    %2955 = vmatprep.subr.bf16.mxu0 %v1290
    %2956 = vmatpush1.bf16.msra.mxu0 %v1289
    %2957 = vmatprep.subr.bf16.mxu0 %v1294
    %2958 = vmatpush1.bf16.msra.mxu0 %v1293
    %2959 = vmatprep.subr.bf16.mxu0 %v1298
    %2960 = vmatpush1.bf16.msra.mxu0 %v1297
    %2961 = vmatprep.subr.bf16.mxu0 %v1302
    %2962 = vmatpush1.bf16.msra.mxu0 %v1301
    %2963 = vmatprep.subr.bf16.mxu0 %v1306
    %2964 = vmatpush1.bf16.msra.mxu0 %v1305
    %2965 = vmatprep.subr.bf16.mxu0 %v1310
    %2966 = vmatpush1.bf16.msra.mxu0 %v1309
    %2967 = vmatprep.subr.bf16.mxu0 %v1314
    %2968 = vmatpush1.bf16.msra.mxu0 %v1313
    %2969 = vmatprep.mubr.bf16.mxu0 %v1785
    %2970 = vmatmul.mubr.bf16.gmra.mrb[0].mxu0 %v1771
    %v2971 = vpop.f32.mrb[0].mxu0
    %v2972 = vadd.f32 %v2931, %v2971
    %v2973 = vpop.f32.mrb[0].mxu0
    %v2974 = vadd.f32 %v2933, %v2973
    %v2975 = vpop.f32.mrb[0].mxu0
    %v2976 = vpop.f32.mrb[0].mxu0
    %2977 = vdwg.mxu0
    %2978 = vmatprep.subr.bf16.mxu0 %v1318
    %2979 = vmatpush1.bf16.msra.mxu0 %v1317
    %2980 = vmatprep.subr.bf16.mxu0 %v1322
    %2981 = vmatpush1.bf16.msra.mxu0 %v1321
    %2982 = vmatprep.subr.bf16.mxu0 %v1326
    %2983 = vmatpush1.bf16.msra.mxu0 %v1325
    %2984 = vmatprep.subr.bf16.mxu0 %v1330
    %2985 = vmatpush1.bf16.msra.mxu0 %v1329
    %2986 = vmatprep.subr.bf16.mxu0 %v1334
    %2987 = vmatpush1.bf16.msra.mxu0 %v1333
    %2988 = vmatprep.subr.bf16.mxu0 %v1338
    %2989 = vmatpush1.bf16.msra.mxu0 %v1337
    %2990 = vmatprep.subr.bf16.mxu0 %v1342
    %2991 = vmatpush1.bf16.msra.mxu0 %v1341
    %2992 = vmatprep.subr.bf16.mxu0 %v1346
    %2993 = vmatpush1.bf16.msra.mxu0 %v1345
    %2994 = vmatprep.subr.bf16.mxu0 %v1350
    %2995 = vmatpush1.bf16.msra.mxu0 %v1349
    %2996 = vmatprep.subr.bf16.mxu0 %v1354
    %2997 = vmatpush1.bf16.msra.mxu0 %v1353
    %2998 = vmatprep.subr.bf16.mxu0 %v1358
    %2999 = vmatpush1.bf16.msra.mxu0 %v1357
    %3000 = vmatprep.subr.bf16.mxu0 %v1362
    %3001 = vmatpush1.bf16.msra.mxu0 %v1361
    %3002 = vmatprep.subr.bf16.mxu0 %v1366
    %3003 = vmatpush1.bf16.msra.mxu0 %v1365
    %3004 = vmatprep.subr.bf16.mxu0 %v1370
    %3005 = vmatpush1.bf16.msra.mxu0 %v1369
    %3006 = vmatprep.subr.bf16.mxu0 %v1374
    %3007 = vmatpush1.bf16.msra.mxu0 %v1373
    %3008 = vmatprep.subr.bf16.mxu0 %v1378
    %3009 = vmatpush1.bf16.msra.mxu0 %v1377
    %3010 = vmatprep.mubr.bf16.mxu0 %v1789
    %3011 = vmatmul.mubr.bf16.gmra.mrb[0].mxu0 %v1787
    %v3012 = vpop.f32.mrb[0].mxu0
    %v3013 = vadd.f32 %v2972, %v3012
    %v3014 = vpop.f32.mrb[0].mxu0
    %v3015 = vadd.f32 %v2974, %v3014
    %v3016 = vpop.f32.mrb[0].mxu0
    %v3017 = vpop.f32.mrb[0].mxu0
    %3018 = vdwg.mxu0
    %3019 = vmatprep.subr.bf16.mxu0 %v1382
    %3020 = vmatpush1.bf16.msra.mxu0 %v1381
    %3021 = vmatprep.subr.bf16.mxu0 %v1386
    %3022 = vmatpush1.bf16.msra.mxu0 %v1385
    %3023 = vmatprep.subr.bf16.mxu0 %v1390
    %3024 = vmatpush1.bf16.msra.mxu0 %v1389
    %3025 = vmatprep.subr.bf16.mxu0 %v1394
    %3026 = vmatpush1.bf16.msra.mxu0 %v1393
    %3027 = vmatprep.subr.bf16.mxu0 %v1398
    %3028 = vmatpush1.bf16.msra.mxu0 %v1397
    %3029 = vmatprep.subr.bf16.mxu0 %v1402
    %3030 = vmatpush1.bf16.msra.mxu0 %v1401
    %3031 = vmatprep.subr.bf16.mxu0 %v1406
    %3032 = vmatpush1.bf16.msra.mxu0 %v1405
    %3033 = vmatprep.subr.bf16.mxu0 %v1410
    %3034 = vmatpush1.bf16.msra.mxu0 %v1409
    %3035 = vmatprep.subr.bf16.mxu0 %v1414
    %3036 = vmatpush1.bf16.msra.mxu0 %v1413
    %3037 = vmatprep.subr.bf16.mxu0 %v1418
    %3038 = vmatpush1.bf16.msra.mxu0 %v1417
    %3039 = vmatprep.subr.bf16.mxu0 %v1422
    %3040 = vmatpush1.bf16.msra.mxu0 %v1421
    %3041 = vmatprep.subr.bf16.mxu0 %v1426
    %3042 = vmatpush1.bf16.msra.mxu0 %v1425
    %3043 = vmatprep.subr.bf16.mxu0 %v1430
    %3044 = vmatpush1.bf16.msra.mxu0 %v1429
    %3045 = vmatprep.subr.bf16.mxu0 %v1434
    %3046 = vmatpush1.bf16.msra.mxu0 %v1433
    %3047 = vmatprep.subr.bf16.mxu0 %v1438
    %3048 = vmatpush1.bf16.msra.mxu0 %v1437
    %3049 = vmatprep.subr.bf16.mxu0 %v1442
    %3050 = vmatpush1.bf16.msra.mxu0 %v1441
    %3051 = vmatprep.mubr.bf16.mxu0 %v1827
    %3052 = vmatmul.mubr.bf16.gmra.mrb[0].mxu0 %v1813
    %v3053 = vpop.f32.mrb[0].mxu0
    %v3054 = vadd.f32 %v3013, %v3053
    %v3055 = vpop.f32.mrb[0].mxu0
    %v3056 = vadd.f32 %v3015, %v3055
    %v3057 = vpop.f32.mrb[0].mxu0
    %v3058 = vpop.f32.mrb[0].mxu0
    %3059 = vdwg.mxu0
    %3060 = vmatprep.subr.bf16.mxu0 %v1446
    %3061 = vmatpush1.bf16.msra.mxu0 %v1445
    %3062 = vmatprep.subr.bf16.mxu0 %v1450
    %3063 = vmatpush1.bf16.msra.mxu0 %v1449
    %3064 = vmatprep.subr.bf16.mxu0 %v1454
    %3065 = vmatpush1.bf16.msra.mxu0 %v1453
    %3066 = vmatprep.subr.bf16.mxu0 %v1458
    %3067 = vmatpush1.bf16.msra.mxu0 %v1457
    %3068 = vmatprep.subr.bf16.mxu0 %v1462
    %3069 = vmatpush1.bf16.msra.mxu0 %v1461
    %3070 = vmatprep.subr.bf16.mxu0 %v1466
    %3071 = vmatpush1.bf16.msra.mxu0 %v1465
    %3072 = vmatprep.subr.bf16.mxu0 %v1470
    %3073 = vmatpush1.bf16.msra.mxu0 %v1469
    %3074 = vmatprep.subr.bf16.mxu0 %v1474
    %3075 = vmatpush1.bf16.msra.mxu0 %v1473
    %3076 = vmatprep.subr.bf16.mxu0 %v1478
    %3077 = vmatpush1.bf16.msra.mxu0 %v1477
    %3078 = vmatprep.subr.bf16.mxu0 %v1482
    %3079 = vmatpush1.bf16.msra.mxu0 %v1481
    %3080 = vmatprep.subr.bf16.mxu0 %v1486
    %3081 = vmatpush1.bf16.msra.mxu0 %v1485
    %3082 = vmatprep.subr.bf16.mxu0 %v1490
    %3083 = vmatpush1.bf16.msra.mxu0 %v1489
    %3084 = vmatprep.subr.bf16.mxu0 %v1494
    %3085 = vmatpush1.bf16.msra.mxu0 %v1493
    %3086 = vmatprep.subr.bf16.mxu0 %v1498
    %3087 = vmatpush1.bf16.msra.mxu0 %v1497
    %3088 = vmatprep.subr.bf16.mxu0 %v1502
    %3089 = vmatpush1.bf16.msra.mxu0 %v1501
    %3090 = vmatprep.subr.bf16.mxu0 %v1506
    %3091 = vmatpush1.bf16.msra.mxu0 %v1505
    %3092 = vmatprep.mubr.bf16.mxu0 %v1837
    %3093 = vmatmul.mubr.bf16.gmra.mrb[0].mxu0 %v1835
    %v3094 = vpop.f32.mrb[0].mxu0
    %v3095 = vadd.f32 %v3054, %v3094
    %v3096 = vpop.f32.mrb[0].mxu0
    %v3097 = vadd.f32 %v3056, %v3096
    %v3098 = vpop.f32.mrb[0].mxu0
    %v3099 = vpop.f32.mrb[0].mxu0
    %3100 = vdwg.mxu0
    %3101 = vmatprep.subr.bf16.mxu0 %v1510
    %3102 = vmatpush1.bf16.msra.mxu0 %v1509
    %3103 = vmatprep.subr.bf16.mxu0 %v1514
    %3104 = vmatpush1.bf16.msra.mxu0 %v1513
    %3105 = vmatprep.subr.bf16.mxu0 %v1518
    %3106 = vmatpush1.bf16.msra.mxu0 %v1517
    %3107 = vmatprep.subr.bf16.mxu0 %v1522
    %3108 = vmatpush1.bf16.msra.mxu0 %v1521
    %3109 = vmatprep.subr.bf16.mxu0 %v1526
    %3110 = vmatpush1.bf16.msra.mxu0 %v1525
    %3111 = vmatprep.subr.bf16.mxu0 %v1530
    %3112 = vmatpush1.bf16.msra.mxu0 %v1529
    %3113 = vmatprep.subr.bf16.mxu0 %v1534
    %3114 = vmatpush1.bf16.msra.mxu0 %v1533
    %3115 = vmatprep.subr.bf16.mxu0 %v1538
    %3116 = vmatpush1.bf16.msra.mxu0 %v1537
    %3117 = vmatprep.subr.bf16.mxu0 %v1542
    %3118 = vmatpush1.bf16.msra.mxu0 %v1541
    %3119 = vmatprep.subr.bf16.mxu0 %v1546
    %3120 = vmatpush1.bf16.msra.mxu0 %v1545
    %3121 = vmatprep.subr.bf16.mxu0 %v1550
    %3122 = vmatpush1.bf16.msra.mxu0 %v1549
    %3123 = vmatprep.subr.bf16.mxu0 %v1554
    %3124 = vmatpush1.bf16.msra.mxu0 %v1553
    %3125 = vmatprep.subr.bf16.mxu0 %v1558
    %3126 = vmatpush1.bf16.msra.mxu0 %v1557
    %3127 = vmatprep.subr.bf16.mxu0 %v1562
    %3128 = vmatpush1.bf16.msra.mxu0 %v1561
    %3129 = vmatprep.subr.bf16.mxu0 %v1566
    %3130 = vmatpush1.bf16.msra.mxu0 %v1565
    %3131 = vmatprep.subr.bf16.mxu0 %v1570
    %3132 = vmatpush1.bf16.msra.mxu0 %v1569
    %3133 = vmatprep.mubr.bf16.mxu0 %v1834
    %3134 = vmatmul.mubr.bf16.gmra.mrb[0].mxu0 %v1820
    %v3135 = vpop.f32.mrb[0].mxu0
    %v3136 = vadd.f32 %v3095, %v3135
    %v3137 = vpop.f32.mrb[0].mxu0
    %v3138 = vadd.f32 %v3097, %v3137
    %v3139 = vpop.f32.mrb[0].mxu0
    %v3140 = vpop.f32.mrb[0].mxu0
    %3141 = vdwg.mxu0
    %3142 = vmatprep.subr.bf16.mxu0 %v1574
    %3143 = vmatpush1.bf16.msra.mxu0 %v1573
    %3144 = vmatprep.subr.bf16.mxu0 %v1578
    %3145 = vmatpush1.bf16.msra.mxu0 %v1577
    %3146 = vmatprep.subr.bf16.mxu0 %v1582
    %3147 = vmatpush1.bf16.msra.mxu0 %v1581
    %3148 = vmatprep.subr.bf16.mxu0 %v1586
    %3149 = vmatpush1.bf16.msra.mxu0 %v1585
    %3150 = vmatprep.subr.bf16.mxu0 %v1590
    %3151 = vmatpush1.bf16.msra.mxu0 %v1589
    %3152 = vmatprep.subr.bf16.mxu0 %v1594
    %3153 = vmatpush1.bf16.msra.mxu0 %v1593
    %3154 = vmatprep.subr.bf16.mxu0 %v1598
    %3155 = vmatpush1.bf16.msra.mxu0 %v1597
    %3156 = vmatprep.subr.bf16.mxu0 %v1602
    %3157 = vmatpush1.bf16.msra.mxu0 %v1601
    %3158 = vmatprep.subr.bf16.mxu0 %v1606
    %3159 = vmatpush1.bf16.msra.mxu0 %v1605
    %3160 = vmatprep.subr.bf16.mxu0 %v1610
    %3161 = vmatpush1.bf16.msra.mxu0 %v1609
    %3162 = vmatprep.subr.bf16.mxu0 %v1614
    %3163 = vmatpush1.bf16.msra.mxu0 %v1613
    %3164 = vmatprep.subr.bf16.mxu0 %v1618
    %3165 = vmatpush1.bf16.msra.mxu0 %v1617
    %3166 = vmatprep.subr.bf16.mxu0 %v1622
    %3167 = vmatpush1.bf16.msra.mxu0 %v1621
    %3168 = vmatprep.subr.bf16.mxu0 %v1626
    %3169 = vmatpush1.bf16.msra.mxu0 %v1625
    %3170 = vmatprep.subr.bf16.mxu0 %v1630
    %3171 = vmatpush1.bf16.msra.mxu0 %v1629
    %3172 = vmatprep.subr.bf16.mxu0 %v1634
    %3173 = vmatpush1.bf16.msra.mxu0 %v1633
    %3174 = vmatprep.mubr.bf16.mxu0 %v1838
    %3175 = vmatmul.mubr.bf16.gmra.mrb[0].mxu0 %v1836
    %v3176 = vpop.f32.mrb[0].mxu0
    %v3177 = vadd.f32 %v3136, %v3176
    %v3178 = vpop.f32.mrb[0].mxu0
    %v3179 = vadd.f32 %v3138, %v3178
    %v3180 = vpop.f32.mrb[0].mxu0
    %v3181 = vpop.f32.mrb[0].mxu0
    %3182 = vdwg.mxu0
    %v3183 = vld [vmem:[#allocation7] sm:$0xf]
    %v3185 = vlaneseq
    %v3186 = vshrl.u32 %v3185, 7
    %v3187 = vsub.s32 0, %v3186
    %v3188 = vrot.slane %v3183, %v3187
    %v3189 = vlaneseq
    %v3190 = vshrl.u32 %v3189, 7
    %v3191 = vsub.s32 1, %v3190
    %v3192 = vrot.slane %v3183, %v3191
    %v3193 = vlaneseq
    %v3194 = vshrl.u32 %v3193, 7
    %v3195 = vsub.s32 2, %v3194
    %v3196 = vrot.slane %v3183, %v3195
    %v3197 = vlaneseq
    %v3198 = vshrl.u32 %v3197, 7
    %v3199 = vsub.s32 3, %v3198
    %v3200 = vrot.slane %v3183, %v3199
    %v3205 = vmul.f32 %v2521, %v3188
    %v3206 = vmul.f32 %v2523, %v3192
    %v3207 = vmul.f32 %v3177, %v3196
    %v3208 = vmul.f32 %v3179, %v3200
    %v3209 = vld [vmem:[#allocation8] sm:$0xf]
    %v3211 = vlaneseq
    %v3212 = vshrl.u32 %v3211, 7
    %v3213 = vsub.s32 0, %v3212
    %v3214 = vrot.slane %v3209, %v3213
    %v3215 = vlaneseq
    %v3216 = vshrl.u32 %v3215, 7
    %v3217 = vsub.s32 1, %v3216
    %v3218 = vrot.slane %v3209, %v3217
    %v3219 = vlaneseq
    %v3220 = vshrl.u32 %v3219, 7
    %v3221 = vsub.s32 2, %v3220
    %v3222 = vrot.slane %v3209, %v3221
    %v3223 = vlaneseq
    %v3224 = vshrl.u32 %v3223, 7
    %v3225 = vsub.s32 3, %v3224
    %v3226 = vrot.slane %v3209, %v3225
    %v3231 = vadd.f32 %v3205, %v3214
    %v3232 = vadd.f32 %v3206, %v3218
    %v3233 = vadd.f32 %v3207, %v3222
    %v3234 = vadd.f32 %v3208, %v3226
    %v3235 = vmax.f32 %v3231, 0.0
    %v3236 = vmax.f32 %v3232, 0.0
    %v3237 = vmax.f32 %v3233, 0.0
    %v3238 = vmax.f32 %v3234, 0.0
    %v3239 = vpack.c.bf16 %v3235, %v3235
    %v3240 = vpack.c.bf16 %v3236, %v3236
    %v3241 = vpack.c.bf16 %v3237, %v3237
    %v3242 = vpack.c.bf16 %v3238, %v3238
    %v3243 = vld [vmem:[#allocation10] sm:$0xf]
    %v3244 = vld [vmem:[#allocation10 + $0x4] sm:$0xf]
    %v3245 = vld [vmem:[#allocation10 + $0x8] sm:$0xf]
    %v3246 = vld [vmem:[#allocation10 + $0xc] sm:$0xf]
    %v3247 = vld [vmem:[#allocation10 + $0x10] sm:$0xf]
    %v3248 = vld [vmem:[#allocation10 + $0x14] sm:$0xf]
    %v3249 = vld [vmem:[#allocation10 + $0x18] sm:$0xf]
    %v3250 = vld [vmem:[#allocation10 + $0x1c] sm:$0xf]
    %v3251 = vld [vmem:[#allocation10 + $0x20] sm:$0xf]
    %v3252 = vld [vmem:[#allocation10 + $0x24] sm:$0xf]
    %v3253 = vld [vmem:[#allocation10 + $0x28] sm:$0xf]
    %v3254 = vld [vmem:[#allocation10 + $0x2c] sm:$0xf]
    %v3255 = vld [vmem:[#allocation10 + $0x30] sm:$0xf]
    %v3256 = vld [vmem:[#allocation10 + $0x34] sm:$0xf]
    %v3257 = vld [vmem:[#allocation10 + $0x38] sm:$0xf]
    %v3258 = vld [vmem:[#allocation10 + $0x3c] sm:$0xf]
    %v3259 = vld [vmem:[#allocation10 + $0x40] sm:$0xf]
    %v3260 = vld [vmem:[#allocation10 + $0x44] sm:$0xf]
    %v3261 = vld [vmem:[#allocation10 + $0x48] sm:$0xf]
    %v3262 = vld [vmem:[#allocation10 + $0x4c] sm:$0xf]
    %v3263 = vld [vmem:[#allocation10 + $0x50] sm:$0xf]
    %v3264 = vld [vmem:[#allocation10 + $0x54] sm:$0xf]
    %v3265 = vld [vmem:[#allocation10 + $0x58] sm:$0xf]
    %v3266 = vld [vmem:[#allocation10 + $0x5c] sm:$0xf]
    %v3267 = vld [vmem:[#allocation10 + $0x60] sm:$0xf]
    %v3268 = vld [vmem:[#allocation10 + $0x64] sm:$0xf]
    %v3269 = vld [vmem:[#allocation10 + $0x68] sm:$0xf]
    %v3270 = vld [vmem:[#allocation10 + $0x6c] sm:$0xf]
    %v3271 = vld [vmem:[#allocation10 + $0x70] sm:$0xf]
    %v3272 = vld [vmem:[#allocation10 + $0x74] sm:$0xf]
    %v3273 = vld [vmem:[#allocation10 + $0x78] sm:$0xf]
    %v3274 = vld [vmem:[#allocation10 + $0x7c] sm:$0xf]
    %v3275 = vld [vmem:[#allocation10 + $0x80] sm:$0xf]
    %v3276 = vld [vmem:[#allocation10 + $0x84] sm:$0xf]
    %v3277 = vld [vmem:[#allocation10 + $0x88] sm:$0xf]
    %v3278 = vld [vmem:[#allocation10 + $0x8c] sm:$0xf]
    %v3279 = vld [vmem:[#allocation10 + $0x90] sm:$0xf]
    %v3280 = vld [vmem:[#allocation10 + $0x94] sm:$0xf]
    %v3281 = vld [vmem:[#allocation10 + $0x98] sm:$0xf]
    %v3282 = vld [vmem:[#allocation10 + $0x9c] sm:$0xf]
    %v3283 = vld [vmem:[#allocation10 + $0xa0] sm:$0xf]
    %v3284 = vld [vmem:[#allocation10 + $0xa4] sm:$0xf]
    %v3285 = vld [vmem:[#allocation10 + $0xa8] sm:$0xf]
    %v3286 = vld [vmem:[#allocation10 + $0xac] sm:$0xf]
    %v3287 = vld [vmem:[#allocation10 + $0xb0] sm:$0xf]
    %v3288 = vld [vmem:[#allocation10 + $0xb4] sm:$0xf]
    %v3289 = vld [vmem:[#allocation10 + $0xb8] sm:$0xf]
    %v3290 = vld [vmem:[#allocation10 + $0xbc] sm:$0xf]
    %v3291 = vld [vmem:[#allocation10 + $0xc0] sm:$0xf]
    %v3292 = vld [vmem:[#allocation10 + $0xc4] sm:$0xf]
    %v3293 = vld [vmem:[#allocation10 + $0xc8] sm:$0xf]
    %v3294 = vld [vmem:[#allocation10 + $0xcc] sm:$0xf]
    %v3295 = vld [vmem:[#allocation10 + $0xd0] sm:$0xf]
    %v3296 = vld [vmem:[#allocation10 + $0xd4] sm:$0xf]
    %v3297 = vld [vmem:[#allocation10 + $0xd8] sm:$0xf]
    %v3298 = vld [vmem:[#allocation10 + $0xdc] sm:$0xf]
    %v3299 = vld [vmem:[#allocation10 + $0xe0] sm:$0xf]
    %v3300 = vld [vmem:[#allocation10 + $0xe4] sm:$0xf]
    %v3301 = vld [vmem:[#allocation10 + $0xe8] sm:$0xf]
    %v3302 = vld [vmem:[#allocation10 + $0xec] sm:$0xf]
    %v3303 = vld [vmem:[#allocation10 + $0xf0] sm:$0xf]
    %v3304 = vld [vmem:[#allocation10 + $0xf4] sm:$0xf]
    %v3305 = vld [vmem:[#allocation10 + $0xf8] sm:$0xf]
    %v3306 = vld [vmem:[#allocation10 + $0xfc] sm:$0xf]
    %v3307 = vld [vmem:[#allocation11] sm:$0x1]
    %v3309 = vlaneseq
    %v3310 = vshrl.u32 %v3309, 7
    %v3311 = vsub.s32 0, %v3310
    %v3312 = vrot.slane %v3307, %v3311
    %v3378 = vunpack.c.l.b16 %v3243
    %v3379 = vunpack.c.l.b16 %v3244
    %v3380 = vunpack.c.l.b16 %v3245
    %v3381 = vunpack.c.l.b16 %v3246
    %v3382 = vunpack.c.l.b16 %v3247
    %v3383 = vunpack.c.l.b16 %v3248
    %v3384 = vunpack.c.l.b16 %v3249
    %v3385 = vunpack.c.l.b16 %v3250
    %v3386 = vunpack.c.l.b16 %v3251
    %v3387 = vunpack.c.l.b16 %v3252
    %v3388 = vunpack.c.l.b16 %v3253
    %v3389 = vunpack.c.l.b16 %v3254
    %v3390 = vunpack.c.l.b16 %v3255
    %v3391 = vunpack.c.l.b16 %v3256
    %v3392 = vunpack.c.l.b16 %v3257
    %v3393 = vunpack.c.l.b16 %v3258
    %v3394 = vunpack.c.l.b16 %v3259
    %v3395 = vunpack.c.l.b16 %v3260
    %v3396 = vunpack.c.l.b16 %v3261
    %v3397 = vunpack.c.l.b16 %v3262
    %v3398 = vunpack.c.l.b16 %v3263
    %v3399 = vunpack.c.l.b16 %v3264
    %v3400 = vunpack.c.l.b16 %v3265
    %v3401 = vunpack.c.l.b16 %v3266
    %v3402 = vunpack.c.l.b16 %v3267
    %v3403 = vunpack.c.l.b16 %v3268
    %v3404 = vunpack.c.l.b16 %v3269
    %v3405 = vunpack.c.l.b16 %v3270
    %v3406 = vunpack.c.l.b16 %v3271
    %v3407 = vunpack.c.l.b16 %v3272
    %v3408 = vunpack.c.l.b16 %v3273
    %v3409 = vunpack.c.l.b16 %v3274
    %v3410 = vunpack.c.l.b16 %v3275
    %v3411 = vunpack.c.l.b16 %v3276
    %v3412 = vunpack.c.l.b16 %v3277
    %v3413 = vunpack.c.l.b16 %v3278
    %v3414 = vunpack.c.l.b16 %v3279
    %v3415 = vunpack.c.l.b16 %v3280
    %v3416 = vunpack.c.l.b16 %v3281
    %v3417 = vunpack.c.l.b16 %v3282
    %v3418 = vunpack.c.l.b16 %v3283
    %v3419 = vunpack.c.l.b16 %v3284
    %v3420 = vunpack.c.l.b16 %v3285
    %v3421 = vunpack.c.l.b16 %v3286
    %v3422 = vunpack.c.l.b16 %v3287
    %v3423 = vunpack.c.l.b16 %v3288
    %v3424 = vunpack.c.l.b16 %v3289
    %v3425 = vunpack.c.l.b16 %v3290
    %v3426 = vunpack.c.l.b16 %v3291
    %v3427 = vunpack.c.l.b16 %v3292
    %v3428 = vunpack.c.l.b16 %v3293
    %v3429 = vunpack.c.l.b16 %v3294
    %v3430 = vunpack.c.l.b16 %v3295
    %v3431 = vunpack.c.l.b16 %v3296
    %v3432 = vunpack.c.l.b16 %v3297
    %v3433 = vunpack.c.l.b16 %v3298
    %v3434 = vunpack.c.l.b16 %v3299
    %v3435 = vunpack.c.l.b16 %v3300
    %v3436 = vunpack.c.l.b16 %v3301
    %v3437 = vunpack.c.l.b16 %v3302
    %v3438 = vunpack.c.l.b16 %v3303
    %v3439 = vunpack.c.l.b16 %v3304
    %v3440 = vunpack.c.l.b16 %v3305
    %v3441 = vunpack.c.l.b16 %v3306
    %v3442 = vpack.c.b16 %v3379, %v3378
    %v3443 = vpack.c.b16 %v3381, %v3380
    %v3444 = vpack.c.b16 %v3383, %v3382
    %v3445 = vpack.c.b16 %v3385, %v3384
    %v3446 = vpack.c.b16 %v3387, %v3386
    %v3447 = vpack.c.b16 %v3389, %v3388
    %v3448 = vpack.c.b16 %v3391, %v3390
    %v3449 = vpack.c.b16 %v3393, %v3392
    %v3450 = vpack.c.b16 %v3395, %v3394
    %v3451 = vpack.c.b16 %v3397, %v3396
    %v3452 = vpack.c.b16 %v3399, %v3398
    %v3453 = vpack.c.b16 %v3401, %v3400
    %v3454 = vpack.c.b16 %v3403, %v3402
    %v3455 = vpack.c.b16 %v3405, %v3404
    %v3456 = vpack.c.b16 %v3407, %v3406
    %v3457 = vpack.c.b16 %v3409, %v3408
    %v3458 = vpack.c.b16 %v3411, %v3410
    %v3459 = vpack.c.b16 %v3413, %v3412
    %v3460 = vpack.c.b16 %v3415, %v3414
    %v3461 = vpack.c.b16 %v3417, %v3416
    %v3462 = vpack.c.b16 %v3419, %v3418
    %v3463 = vpack.c.b16 %v3421, %v3420
    %v3464 = vpack.c.b16 %v3423, %v3422
    %v3465 = vpack.c.b16 %v3425, %v3424
    %v3466 = vpack.c.b16 %v3427, %v3426
    %v3467 = vpack.c.b16 %v3429, %v3428
    %v3468 = vpack.c.b16 %v3431, %v3430
    %v3469 = vpack.c.b16 %v3433, %v3432
    %v3470 = vpack.c.b16 %v3435, %v3434
    %v3471 = vpack.c.b16 %v3437, %v3436
    %v3472 = vpack.c.b16 %v3439, %v3438
    %v3473 = vpack.c.b16 %v3441, %v3440
    %3506 = vmatprep.subr.bf16.mxu0 0
    %3507 = vmatpush1.bf16.msra.mxu0 %v3442
    %3508 = vmatprep.subr.bf16.mxu0 0
    %3509 = vmatpush1.bf16.msra.mxu0 %v3443
    %3510 = vmatprep.subr.bf16.mxu0 0
    %3511 = vmatpush1.bf16.msra.mxu0 %v3444
    %3512 = vmatprep.subr.bf16.mxu0 0
    %3513 = vmatpush1.bf16.msra.mxu0 %v3445
    %3514 = vmatprep.subr.bf16.mxu0 0
    %3515 = vmatpush1.bf16.msra.mxu0 %v3446
    %3516 = vmatprep.subr.bf16.mxu0 0
    %3517 = vmatpush1.bf16.msra.mxu0 %v3447
    %3518 = vmatprep.subr.bf16.mxu0 0
    %3519 = vmatpush1.bf16.msra.mxu0 %v3448
    %3520 = vmatprep.subr.bf16.mxu0 0
    %3521 = vmatpush1.bf16.msra.mxu0 %v3449
    %3522 = vmatprep.subr.bf16.mxu0 0
    %3523 = vmatpush1.bf16.msra.mxu0 %v3450
    %3524 = vmatprep.subr.bf16.mxu0 0
    %3525 = vmatpush1.bf16.msra.mxu0 %v3451
    %3526 = vmatprep.subr.bf16.mxu0 0
    %3527 = vmatpush1.bf16.msra.mxu0 %v3452
    %3528 = vmatprep.subr.bf16.mxu0 0
    %3529 = vmatpush1.bf16.msra.mxu0 %v3453
    %3530 = vmatprep.subr.bf16.mxu0 0
    %3531 = vmatpush1.bf16.msra.mxu0 %v3454
    %3532 = vmatprep.subr.bf16.mxu0 0
    %3533 = vmatpush1.bf16.msra.mxu0 %v3455
    %3534 = vmatprep.subr.bf16.mxu0 0
    %3535 = vmatpush1.bf16.msra.mxu0 %v3456
    %3536 = vmatprep.subr.bf16.mxu0 0
    %3537 = vmatpush1.bf16.msra.mxu0 %v3457
    %3538 = vmatprep.mubr.bf16.mxu0 %v3240
    %3539 = vmatmul.mubr.bf16.gmra.mrb[0].mxu0 %v3239
    %v3540 = vpop.f32.mrb[0].mxu0
    %v3541 = vadd.f32 %v3312, %v3540
    %v3542 = vpop.f32.mrb[0].mxu0
    %v3543 = vpop.f32.mrb[0].mxu0
    %v3544 = vpop.f32.mrb[0].mxu0
    %3545 = vdwg.mxu0
    %3546 = vmatprep.subr.bf16.mxu0 0
    %3547 = vmatpush1.bf16.msra.mxu0 %v3458
    %3548 = vmatprep.subr.bf16.mxu0 0
    %3549 = vmatpush1.bf16.msra.mxu0 %v3459
    %3550 = vmatprep.subr.bf16.mxu0 0
    %3551 = vmatpush1.bf16.msra.mxu0 %v3460
    %3552 = vmatprep.subr.bf16.mxu0 0
    %3553 = vmatpush1.bf16.msra.mxu0 %v3461
    %3554 = vmatprep.subr.bf16.mxu0 0
    %3555 = vmatpush1.bf16.msra.mxu0 %v3462
    %3556 = vmatprep.subr.bf16.mxu0 0
    %3557 = vmatpush1.bf16.msra.mxu0 %v3463
    %3558 = vmatprep.subr.bf16.mxu0 0
    %3559 = vmatpush1.bf16.msra.mxu0 %v3464
    %3560 = vmatprep.subr.bf16.mxu0 0
    %3561 = vmatpush1.bf16.msra.mxu0 %v3465
    %3562 = vmatprep.subr.bf16.mxu0 0
    %3563 = vmatpush1.bf16.msra.mxu0 %v3466
    %3564 = vmatprep.subr.bf16.mxu0 0
    %3565 = vmatpush1.bf16.msra.mxu0 %v3467
    %3566 = vmatprep.subr.bf16.mxu0 0
    %3567 = vmatpush1.bf16.msra.mxu0 %v3468
    %3568 = vmatprep.subr.bf16.mxu0 0
    %3569 = vmatpush1.bf16.msra.mxu0 %v3469
    %3570 = vmatprep.subr.bf16.mxu0 0
    %3571 = vmatpush1.bf16.msra.mxu0 %v3470
    %3572 = vmatprep.subr.bf16.mxu0 0
    %3573 = vmatpush1.bf16.msra.mxu0 %v3471
    %3574 = vmatprep.subr.bf16.mxu0 0
    %3575 = vmatpush1.bf16.msra.mxu0 %v3472
    %3576 = vmatprep.subr.bf16.mxu0 0
    %3577 = vmatpush1.bf16.msra.mxu0 %v3473
    %3578 = vmatprep.mubr.bf16.mxu0 %v3242
    %3579 = vmatmul.mubr.bf16.gmra.mrb[0].mxu0 %v3241
    %v3580 = vpop.f32.mrb[0].mxu0
    %v3581 = vadd.f32 %v3541, %v3580
    %v3582 = vpop.f32.mrb[0].mxu0
    %v3583 = vpop.f32.mrb[0].mxu0
    %v3584 = vpop.f32.mrb[0].mxu0
    %3585 = vdwg.mxu0
    %3586 = vst [vmem:[#allocation13] sm:$0x3] %v3581
    // Predicated region
    $region50: #{tpu_custom_call.1} parent=1 // pred_check
      _
    $region51: #{tpu_custom_call.1} parent=1 // pred_check_branch
      %3588 = sbr.rel (0) target = $region53
    $region52: #{tpu_custom_call.1} parent=1 // pred_region
      %s3590 = ssub.s32 32, 32
      %3591 = vsyncadd [#allocation4], %s3590
      %s3593 = sshll.u32 [#allocation13], 4
      %s3594 = int_to_ptr.vmem [resolvable:$true] %s3593
      %3596 = dma.vmem_to_hbm [thread:$0]  %s3594, 32, %s6, [#allocation4]
    $region53: #{tpu_custom_call.1} parent=1 // pred_fallthru
      _
    // Predicated region
    $region54: #{tpu_custom_call.1} parent=1 // pred_check
      _
    $region55: #{tpu_custom_call.1} parent=1 // pred_check_branch
      %3598 = sbr.rel (0) target = $region57
    $region56: #{tpu_custom_call.1} parent=1 // pred_region
      %3599 = dma.done [#allocation4], 32
    $region57: #{tpu_custom_call.1} parent=1 // pred_fallthru
      _
    %3600 = vsyncpa [#allocation3], 1
    %3601 = vsyncpa [#allocation6], 1
    %3602 = vsyncpa [#allocation9], 1
    %3603 = vsyncpa [#allocation12], 1
    %3604 = vsyncpa [#allocation4], 1

</llo_original>
